<compile_context>
chip_gen: v7x
topology: tpu7x:2x2x1
jax: 0.10.0
libtpu: 0.0.40
codegen_flags: <defaults>
</compile_context>

<pallas_src>
import math
from functools import partial

import jax
import jax.numpy as jnp
from jax import lax
from jax.experimental import pallas as pl
from jax.experimental.pallas import tpu as pltpu


def encoder_layer_kernel(n_head, eps,
                         x_ref,
                         wq_ref, bq_ref, wk_ref, bk_ref, wv_ref, bv_ref,
                         wo_ref, bo_ref,
                         g1_ref, be1_ref,
                         w1_ref, bf1_ref, w2_ref, bf2_ref,
                         g2_ref, be2_ref,
                         o_ref):
    Bblk, S, D = x_ref.shape
    dh = D // n_head
    scale = 1.0 / math.sqrt(dh)
    N = Bblk * S

    # Flatten the folded batch so every linear runs as one big (N, D) matmul.
    x = x_ref[...].reshape(N, D).astype(jnp.float32)
    x_bf = x.astype(jnp.bfloat16)

    def linear(a_bf16, w_ref, b_ref):
        # bf16 operands on the MXU, f32 accumulation, f32 bias add.
        return jnp.dot(a_bf16, w_ref[...],
                       preferred_element_type=jnp.float32) + b_ref[...]

    # --- Multi-head self-attention (all heads batched in one dot_general) ---
    q = linear(x_bf, wq_ref, bq_ref)          # (N, D) f32
    k = linear(x_bf, wk_ref, bk_ref)
    v = linear(x_bf, wv_ref, bv_ref)

    def split_heads(t2d):                     # (S, D) -> (n_head, S, dh)
        return jnp.transpose(t2d.reshape(S, n_head, dh), (1, 0, 2))

    # TODO(synk): for long sequences (S in the 1-4K range) tile the attention
    # flash-style over q/k blocks instead of materializing the full (S, S) scores.
    ctx_blocks = []
    for b in range(Bblk):                     # static, small: attention per batch element
        sl = slice(b * S, (b + 1) * S)
        qh = split_heads(q[sl]).astype(jnp.bfloat16)   # (H, S, dh)
        kh = split_heads(k[sl]).astype(jnp.bfloat16)
        vh = split_heads(v[sl]).astype(jnp.bfloat16)

        # One batched matmul over all heads: (H,S,dh) x (H,S,dh) -> (H,S,S)
        s = jnp.einsum('hqd,hkd->hqk', qh, kh,
                       preferred_element_type=jnp.float32) * scale
        m = jnp.max(s, axis=-1, keepdims=True)
        e = jnp.exp(s - m)
        denom = jnp.sum(e, axis=-1, keepdims=True)
        p = (e * pl.reciprocal(denom, approx=True)).astype(jnp.bfloat16)
        ctx = jnp.einsum('hqk,hkd->hqd', p, vh,
                         preferred_element_type=jnp.float32)     # (H, S, dh)
        ctx_blocks.append(jnp.transpose(ctx, (1, 0, 2)).reshape(S, D))
    attn = ctx_blocks[0] if Bblk == 1 else jnp.concatenate(ctx_blocks, axis=0)
    attn = linear(attn.astype(jnp.bfloat16), wo_ref, bo_ref)     # (N, D) f32

    def layernorm(a, g_ref, b_ref):
        # Single reduction sweep: var = E[x^2] - mu^2 (biased, matches torch).
        mu = jnp.mean(a, axis=-1, keepdims=True)
        ms = jnp.mean(a * a, axis=-1, keepdims=True)
        var = ms - mu * mu
        return (a - mu) * lax.rsqrt(var + eps) * g_ref[...] + b_ref[...]

    # dropout1 -> identity (eval); residual + LayerNorm
    h1 = layernorm(attn + x, g1_ref, be1_ref)

    # --- Position-wise feed-forward: Linear -> ReLU -> (dropout id) -> Linear ---
    f = jnp.maximum(linear(h1.astype(jnp.bfloat16), w1_ref, bf1_ref), 0.0)
    f = linear(f.astype(jnp.bfloat16), w2_ref, bf2_ref)

    # dropout2 -> identity (eval); residual + LayerNorm
    out = layernorm(f + h1, g2_ref, be2_ref)
    o_ref[...] = out.reshape(Bblk, S, D).astype(o_ref.dtype)


def encoder_layer(x, params, n_head, eps=1e-12, block_b=None):
    # NOTE: eps=1e-12 matches the reference repo's custom LayerNorm default.
    B, S, D = x.shape
    assert D % n_head == 0, "d_model must be divisible by n_head"
    F = params["w1"].shape[1]

    if block_b is None:
        # Fold a few batch elements per grid step to fill the MXU M dimension.
        block_b = 1
        for cand in (8, 4, 2):
            if B % cand == 0:
                block_b = cand
                break
    assert B % block_b == 0

    bf16, f32 = jnp.bfloat16, jnp.float32

    def const2d(shape):
        # Weights/biases: constant block index -> DMA'd once, stays VMEM-resident.
        # (For production-size weights also consider single-buffering these specs or
        #  streaming the FFN weights from HBM on v7x's 64 MiB VMEM.)
        return pl.BlockSpec(shape, lambda b: (0, 0))

    in_specs = [
        pl.BlockSpec((block_b, S, D), lambda b: (b, 0, 0)),   # x
        const2d((D, D)), const2d((1, D)),                     # wq, bq
        const2d((D, D)), const2d((1, D)),                     # wk, bk
        const2d((D, D)), const2d((1, D)),                     # wv, bv
        const2d((D, D)), const2d((1, D)),                     # wo, bo
        const2d((1, D)), const2d((1, D)),                     # gamma1, beta1
        const2d((D, F)), const2d((1, F)),                     # w1, b1
        const2d((F, D)), const2d((1, D)),                     # w2, b2
        const2d((1, D)), const2d((1, D)),                     # gamma2, beta2
    ]

    kernel = partial(encoder_layer_kernel, n_head, eps)
    return pl.pallas_call(
        kernel,
        out_shape=jax.ShapeDtypeStruct((B, S, D), x.dtype),
        grid_spec=pltpu.PrefetchScalarGridSpec(
            num_scalar_prefetch=0,
            grid=(B // block_b,),
            in_specs=in_specs,
            out_specs=pl.BlockSpec((block_b, S, D), lambda b: (b, 0, 0)),
        ),
        compiler_params=pltpu.CompilerParams(
            dimension_semantics=("parallel",),
            vmem_limit_bytes=64 * 1024 * 1024,
        ),
    )(x,
      # bf16 matmul weights (halves weight HBM/VMEM traffic, MXU-native),
      # f32 biases / layernorm params.
      params["wq"].astype(bf16), params["bq"].astype(f32),
      params["wk"].astype(bf16), params["bk"].astype(f32),
      params["wv"].astype(bf16), params["bv"].astype(f32),
      params["wo"].astype(bf16), params["bo"].astype(f32),
      params["g1"].astype(f32), params["be1"].astype(f32),
      params["w1"].astype(bf16), params["bf1"].astype(f32),
      params["w2"].astype(bf16), params["bf2"].astype(f32),
      params["g2"].astype(f32), params["be2"].astype(f32))


def encoder_layer_ref(x, params, n_head, eps=1e-12):
    """Pure-JAX f32 reference mirroring the PyTorch EncoderLayer forward (eval)."""
    B, S, D = x.shape
    dh = D // n_head

    def linear(a, w, b):
        return a @ w + b

    def ln(a, g, b):
        mu = a.mean(-1, keepdims=True)
        var = ((a - mu) ** 2).mean(-1, keepdims=True)
        return (a - mu) / jnp.sqrt(var + eps) * g + b

    q = linear(x, params["wq"], params["bq"]).reshape(B, S, n_head, dh).transpose(0, 2, 1, 3)
    k = linear(x, params["wk"], params["bk"]).reshape(B, S, n_head, dh).transpose(0, 2, 1, 3)
    v = linear(x, params["wv"], params["bv"]).reshape(B, S, n_head, dh).transpose(0, 2, 1, 3)
    s = jnp.einsum('bhqd,bhkd->bhqk', q, k) / math.sqrt(dh)
    p = jax.nn.softmax(s, axis=-1)
    ctx = jnp.einsum('bhqk,bhkd->bhqd', p, v).transpose(0, 2, 1, 3).reshape(B, S, D)
    attn = linear(ctx, params["wo"], params["bo"])
    h1 = ln(attn + x, params["g1"], params["be1"])
    f = jnp.maximum(linear(h1, params["w1"], params["bf1"]), 0.0)
    f = linear(f, params["w2"], params["bf2"])
    return ln(f + h1, params["g2"], params["be2"])


def init_params(key, d_model, ffn_hidden):
    ks = jax.random.split(key, 8)
    s_d = 1.0 / math.sqrt(d_model)
    s_f = 1.0 / math.sqrt(ffn_hidden)
    return {
        "wq": jax.random.normal(ks[0], (d_model, d_model), jnp.float32) * s_d,
        "wk": jax.random.normal(ks[1], (d_model, d_model), jnp.float32) * s_d,
        "wv": jax.random.normal(ks[2], (d_model, d_model), jnp.float32) * s_d,
        "wo": jax.random.normal(ks[3], (d_model, d_model), jnp.float32) * s_d,
        "bq": jax.random.normal(ks[4], (1, d_model), jnp.float32) * 0.01,
        "bk": jnp.zeros((1, d_model), jnp.float32),
        "bv": jnp.zeros((1, d_model), jnp.float32),
        "bo": jnp.zeros((1, d_model), jnp.float32),
        "g1": jnp.ones((1, d_model), jnp.float32),
        "be1": jnp.zeros((1, d_model), jnp.float32),
        "w1": jax.random.normal(ks[5], (d_model, ffn_hidden), jnp.float32) * s_d,
        "bf1": jax.random.normal(ks[6], (1, ffn_hidden), jnp.float32) * 0.01,
        "w2": jax.random.normal(ks[7], (ffn_hidden, d_model), jnp.float32) * s_f,
        "bf2": jnp.zeros((1, d_model), jnp.float32),
        "g2": jnp.ones((1, d_model), jnp.float32),
        "be2": jnp.zeros((1, d_model), jnp.float32),
    }


if __name__ == "__main__":
    # Small but lane-dense demo shapes (d_model multiple of 128).
    B, S, d_model, ffn_hidden, n_head = 2, 16, 128, 256, 4

    key = jax.random.PRNGKey(0)
    kx, kp = jax.random.split(key)
    x = jax.random.normal(kx, (B, S, d_model), jnp.float32)
    params = init_params(kp, d_model, ffn_hidden)

    out = encoder_layer(x, params, n_head)
    out = jax.block_until_ready(out)
    assert out.shape == (B, S, d_model)
    assert bool(jnp.all(jnp.isfinite(out)))

    # Loose tolerance: kernel uses bf16 matmul operands + approx reciprocal.
    ref = encoder_layer_ref(x, params, n_head)
    max_err = float(jnp.max(jnp.abs(out - ref)))
    assert max_err < 0.25, f"max abs error vs reference too large: {max_err}"

    print("KERNEL_OK")
</pallas_src>

<mosaic_0001>
module attributes {stable_mosaic.version = 11 : i64} {
  func.func @encoder_layer_kernel(%arg0: i32, %arg1: memref<2x16x128xf32, #tpu.memory_space<vmem>>, %arg2: memref<128x128xbf16, #tpu.memory_space<vmem>>, %arg3: memref<1x128xf32, #tpu.memory_space<vmem>>, %arg4: memref<128x128xbf16, #tpu.memory_space<vmem>>, %arg5: memref<1x128xf32, #tpu.memory_space<vmem>>, %arg6: memref<128x128xbf16, #tpu.memory_space<vmem>>, %arg7: memref<1x128xf32, #tpu.memory_space<vmem>>, %arg8: memref<128x128xbf16, #tpu.memory_space<vmem>>, %arg9: memref<1x128xf32, #tpu.memory_space<vmem>>, %arg10: memref<1x128xf32, #tpu.memory_space<vmem>>, %arg11: memref<1x128xf32, #tpu.memory_space<vmem>>, %arg12: memref<128x256xbf16, #tpu.memory_space<vmem>>, %arg13: memref<1x256xf32, #tpu.memory_space<vmem>>, %arg14: memref<256x128xbf16, #tpu.memory_space<vmem>>, %arg15: memref<1x128xf32, #tpu.memory_space<vmem>>, %arg16: memref<1x128xf32, #tpu.memory_space<vmem>>, %arg17: memref<1x128xf32, #tpu.memory_space<vmem>>, %arg18: memref<2x16x128xf32, #tpu.memory_space<vmem>>) attributes {dimension_semantics = [#tpu.dimension_semantics<parallel>], iteration_bounds = array<i64: 1>, scalar_prefetch = 0 : i64, scratch_operands = 0 : i64, tpu.core_type = #tpu.core_type<tc>, window_params = [{transform_indices = @transform_0, window_bounds = array<i64: 2, 16, 128>}, {pipeline_mode = #tpu.pipeline_mode<synchronous>, transform_indices = @transform_1, window_bounds = array<i64: 128, 128>}, {pipeline_mode = #tpu.pipeline_mode<synchronous>, transform_indices = @transform_2, window_bounds = array<i64: 1, 128>}, {pipeline_mode = #tpu.pipeline_mode<synchronous>, transform_indices = @transform_3, window_bounds = array<i64: 128, 128>}, {pipeline_mode = #tpu.pipeline_mode<synchronous>, transform_indices = @transform_4, window_bounds = array<i64: 1, 128>}, {pipeline_mode = #tpu.pipeline_mode<synchronous>, transform_indices = @transform_5, window_bounds = array<i64: 128, 128>}, {pipeline_mode = #tpu.pipeline_mode<synchronous>, transform_indices = @transform_6, window_bounds = array<i64: 1, 128>}, {pipeline_mode = #tpu.pipeline_mode<synchronous>, transform_indices = @transform_7, window_bounds = array<i64: 128, 128>}, {pipeline_mode = #tpu.pipeline_mode<synchronous>, transform_indices = @transform_8, window_bounds = array<i64: 1, 128>}, {pipeline_mode = #tpu.pipeline_mode<synchronous>, transform_indices = @transform_9, window_bounds = array<i64: 1, 128>}, {pipeline_mode = #tpu.pipeline_mode<synchronous>, transform_indices = @transform_10, window_bounds = array<i64: 1, 128>}, {pipeline_mode = #tpu.pipeline_mode<synchronous>, transform_indices = @transform_11, window_bounds = array<i64: 128, 256>}, {pipeline_mode = #tpu.pipeline_mode<synchronous>, transform_indices = @transform_12, window_bounds = array<i64: 1, 256>}, {pipeline_mode = #tpu.pipeline_mode<synchronous>, transform_indices = @transform_13, window_bounds = array<i64: 256, 128>}, {pipeline_mode = #tpu.pipeline_mode<synchronous>, transform_indices = @transform_14, window_bounds = array<i64: 1, 128>}, {pipeline_mode = #tpu.pipeline_mode<synchronous>, transform_indices = @transform_15, window_bounds = array<i64: 1, 128>}, {pipeline_mode = #tpu.pipeline_mode<synchronous>, transform_indices = @transform_16, window_bounds = array<i64: 1, 128>}, {transform_indices = @transform_17, window_bounds = array<i64: 2, 16, 128>}]} {
    %c0 = arith.constant 0 : index
    %c0_0 = arith.constant 0 : index
    %c0_1 = arith.constant 0 : index
    %0 = vector.load %arg1[%c0, %c0_0, %c0_1] : memref<2x16x128xf32, #tpu.memory_space<vmem>>, vector<2x16x128xf32>
    %1 = vector.shape_cast %0 : vector<2x16x128xf32> to vector<32x128xf32>
    %2 = arith.truncf %1 : vector<32x128xf32> to vector<32x128xbf16>
    %c0_2 = arith.constant 0 : index
    %c0_3 = arith.constant 0 : index
    %3 = vector.load %arg2[%c0_2, %c0_3] : memref<128x128xbf16, #tpu.memory_space<vmem>>, vector<128x128xbf16>
    %cst = arith.constant dense<0.000000e+00> : vector<32x128xf32>
    %4 = tpu.matmul %2, %3, %cst {dimension_numbers = #tpu.dot_dimension_numbers<[1], [0], [0], [1], [0, 0, 1, 1], [], []>} : vector<32x128xbf16>, vector<128x128xbf16>, vector<32x128xf32> -> vector<32x128xf32>
    %c0_4 = arith.constant 0 : index
    %c0_5 = arith.constant 0 : index
    %5 = vector.load %arg3[%c0_4, %c0_5] : memref<1x128xf32, #tpu.memory_space<vmem>>, vector<1x128xf32>
    %6 = vector.broadcast %5 : vector<1x128xf32> to vector<32x128xf32>
    %7 = arith.addf %4, %6 : vector<32x128xf32>
    %c0_6 = arith.constant 0 : index
    %c0_7 = arith.constant 0 : index
    %8 = vector.load %arg4[%c0_6, %c0_7] : memref<128x128xbf16, #tpu.memory_space<vmem>>, vector<128x128xbf16>
    %cst_8 = arith.constant dense<0.000000e+00> : vector<32x128xf32>
    %9 = tpu.matmul %2, %8, %cst_8 {dimension_numbers = #tpu.dot_dimension_numbers<[1], [0], [0], [1], [0, 0, 1, 1], [], []>} : vector<32x128xbf16>, vector<128x128xbf16>, vector<32x128xf32> -> vector<32x128xf32>
    %c0_9 = arith.constant 0 : index
    %c0_10 = arith.constant 0 : index
    %10 = vector.load %arg5[%c0_9, %c0_10] : memref<1x128xf32, #tpu.memory_space<vmem>>, vector<1x128xf32>
    %11 = vector.broadcast %10 : vector<1x128xf32> to vector<32x128xf32>
    %12 = arith.addf %9, %11 : vector<32x128xf32>
    %c0_11 = arith.constant 0 : index
    %c0_12 = arith.constant 0 : index
    %13 = vector.load %arg6[%c0_11, %c0_12] : memref<128x128xbf16, #tpu.memory_space<vmem>>, vector<128x128xbf16>
    %cst_13 = arith.constant dense<0.000000e+00> : vector<32x128xf32>
    %14 = tpu.matmul %2, %13, %cst_13 {dimension_numbers = #tpu.dot_dimension_numbers<[1], [0], [0], [1], [0, 0, 1, 1], [], []>} : vector<32x128xbf16>, vector<128x128xbf16>, vector<32x128xf32> -> vector<32x128xf32>
    %c0_14 = arith.constant 0 : index
    %c0_15 = arith.constant 0 : index
    %15 = vector.load %arg7[%c0_14, %c0_15] : memref<1x128xf32, #tpu.memory_space<vmem>>, vector<1x128xf32>
    %16 = vector.broadcast %15 : vector<1x128xf32> to vector<32x128xf32>
    %17 = arith.addf %14, %16 : vector<32x128xf32>
    %18 = vector.extract_strided_slice %7 {offsets = [0, 0], sizes = [16, 128], strides = [1, 1]} : vector<32x128xf32> to vector<16x128xf32>
    %19 = vector.shape_cast %18 : vector<16x128xf32> to vector<16x4x32xf32>
    %20 = tpu.transpose %19, [1, 0, 2] : vector<16x4x32xf32> -> vector<4x16x32xf32>
    %21 = arith.truncf %20 : vector<4x16x32xf32> to vector<4x16x32xbf16>
    %22 = vector.extract_strided_slice %12 {offsets = [0, 0], sizes = [16, 128], strides = [1, 1]} : vector<32x128xf32> to vector<16x128xf32>
    %23 = vector.shape_cast %22 : vector<16x128xf32> to vector<16x4x32xf32>
    %24 = tpu.transpose %23, [1, 0, 2] : vector<16x4x32xf32> -> vector<4x16x32xf32>
    %25 = arith.truncf %24 : vector<4x16x32xf32> to vector<4x16x32xbf16>
    %26 = vector.extract_strided_slice %17 {offsets = [0, 0], sizes = [16, 128], strides = [1, 1]} : vector<32x128xf32> to vector<16x128xf32>
    %27 = vector.shape_cast %26 : vector<16x128xf32> to vector<16x4x32xf32>
    %28 = tpu.transpose %27, [1, 0, 2] : vector<16x4x32xf32> -> vector<4x16x32xf32>
    %29 = arith.truncf %28 : vector<4x16x32xf32> to vector<4x16x32xbf16>
    "tpu.trace_start"() <{level = 10 : i32, message = "hqd,hkd->hqk"}> : () -> ()
    %cst_16 = arith.constant dense<0.000000e+00> : vector<4x16x16xf32>
    %30 = tpu.matmul %21, %25, %cst_16 {dimension_numbers = #tpu.dot_dimension_numbers<[2], [2], [1], [1], [0, 0, 0, 1, 1, 1], [0], [0]>} : vector<4x16x32xbf16>, vector<4x16x32xbf16>, vector<4x16x16xf32> -> vector<4x16x16xf32>
    "tpu.trace_stop"() : () -> ()
    %cst_17 = arith.constant 0.176776692 : f32
    %31 = vector.broadcast %cst_17 : f32 to vector<4x16x16xf32>
    %32 = arith.mulf %30, %31 : vector<4x16x16xf32>
    %cst_18 = arith.constant dense<0xFF800000> : vector<4x16xf32>
    %33 = vector.multi_reduction <maximumf>, %32, %cst_18 [2] : vector<4x16x16xf32> to vector<4x16xf32>
    %34 = vector.shape_cast %33 : vector<4x16xf32> to vector<4x16x1xf32>
    %35 = vector.broadcast %34 : vector<4x16x1xf32> to vector<4x16x16xf32>
    %36 = arith.subf %32, %35 : vector<4x16x16xf32>
    %37 = math.exp %36 : vector<4x16x16xf32>
    %cst_19 = arith.constant dense<0.000000e+00> : vector<4x16xf32>
    %38 = vector.multi_reduction <add>, %37, %cst_19 [2] : vector<4x16x16xf32> to vector<4x16xf32>
    %39 = vector.shape_cast %38 : vector<4x16xf32> to vector<4x16x1xf32>
    %40 = tpu.reciprocal %39 {approx = true} : vector<4x16x1xf32> -> vector<4x16x1xf32>
    %41 = vector.broadcast %40 : vector<4x16x1xf32> to vector<4x16x16xf32>
    %42 = arith.mulf %37, %41 : vector<4x16x16xf32>
    %43 = arith.truncf %42 : vector<4x16x16xf32> to vector<4x16x16xbf16>
    "tpu.trace_start"() <{level = 10 : i32, message = "hqk,hkd->hqd"}> : () -> ()
    %cst_20 = arith.constant dense<0.000000e+00> : vector<4x16x32xf32>
    %44 = tpu.matmul %43, %29, %cst_20 {dimension_numbers = #tpu.dot_dimension_numbers<[2], [1], [1], [2], [0, 0, 0, 1, 1, 2], [0], [0]>} : vector<4x16x16xbf16>, vector<4x16x32xbf16>, vector<4x16x32xf32> -> vector<4x16x32xf32>
    "tpu.trace_stop"() : () -> ()
    %45 = tpu.transpose %44, [1, 0, 2] : vector<4x16x32xf32> -> vector<16x4x32xf32>
    %46 = vector.shape_cast %45 : vector<16x4x32xf32> to vector<16x128xf32>
    %47 = vector.extract_strided_slice %7 {offsets = [16, 0], sizes = [16, 128], strides = [1, 1]} : vector<32x128xf32> to vector<16x128xf32>
    %48 = vector.shape_cast %47 : vector<16x128xf32> to vector<16x4x32xf32>
    %49 = tpu.transpose %48, [1, 0, 2] : vector<16x4x32xf32> -> vector<4x16x32xf32>
    %50 = arith.truncf %49 : vector<4x16x32xf32> to vector<4x16x32xbf16>
    %51 = vector.extract_strided_slice %12 {offsets = [16, 0], sizes = [16, 128], strides = [1, 1]} : vector<32x128xf32> to vector<16x128xf32>
    %52 = vector.shape_cast %51 : vector<16x128xf32> to vector<16x4x32xf32>
    %53 = tpu.transpose %52, [1, 0, 2] : vector<16x4x32xf32> -> vector<4x16x32xf32>
    %54 = arith.truncf %53 : vector<4x16x32xf32> to vector<4x16x32xbf16>
    %55 = vector.extract_strided_slice %17 {offsets = [16, 0], sizes = [16, 128], strides = [1, 1]} : vector<32x128xf32> to vector<16x128xf32>
    %56 = vector.shape_cast %55 : vector<16x128xf32> to vector<16x4x32xf32>
    %57 = tpu.transpose %56, [1, 0, 2] : vector<16x4x32xf32> -> vector<4x16x32xf32>
    %58 = arith.truncf %57 : vector<4x16x32xf32> to vector<4x16x32xbf16>
    "tpu.trace_start"() <{level = 10 : i32, message = "hqd,hkd->hqk"}> : () -> ()
    %cst_21 = arith.constant dense<0.000000e+00> : vector<4x16x16xf32>
    %59 = tpu.matmul %50, %54, %cst_21 {dimension_numbers = #tpu.dot_dimension_numbers<[2], [2], [1], [1], [0, 0, 0, 1, 1, 1], [0], [0]>} : vector<4x16x32xbf16>, vector<4x16x32xbf16>, vector<4x16x16xf32> -> vector<4x16x16xf32>
    "tpu.trace_stop"() : () -> ()
    %cst_22 = arith.constant 0.176776692 : f32
    %60 = vector.broadcast %cst_22 : f32 to vector<4x16x16xf32>
    %61 = arith.mulf %59, %60 : vector<4x16x16xf32>
    %cst_23 = arith.constant dense<0xFF800000> : vector<4x16xf32>
    %62 = vector.multi_reduction <maximumf>, %61, %cst_23 [2] : vector<4x16x16xf32> to vector<4x16xf32>
    %63 = vector.shape_cast %62 : vector<4x16xf32> to vector<4x16x1xf32>
    %64 = vector.broadcast %63 : vector<4x16x1xf32> to vector<4x16x16xf32>
    %65 = arith.subf %61, %64 : vector<4x16x16xf32>
    %66 = math.exp %65 : vector<4x16x16xf32>
    %cst_24 = arith.constant dense<0.000000e+00> : vector<4x16xf32>
    %67 = vector.multi_reduction <add>, %66, %cst_24 [2] : vector<4x16x16xf32> to vector<4x16xf32>
    %68 = vector.shape_cast %67 : vector<4x16xf32> to vector<4x16x1xf32>
    %69 = tpu.reciprocal %68 {approx = true} : vector<4x16x1xf32> -> vector<4x16x1xf32>
    %70 = vector.broadcast %69 : vector<4x16x1xf32> to vector<4x16x16xf32>
    %71 = arith.mulf %66, %70 : vector<4x16x16xf32>
    %72 = arith.truncf %71 : vector<4x16x16xf32> to vector<4x16x16xbf16>
    "tpu.trace_start"() <{level = 10 : i32, message = "hqk,hkd->hqd"}> : () -> ()
    %cst_25 = arith.constant dense<0.000000e+00> : vector<4x16x32xf32>
    %73 = tpu.matmul %72, %58, %cst_25 {dimension_numbers = #tpu.dot_dimension_numbers<[2], [1], [1], [2], [0, 0, 0, 1, 1, 2], [0], [0]>} : vector<4x16x16xbf16>, vector<4x16x32xbf16>, vector<4x16x32xf32> -> vector<4x16x32xf32>
    "tpu.trace_stop"() : () -> ()
    %74 = tpu.transpose %73, [1, 0, 2] : vector<4x16x32xf32> -> vector<16x4x32xf32>
    %75 = vector.shape_cast %74 : vector<16x4x32xf32> to vector<16x128xf32>
    %76 = tpu.concatenate %46, %75 in 0 : vector<16x128xf32>, vector<16x128xf32> -> vector<32x128xf32>
    %77 = arith.truncf %76 : vector<32x128xf32> to vector<32x128xbf16>
    %c0_26 = arith.constant 0 : index
    %c0_27 = arith.constant 0 : index
    %78 = vector.load %arg8[%c0_26, %c0_27] : memref<128x128xbf16, #tpu.memory_space<vmem>>, vector<128x128xbf16>
    %cst_28 = arith.constant dense<0.000000e+00> : vector<32x128xf32>
    %79 = tpu.matmul %77, %78, %cst_28 {dimension_numbers = #tpu.dot_dimension_numbers<[1], [0], [0], [1], [0, 0, 1, 1], [], []>} : vector<32x128xbf16>, vector<128x128xbf16>, vector<32x128xf32> -> vector<32x128xf32>
    %c0_29 = arith.constant 0 : index
    %c0_30 = arith.constant 0 : index
    %80 = vector.load %arg9[%c0_29, %c0_30] : memref<1x128xf32, #tpu.memory_space<vmem>>, vector<1x128xf32>
    %81 = vector.broadcast %80 : vector<1x128xf32> to vector<32x128xf32>
    %82 = arith.addf %79, %81 : vector<32x128xf32>
    %83 = arith.addf %82, %1 : vector<32x128xf32>
    %cst_31 = arith.constant dense<0.000000e+00> : vector<32xf32>
    %84 = vector.multi_reduction <add>, %83, %cst_31 [1] : vector<32x128xf32> to vector<32xf32>
    %85 = vector.shape_cast %84 : vector<32xf32> to vector<32x1xf32>
    %cst_32 = arith.constant 1.280000e+02 : f32
    %86 = vector.broadcast %cst_32 : f32 to vector<32x1xf32>
    %87 = arith.divf %85, %86 : vector<32x1xf32>
    %88 = arith.mulf %83, %83 : vector<32x128xf32>
    %cst_33 = arith.constant dense<0.000000e+00> : vector<32xf32>
    %89 = vector.multi_reduction <add>, %88, %cst_33 [1] : vector<32x128xf32> to vector<32xf32>
    %90 = vector.shape_cast %89 : vector<32xf32> to vector<32x1xf32>
    %cst_34 = arith.constant 1.280000e+02 : f32
    %91 = vector.broadcast %cst_34 : f32 to vector<32x1xf32>
    %92 = arith.divf %90, %91 : vector<32x1xf32>
    %93 = arith.mulf %87, %87 : vector<32x1xf32>
    %94 = arith.subf %92, %93 : vector<32x1xf32>
    %95 = vector.broadcast %87 : vector<32x1xf32> to vector<32x128xf32>
    %96 = arith.subf %83, %95 : vector<32x128xf32>
    %cst_35 = arith.constant 9.99999996E-13 : f32
    %97 = vector.broadcast %cst_35 : f32 to vector<32x1xf32>
    %98 = arith.addf %94, %97 : vector<32x1xf32>
    %99 = math.rsqrt %98 : vector<32x1xf32>
    %100 = vector.broadcast %99 : vector<32x1xf32> to vector<32x128xf32>
    %101 = arith.mulf %96, %100 : vector<32x128xf32>
    %c0_36 = arith.constant 0 : index
    %c0_37 = arith.constant 0 : index
    %102 = vector.load %arg10[%c0_36, %c0_37] : memref<1x128xf32, #tpu.memory_space<vmem>>, vector<1x128xf32>
    %103 = vector.broadcast %102 : vector<1x128xf32> to vector<32x128xf32>
    %104 = arith.mulf %101, %103 : vector<32x128xf32>
    %c0_38 = arith.constant 0 : index
    %c0_39 = arith.constant 0 : index
    %105 = vector.load %arg11[%c0_38, %c0_39] : memref<1x128xf32, #tpu.memory_space<vmem>>, vector<1x128xf32>
    %106 = vector.broadcast %105 : vector<1x128xf32> to vector<32x128xf32>
    %107 = arith.addf %104, %106 : vector<32x128xf32>
    %108 = arith.truncf %107 : vector<32x128xf32> to vector<32x128xbf16>
    %c0_40 = arith.constant 0 : index
    %c0_41 = arith.constant 0 : index
    %109 = vector.load %arg12[%c0_40, %c0_41] : memref<128x256xbf16, #tpu.memory_space<vmem>>, vector<128x256xbf16>
    %cst_42 = arith.constant dense<0.000000e+00> : vector<32x256xf32>
    %110 = tpu.matmul %108, %109, %cst_42 {dimension_numbers = #tpu.dot_dimension_numbers<[1], [0], [0], [1], [0, 0, 1, 1], [], []>} : vector<32x128xbf16>, vector<128x256xbf16>, vector<32x256xf32> -> vector<32x256xf32>
    %c0_43 = arith.constant 0 : index
    %c0_44 = arith.constant 0 : index
    %111 = vector.load %arg13[%c0_43, %c0_44] : memref<1x256xf32, #tpu.memory_space<vmem>>, vector<1x256xf32>
    %112 = vector.broadcast %111 : vector<1x256xf32> to vector<32x256xf32>
    %113 = arith.addf %110, %112 : vector<32x256xf32>
    %cst_45 = arith.constant 0.000000e+00 : f32
    %114 = vector.broadcast %cst_45 : f32 to vector<32x256xf32>
    %115 = arith.maximumf %113, %114 : vector<32x256xf32>
    %116 = arith.truncf %115 : vector<32x256xf32> to vector<32x256xbf16>
    %c0_46 = arith.constant 0 : index
    %c0_47 = arith.constant 0 : index
    %117 = vector.load %arg14[%c0_46, %c0_47] : memref<256x128xbf16, #tpu.memory_space<vmem>>, vector<256x128xbf16>
    %cst_48 = arith.constant dense<0.000000e+00> : vector<32x128xf32>
    %118 = tpu.matmul %116, %117, %cst_48 {dimension_numbers = #tpu.dot_dimension_numbers<[1], [0], [0], [1], [0, 0, 1, 1], [], []>} : vector<32x256xbf16>, vector<256x128xbf16>, vector<32x128xf32> -> vector<32x128xf32>
    %c0_49 = arith.constant 0 : index
    %c0_50 = arith.constant 0 : index
    %119 = vector.load %arg15[%c0_49, %c0_50] : memref<1x128xf32, #tpu.memory_space<vmem>>, vector<1x128xf32>
    %120 = vector.broadcast %119 : vector<1x128xf32> to vector<32x128xf32>
    %121 = arith.addf %118, %120 : vector<32x128xf32>
    %122 = arith.addf %121, %107 : vector<32x128xf32>
    %cst_51 = arith.constant dense<0.000000e+00> : vector<32xf32>
    %123 = vector.multi_reduction <add>, %122, %cst_51 [1] : vector<32x128xf32> to vector<32xf32>
    %124 = vector.shape_cast %123 : vector<32xf32> to vector<32x1xf32>
    %cst_52 = arith.constant 1.280000e+02 : f32
    %125 = vector.broadcast %cst_52 : f32 to vector<32x1xf32>
    %126 = arith.divf %124, %125 : vector<32x1xf32>
    %127 = arith.mulf %122, %122 : vector<32x128xf32>
    %cst_53 = arith.constant dense<0.000000e+00> : vector<32xf32>
    %128 = vector.multi_reduction <add>, %127, %cst_53 [1] : vector<32x128xf32> to vector<32xf32>
    %129 = vector.shape_cast %128 : vector<32xf32> to vector<32x1xf32>
    %cst_54 = arith.constant 1.280000e+02 : f32
    %130 = vector.broadcast %cst_54 : f32 to vector<32x1xf32>
    %131 = arith.divf %129, %130 : vector<32x1xf32>
    %132 = arith.mulf %126, %126 : vector<32x1xf32>
    %133 = arith.subf %131, %132 : vector<32x1xf32>
    %134 = vector.broadcast %126 : vector<32x1xf32> to vector<32x128xf32>
    %135 = arith.subf %122, %134 : vector<32x128xf32>
    %cst_55 = arith.constant 9.99999996E-13 : f32
    %136 = vector.broadcast %cst_55 : f32 to vector<32x1xf32>
    %137 = arith.addf %133, %136 : vector<32x1xf32>
    %138 = math.rsqrt %137 : vector<32x1xf32>
    %139 = vector.broadcast %138 : vector<32x1xf32> to vector<32x128xf32>
    %140 = arith.mulf %135, %139 : vector<32x128xf32>
    %c0_56 = arith.constant 0 : index
    %c0_57 = arith.constant 0 : index
    %141 = vector.load %arg16[%c0_56, %c0_57] : memref<1x128xf32, #tpu.memory_space<vmem>>, vector<1x128xf32>
    %142 = vector.broadcast %141 : vector<1x128xf32> to vector<32x128xf32>
    %143 = arith.mulf %140, %142 : vector<32x128xf32>
    %c0_58 = arith.constant 0 : index
    %c0_59 = arith.constant 0 : index
    %144 = vector.load %arg17[%c0_58, %c0_59] : memref<1x128xf32, #tpu.memory_space<vmem>>, vector<1x128xf32>
    %145 = vector.broadcast %144 : vector<1x128xf32> to vector<32x128xf32>
    %146 = arith.addf %143, %145 : vector<32x128xf32>
    %147 = vector.shape_cast %146 : vector<32x128xf32> to vector<2x16x128xf32>
    %c0_60 = arith.constant 0 : index
    %c0_61 = arith.constant 0 : index
    %c0_62 = arith.constant 0 : index
    %148 = vector.load %arg18[%c0_60, %c0_61, %c0_62] : memref<2x16x128xf32, #tpu.memory_space<vmem>>, vector<2x16x128xf32>
    tpu.vector_store %arg18[%c0_60, %c0_61, %c0_62], %147 {strides = array<i32>} : memref<2x16x128xf32, #tpu.memory_space<vmem>>, vector<2x16x128xf32>,
    return
  }
  func.func @transform_0(%arg0: i32) -> (i32, i32, i32) {
    %c0_i32 = arith.constant 0 : i32
    %c0_i32_0 = arith.constant 0 : i32
    %c0_i32_1 = arith.constant 0 : i32
    return %arg0, %c0_i32, %c0_i32_0 : i32, i32, i32
  }
  func.func @transform_1(%arg0: i32) -> (i32, i32) {
    %c0_i32 = arith.constant 0 : i32
    %c0_i32_0 = arith.constant 0 : i32
    %c0_i32_1 = arith.constant 0 : i32
    return %c0_i32, %c0_i32_0 : i32, i32
  }
  func.func @transform_2(%arg0: i32) -> (i32, i32) {
    %c0_i32 = arith.constant 0 : i32
    %c0_i32_0 = arith.constant 0 : i32
    %c0_i32_1 = arith.constant 0 : i32
    return %c0_i32, %c0_i32_0 : i32, i32
  }
  func.func @transform_3(%arg0: i32) -> (i32, i32) {
    %c0_i32 = arith.constant 0 : i32
    %c0_i32_0 = arith.constant 0 : i32
    %c0_i32_1 = arith.constant 0 : i32
    return %c0_i32, %c0_i32_0 : i32, i32
  }
  func.func @transform_4(%arg0: i32) -> (i32, i32) {
    %c0_i32 = arith.constant 0 : i32
    %c0_i32_0 = arith.constant 0 : i32
    %c0_i32_1 = arith.constant 0 : i32
    return %c0_i32, %c0_i32_0 : i32, i32
  }
  func.func @transform_5(%arg0: i32) -> (i32, i32) {
    %c0_i32 = arith.constant 0 : i32
    %c0_i32_0 = arith.constant 0 : i32
    %c0_i32_1 = arith.constant 0 : i32
    return %c0_i32, %c0_i32_0 : i32, i32
  }
  func.func @transform_6(%arg0: i32) -> (i32, i32) {
    %c0_i32 = arith.constant 0 : i32
    %c0_i32_0 = arith.constant 0 : i32
    %c0_i32_1 = arith.constant 0 : i32
    return %c0_i32, %c0_i32_0 : i32, i32
  }
  func.func @transform_7(%arg0: i32) -> (i32, i32) {
    %c0_i32 = arith.constant 0 : i32
    %c0_i32_0 = arith.constant 0 : i32
    %c0_i32_1 = arith.constant 0 : i32
    return %c0_i32, %c0_i32_0 : i32, i32
  }
  func.func @transform_8(%arg0: i32) -> (i32, i32) {
    %c0_i32 = arith.constant 0 : i32
    %c0_i32_0 = arith.constant 0 : i32
    %c0_i32_1 = arith.constant 0 : i32
    return %c0_i32, %c0_i32_0 : i32, i32
  }
  func.func @transform_9(%arg0: i32) -> (i32, i32) {
    %c0_i32 = arith.constant 0 : i32
    %c0_i32_0 = arith.constant 0 : i32
    %c0_i32_1 = arith.constant 0 : i32
    return %c0_i32, %c0_i32_0 : i32, i32
  }
  func.func @transform_10(%arg0: i32) -> (i32, i32) {
    %c0_i32 = arith.constant 0 : i32
    %c0_i32_0 = arith.constant 0 : i32
    %c0_i32_1 = arith.constant 0 : i32
    return %c0_i32, %c0_i32_0 : i32, i32
  }
  func.func @transform_11(%arg0: i32) -> (i32, i32) {
    %c0_i32 = arith.constant 0 : i32
    %c0_i32_0 = arith.constant 0 : i32
    %c0_i32_1 = arith.constant 0 : i32
    return %c0_i32, %c0_i32_0 : i32, i32
  }
  func.func @transform_12(%arg0: i32) -> (i32, i32) {
    %c0_i32 = arith.constant 0 : i32
    %c0_i32_0 = arith.constant 0 : i32
    %c0_i32_1 = arith.constant 0 : i32
    return %c0_i32, %c0_i32_0 : i32, i32
  }
  func.func @transform_13(%arg0: i32) -> (i32, i32) {
    %c0_i32 = arith.constant 0 : i32
    %c0_i32_0 = arith.constant 0 : i32
    %c0_i32_1 = arith.constant 0 : i32
    return %c0_i32, %c0_i32_0 : i32, i32
  }
  func.func @transform_14(%arg0: i32) -> (i32, i32) {
    %c0_i32 = arith.constant 0 : i32
    %c0_i32_0 = arith.constant 0 : i32
    %c0_i32_1 = arith.constant 0 : i32
    return %c0_i32, %c0_i32_0 : i32, i32
  }
  func.func @transform_15(%arg0: i32) -> (i32, i32) {
    %c0_i32 = arith.constant 0 : i32
    %c0_i32_0 = arith.constant 0 : i32
    %c0_i32_1 = arith.constant 0 : i32
    return %c0_i32, %c0_i32_0 : i32, i32
  }
  func.func @transform_16(%arg0: i32) -> (i32, i32) {
    %c0_i32 = arith.constant 0 : i32
    %c0_i32_0 = arith.constant 0 : i32
    %c0_i32_1 = arith.constant 0 : i32
    return %c0_i32, %c0_i32_0 : i32, i32
  }
  func.func @transform_17(%arg0: i32) -> (i32, i32, i32) {
    %c0_i32 = arith.constant 0 : i32
    %c0_i32_0 = arith.constant 0 : i32
    %c0_i32_1 = arith.constant 0 : i32
    return %arg0, %c0_i32, %c0_i32_0 : i32, i32, i32
  }
}

</mosaic_0001>

<llo_original>
// kernel: tpu_custom_call.1
$region0: #{tpu_custom_call.1}
  #allocation0 [shape = 'u32[]', space=smem, size = 0x4, offset = 0x4, fixed_abs, tag = 'smem constant byte address 0x4 - core index']
  #allocation1 [shape = 'u32[144,128]{1,0:T(1,128)}', space=vmem, size = 0x12000, scoped, tag = 'internal scratch']
  %s0 = inlined_call_operand.hbm [shape: f32[2,16,128], index: 0, kind: input, shape index: {}]
  %s1 = inlined_call_operand.hbm [shape: bf16[128,128], index: 1, kind: input, shape index: {}]
  %s2 = inlined_call_operand.hbm [shape: f32[1,128], index: 2, kind: input, shape index: {}]
  %s3 = inlined_call_operand.hbm [shape: bf16[128,128], index: 3, kind: input, shape index: {}]
  %s4 = inlined_call_operand.hbm [shape: f32[1,128], index: 4, kind: input, shape index: {}]
  %s5 = inlined_call_operand.hbm [shape: bf16[128,128], index: 5, kind: input, shape index: {}]
  %s6 = inlined_call_operand.hbm [shape: f32[1,128], index: 6, kind: input, shape index: {}]
  %s7 = inlined_call_operand.hbm [shape: bf16[128,128], index: 7, kind: input, shape index: {}]
  %s8 = inlined_call_operand.hbm [shape: f32[1,128], index: 8, kind: input, shape index: {}]
  %s9 = inlined_call_operand.hbm [shape: f32[1,128], index: 9, kind: input, shape index: {}]
  %s10 = inlined_call_operand.hbm [shape: f32[1,128], index: 10, kind: input, shape index: {}]
  %s11 = inlined_call_operand.hbm [shape: bf16[128,256], index: 11, kind: input, shape index: {}]
  %s12 = inlined_call_operand.hbm [shape: f32[1,256], index: 12, kind: input, shape index: {}]
  %s13 = inlined_call_operand.hbm [shape: bf16[256,128], index: 13, kind: input, shape index: {}]
  %s14 = inlined_call_operand.hbm [shape: f32[1,128], index: 14, kind: input, shape index: {}]
  %s15 = inlined_call_operand.hbm [shape: f32[1,128], index: 15, kind: input, shape index: {}]
  %s16 = inlined_call_operand.hbm [shape: f32[1,128], index: 16, kind: input, shape index: {}]
  %s17 = inlined_call_operand.hbm [shape: f32[2,16,128], index: 17, kind: output, shape index: {}]
  %s18 = sld [smem:[#allocation0]]
  $region146: #{tpu_custom_call.1} parent=0
    _
  %s20 = ssub.s32 1, %s18
  %s21 = scalar_select 0, %s20, %s18
  $region1: #{tpu_custom_call.1} parent=0
    #allocation2 [shape = 'u8[16384]{0}', space=vmem, size = 0x4000, scoped, tag = 'input window, operand 0, single buffered']
    #allocation3 [shape = 's32[1]{0}', space=sflag, size = 0x4, scoped, tag = 'scoped memory for tpu_custom_call.1']
    #allocation4 [shape = 's32[1]{0}', space=sflag, size = 0x4, scoped, tag = 'scoped memory for tpu_custom_call.1']
    #allocation5 [shape = 'u8[32768]{0}', space=vmem, size = 0x8000, scoped, tag = 'input window, operand 1, single buffered']
    #allocation6 [shape = 's32[1]{0}', space=sflag, size = 0x4, scoped, tag = 'scoped memory for tpu_custom_call.1']
    #allocation7 [shape = 'u8[512]{0}', space=vmem, size = 0x400, scoped, tag = 'input window, operand 2, single buffered']
    #allocation8 [shape = 'u8[32768]{0}', space=vmem, size = 0x8000, scoped, tag = 'input window, operand 3, single buffered']
    #allocation9 [shape = 's32[1]{0}', space=sflag, size = 0x4, scoped, tag = 'scoped memory for tpu_custom_call.1']
    #allocation10 [shape = 'u8[512]{0}', space=vmem, size = 0x400, scoped, tag = 'input window, operand 4, single buffered']
    #allocation11 [shape = 'u8[32768]{0}', space=vmem, size = 0x8000, scoped, tag = 'input window, operand 5, single buffered']
    #allocation12 [shape = 's32[1]{0}', space=sflag, size = 0x4, scoped, tag = 'scoped memory for tpu_custom_call.1']
    #allocation13 [shape = 'u8[512]{0}', space=vmem, size = 0x400, scoped, tag = 'input window, operand 6, single buffered']
    #allocation14 [shape = 'u8[32768]{0}', space=vmem, size = 0x8000, scoped, tag = 'input window, operand 7, single buffered']
    #allocation15 [shape = 's32[1]{0}', space=sflag, size = 0x4, scoped, tag = 'scoped memory for tpu_custom_call.1']
    #allocation16 [shape = 'u8[512]{0}', space=vmem, size = 0x400, scoped, tag = 'input window, operand 8, single buffered']
    #allocation17 [shape = 'u8[512]{0}', space=vmem, size = 0x400, scoped, tag = 'input window, operand 9, single buffered']
    #allocation18 [shape = 's32[1]{0}', space=sflag, size = 0x4, scoped, tag = 'scoped memory for tpu_custom_call.1']
    #allocation19 [shape = 'u8[512]{0}', space=vmem, size = 0x400, scoped, tag = 'input window, operand 10, single buffered']
    #allocation20 [shape = 'u8[65536]{0}', space=vmem, size = 0x10000, scoped, tag = 'input window, operand 11, single buffered']
    #allocation21 [shape = 's32[1]{0}', space=sflag, size = 0x4, scoped, tag = 'scoped memory for tpu_custom_call.1']
    #allocation22 [shape = 'u8[1024]{0}', space=vmem, size = 0x400, scoped, tag = 'input window, operand 12, single buffered']
    #allocation23 [shape = 'u8[65536]{0}', space=vmem, size = 0x10000, scoped, tag = 'input window, operand 13, single buffered']
    #allocation24 [shape = 's32[1]{0}', space=sflag, size = 0x4, scoped, tag = 'scoped memory for tpu_custom_call.1']
    #allocation25 [shape = 'u8[512]{0}', space=vmem, size = 0x400, scoped, tag = 'input window, operand 14, single buffered']
    #allocation26 [shape = 'u8[512]{0}', space=vmem, size = 0x400, scoped, tag = 'input window, operand 15, single buffered']
    #allocation27 [shape = 's32[1]{0}', space=sflag, size = 0x4, scoped, tag = 'scoped memory for tpu_custom_call.1']
    #allocation28 [shape = 'u8[512]{0}', space=vmem, size = 0x400, scoped, tag = 'input window, operand 16, single buffered']
    #allocation29 [shape = 'u8[16384]{0}', space=vmem, size = 0x4000, scoped, tag = 'output window, operand 0, single buffered']
    %22 = vsyncpa [#allocation3], 0
    %23 = vsyncpa [#allocation6], 0
    %24 = vsyncpa [#allocation9], 0
    %25 = vsyncpa [#allocation12], 0
    %26 = vsyncpa [#allocation15], 0
    %27 = vsyncpa [#allocation18], 0
    %28 = vsyncpa [#allocation21], 0
    %29 = vsyncpa [#allocation24], 0
    %30 = vsyncpa [#allocation27], 0
    %31 = vsyncpa [#allocation4], 0
    // Predicated region
    $region2: #{tpu_custom_call.1} parent=1 // pred_check
      _
    $region3: #{tpu_custom_call.1} parent=1 // pred_check_branch
      %33 = sbr.rel (0) target = $region5
    $region4: #{tpu_custom_call.1} parent=1 // pred_region
      %s35 = ssub.s32 512, 512
      %36 = vsyncadd [#allocation3], %s35
      %s37 = sshll.u32 [#allocation2], 4
      %s38 = int_to_ptr.vmem [resolvable:$true] %s37
      %43 = dma.hbm_to_vmem [thread:$0]  %s0, 512, %s38, [#allocation3], 128, 128, 8
    $region5: #{tpu_custom_call.1} parent=1 // pred_fallthru
      _
    // Predicated region
    $region6: #{tpu_custom_call.1} parent=1 // pred_check
      _
    $region7: #{tpu_custom_call.1} parent=1 // pred_check_branch
      %45 = sbr.rel (0) target = $region9
    $region8: #{tpu_custom_call.1} parent=1 // pred_region
      %s47 = ssub.s32 1024, 1024
      %48 = vsyncadd [#allocation6], %s47
      %s49 = sshll.u32 [#allocation5], 4
      %s50 = int_to_ptr.vmem [resolvable:$true] %s49
      %55 = dma.hbm_to_vmem [thread:$0]  %s1, 1024, %s50, [#allocation6], 64, 64, 4
    $region9: #{tpu_custom_call.1} parent=1 // pred_fallthru
      _
    // Predicated region
    $region10: #{tpu_custom_call.1} parent=1 // pred_check
      _
    $region11: #{tpu_custom_call.1} parent=1 // pred_check_branch
      %57 = sbr.rel (0) target = $region13
    $region12: #{tpu_custom_call.1} parent=1 // pred_region
      %s59 = ssub.s32 16, 16
      %60 = vsyncadd [#allocation6], %s59
      %s62 = sshll.u32 [#allocation7], 4
      %s63 = int_to_ptr.vmem [resolvable:$true] %s62
      %65 = dma.hbm_to_vmem [thread:$0]  %s2, 16, %s63, [#allocation6]
    $region13: #{tpu_custom_call.1} parent=1 // pred_fallthru
      _
    // Predicated region
    $region14: #{tpu_custom_call.1} parent=1 // pred_check
      _
    $region15: #{tpu_custom_call.1} parent=1 // pred_check_branch
      %67 = sbr.rel (0) target = $region17
    $region16: #{tpu_custom_call.1} parent=1 // pred_region
      %s69 = ssub.s32 1024, 1024
      %70 = vsyncadd [#allocation9], %s69
      %s71 = sshll.u32 [#allocation8], 4
      %s72 = int_to_ptr.vmem [resolvable:$true] %s71
      %77 = dma.hbm_to_vmem [thread:$0]  %s3, 1024, %s72, [#allocation9], 64, 64, 4
    $region17: #{tpu_custom_call.1} parent=1 // pred_fallthru
      _
    // Predicated region
    $region18: #{tpu_custom_call.1} parent=1 // pred_check
      _
    $region19: #{tpu_custom_call.1} parent=1 // pred_check_branch
      %79 = sbr.rel (0) target = $region21
    $region20: #{tpu_custom_call.1} parent=1 // pred_region
      %s81 = ssub.s32 16, 16
      %82 = vsyncadd [#allocation9], %s81
      %s84 = sshll.u32 [#allocation10], 4
      %s85 = int_to_ptr.vmem [resolvable:$true] %s84
      %87 = dma.hbm_to_vmem [thread:$0]  %s4, 16, %s85, [#allocation9]
    $region21: #{tpu_custom_call.1} parent=1 // pred_fallthru
      _
    // Predicated region
    $region22: #{tpu_custom_call.1} parent=1 // pred_check
      _
    $region23: #{tpu_custom_call.1} parent=1 // pred_check_branch
      %89 = sbr.rel (0) target = $region25
    $region24: #{tpu_custom_call.1} parent=1 // pred_region
      %s91 = ssub.s32 1024, 1024
      %92 = vsyncadd [#allocation12], %s91
      %s93 = sshll.u32 [#allocation11], 4
      %s94 = int_to_ptr.vmem [resolvable:$true] %s93
      %99 = dma.hbm_to_vmem [thread:$0]  %s5, 1024, %s94, [#allocation12], 64, 64, 4
    $region25: #{tpu_custom_call.1} parent=1 // pred_fallthru
      _
    // Predicated region
    $region26: #{tpu_custom_call.1} parent=1 // pred_check
      _
    $region27: #{tpu_custom_call.1} parent=1 // pred_check_branch
      %101 = sbr.rel (0) target = $region29
    $region28: #{tpu_custom_call.1} parent=1 // pred_region
      %s103 = ssub.s32 16, 16
      %104 = vsyncadd [#allocation12], %s103
      %s106 = sshll.u32 [#allocation13], 4
      %s107 = int_to_ptr.vmem [resolvable:$true] %s106
      %109 = dma.hbm_to_vmem [thread:$0]  %s6, 16, %s107, [#allocation12]
    $region29: #{tpu_custom_call.1} parent=1 // pred_fallthru
      _
    // Predicated region
    $region30: #{tpu_custom_call.1} parent=1 // pred_check
      _
    $region31: #{tpu_custom_call.1} parent=1 // pred_check_branch
      %111 = sbr.rel (0) target = $region33
    $region32: #{tpu_custom_call.1} parent=1 // pred_region
      %s113 = ssub.s32 1024, 1024
      %114 = vsyncadd [#allocation15], %s113
      %s115 = sshll.u32 [#allocation14], 4
      %s116 = int_to_ptr.vmem [resolvable:$true] %s115
      %121 = dma.hbm_to_vmem [thread:$0]  %s7, 1024, %s116, [#allocation15], 64, 64, 4
    $region33: #{tpu_custom_call.1} parent=1 // pred_fallthru
      _
    // Predicated region
    $region34: #{tpu_custom_call.1} parent=1 // pred_check
      _
    $region35: #{tpu_custom_call.1} parent=1 // pred_check_branch
      %123 = sbr.rel (0) target = $region37
    $region36: #{tpu_custom_call.1} parent=1 // pred_region
      %s125 = ssub.s32 16, 16
      %126 = vsyncadd [#allocation15], %s125
      %s128 = sshll.u32 [#allocation16], 4
      %s129 = int_to_ptr.vmem [resolvable:$true] %s128
      %131 = dma.hbm_to_vmem [thread:$0]  %s8, 16, %s129, [#allocation15]
    $region37: #{tpu_custom_call.1} parent=1 // pred_fallthru
      _
    // Predicated region
    $region38: #{tpu_custom_call.1} parent=1 // pred_check
      _
    $region39: #{tpu_custom_call.1} parent=1 // pred_check_branch
      %133 = sbr.rel (0) target = $region41
    $region40: #{tpu_custom_call.1} parent=1 // pred_region
      %s135 = ssub.s32 16, 16
      %136 = vsyncadd [#allocation18], %s135
      %s138 = sshll.u32 [#allocation17], 4
      %s139 = int_to_ptr.vmem [resolvable:$true] %s138
      %141 = dma.hbm_to_vmem [thread:$0]  %s9, 16, %s139, [#allocation18]
    $region41: #{tpu_custom_call.1} parent=1 // pred_fallthru
      _
    // Predicated region
    $region42: #{tpu_custom_call.1} parent=1 // pred_check
      _
    $region43: #{tpu_custom_call.1} parent=1 // pred_check_branch
      %143 = sbr.rel (0) target = $region45
    $region44: #{tpu_custom_call.1} parent=1 // pred_region
      %s145 = ssub.s32 16, 16
      %146 = vsyncadd [#allocation18], %s145
      %s148 = sshll.u32 [#allocation19], 4
      %s149 = int_to_ptr.vmem [resolvable:$true] %s148
      %151 = dma.hbm_to_vmem [thread:$0]  %s10, 16, %s149, [#allocation18]
    $region45: #{tpu_custom_call.1} parent=1 // pred_fallthru
      _
    // Predicated region
    $region46: #{tpu_custom_call.1} parent=1 // pred_check
      _
    $region47: #{tpu_custom_call.1} parent=1 // pred_check_branch
      %153 = sbr.rel (0) target = $region49
    $region48: #{tpu_custom_call.1} parent=1 // pred_region
      %s155 = ssub.s32 2048, 2048
      %156 = vsyncadd [#allocation21], %s155
      %s157 = sshll.u32 [#allocation20], 4
      %s158 = int_to_ptr.vmem [resolvable:$true] %s157
      %163 = dma.hbm_to_vmem [thread:$0]  %s11, 2048, %s158, [#allocation21], 128, 128, 8
    $region49: #{tpu_custom_call.1} parent=1 // pred_fallthru
      _
    // Predicated region
    $region50: #{tpu_custom_call.1} parent=1 // pred_check
      _
    $region51: #{tpu_custom_call.1} parent=1 // pred_check_branch
      %165 = sbr.rel (0) target = $region53
    $region52: #{tpu_custom_call.1} parent=1 // pred_region
      %s167 = ssub.s32 32, 32
      %168 = vsyncadd [#allocation21], %s167
      %s170 = sshll.u32 [#allocation22], 4
      %s171 = int_to_ptr.vmem [resolvable:$true] %s170
      %173 = dma.hbm_to_vmem [thread:$0]  %s12, 32, %s171, [#allocation21]
    $region53: #{tpu_custom_call.1} parent=1 // pred_fallthru
      _
    // Predicated region
    $region54: #{tpu_custom_call.1} parent=1 // pred_check
      _
    $region55: #{tpu_custom_call.1} parent=1 // pred_check_branch
      %175 = sbr.rel (0) target = $region57
    $region56: #{tpu_custom_call.1} parent=1 // pred_region
      %s177 = ssub.s32 2048, 2048
      %178 = vsyncadd [#allocation24], %s177
      %s179 = sshll.u32 [#allocation23], 4
      %s180 = int_to_ptr.vmem [resolvable:$true] %s179
      %185 = dma.hbm_to_vmem [thread:$0]  %s13, 2048, %s180, [#allocation24], 64, 64, 4
    $region57: #{tpu_custom_call.1} parent=1 // pred_fallthru
      _
    // Predicated region
    $region58: #{tpu_custom_call.1} parent=1 // pred_check
      _
    $region59: #{tpu_custom_call.1} parent=1 // pred_check_branch
      %187 = sbr.rel (0) target = $region61
    $region60: #{tpu_custom_call.1} parent=1 // pred_region
      %s189 = ssub.s32 16, 16
      %190 = vsyncadd [#allocation24], %s189
      %s192 = sshll.u32 [#allocation25], 4
      %s193 = int_to_ptr.vmem [resolvable:$true] %s192
      %195 = dma.hbm_to_vmem [thread:$0]  %s14, 16, %s193, [#allocation24]
    $region61: #{tpu_custom_call.1} parent=1 // pred_fallthru
      _
    // Predicated region
    $region62: #{tpu_custom_call.1} parent=1 // pred_check
      _
    $region63: #{tpu_custom_call.1} parent=1 // pred_check_branch
      %197 = sbr.rel (0) target = $region65
    $region64: #{tpu_custom_call.1} parent=1 // pred_region
      %s199 = ssub.s32 16, 16
      %200 = vsyncadd [#allocation27], %s199
      %s202 = sshll.u32 [#allocation26], 4
      %s203 = int_to_ptr.vmem [resolvable:$true] %s202
      %205 = dma.hbm_to_vmem [thread:$0]  %s15, 16, %s203, [#allocation27]
    $region65: #{tpu_custom_call.1} parent=1 // pred_fallthru
      _
    // Predicated region
    $region66: #{tpu_custom_call.1} parent=1 // pred_check
      _
    $region67: #{tpu_custom_call.1} parent=1 // pred_check_branch
      %207 = sbr.rel (0) target = $region69
    $region68: #{tpu_custom_call.1} parent=1 // pred_region
      %s209 = ssub.s32 16, 16
      %210 = vsyncadd [#allocation27], %s209
      %s212 = sshll.u32 [#allocation28], 4
      %s213 = int_to_ptr.vmem [resolvable:$true] %s212
      %215 = dma.hbm_to_vmem [thread:$0]  %s16, 16, %s213, [#allocation27]
    $region69: #{tpu_custom_call.1} parent=1 // pred_fallthru
      _
    // Predicated region
    $region70: #{tpu_custom_call.1} parent=1 // pred_check
      _
    $region71: #{tpu_custom_call.1} parent=1 // pred_check_branch
      %217 = sbr.rel (0) target = $region73
    $region72: #{tpu_custom_call.1} parent=1 // pred_region
      %218 = dma.done [#allocation3], 512
    $region73: #{tpu_custom_call.1} parent=1 // pred_fallthru
      _
    // Predicated region
    $region74: #{tpu_custom_call.1} parent=1 // pred_check
      _
    $region75: #{tpu_custom_call.1} parent=1 // pred_check_branch
      %220 = sbr.rel (0) target = $region77
    $region76: #{tpu_custom_call.1} parent=1 // pred_region
      %221 = dma.done [#allocation6], 1024
    $region77: #{tpu_custom_call.1} parent=1 // pred_fallthru
      _
    // Predicated region
    $region78: #{tpu_custom_call.1} parent=1 // pred_check
      _
    $region79: #{tpu_custom_call.1} parent=1 // pred_check_branch
      %223 = sbr.rel (0) target = $region81
    $region80: #{tpu_custom_call.1} parent=1 // pred_region
      %224 = dma.done [#allocation6], 16
    $region81: #{tpu_custom_call.1} parent=1 // pred_fallthru
      _
    // Predicated region
    $region82: #{tpu_custom_call.1} parent=1 // pred_check
      _
    $region83: #{tpu_custom_call.1} parent=1 // pred_check_branch
      %226 = sbr.rel (0) target = $region85
    $region84: #{tpu_custom_call.1} parent=1 // pred_region
      %227 = dma.done [#allocation9], 1024
    $region85: #{tpu_custom_call.1} parent=1 // pred_fallthru
      _
    // Predicated region
    $region86: #{tpu_custom_call.1} parent=1 // pred_check
      _
    $region87: #{tpu_custom_call.1} parent=1 // pred_check_branch
      %229 = sbr.rel (0) target = $region89
    $region88: #{tpu_custom_call.1} parent=1 // pred_region
      %230 = dma.done [#allocation9], 16
    $region89: #{tpu_custom_call.1} parent=1 // pred_fallthru
      _
    // Predicated region
    $region90: #{tpu_custom_call.1} parent=1 // pred_check
      _
    $region91: #{tpu_custom_call.1} parent=1 // pred_check_branch
      %232 = sbr.rel (0) target = $region93
    $region92: #{tpu_custom_call.1} parent=1 // pred_region
      %233 = dma.done [#allocation12], 1024
    $region93: #{tpu_custom_call.1} parent=1 // pred_fallthru
      _
    // Predicated region
    $region94: #{tpu_custom_call.1} parent=1 // pred_check
      _
    $region95: #{tpu_custom_call.1} parent=1 // pred_check_branch
      %235 = sbr.rel (0) target = $region97
    $region96: #{tpu_custom_call.1} parent=1 // pred_region
      %236 = dma.done [#allocation12], 16
    $region97: #{tpu_custom_call.1} parent=1 // pred_fallthru
      _
    // Predicated region
    $region98: #{tpu_custom_call.1} parent=1 // pred_check
      _
    $region99: #{tpu_custom_call.1} parent=1 // pred_check_branch
      %238 = sbr.rel (0) target = $region101
    $region100: #{tpu_custom_call.1} parent=1 // pred_region
      %239 = dma.done [#allocation15], 1024
    $region101: #{tpu_custom_call.1} parent=1 // pred_fallthru
      _
    // Predicated region
    $region102: #{tpu_custom_call.1} parent=1 // pred_check
      _
    $region103: #{tpu_custom_call.1} parent=1 // pred_check_branch
      %241 = sbr.rel (0) target = $region105
    $region104: #{tpu_custom_call.1} parent=1 // pred_region
      %242 = dma.done [#allocation15], 16
    $region105: #{tpu_custom_call.1} parent=1 // pred_fallthru
      _
    // Predicated region
    $region106: #{tpu_custom_call.1} parent=1 // pred_check
      _
    $region107: #{tpu_custom_call.1} parent=1 // pred_check_branch
      %244 = sbr.rel (0) target = $region109
    $region108: #{tpu_custom_call.1} parent=1 // pred_region
      %245 = dma.done [#allocation18], 16
    $region109: #{tpu_custom_call.1} parent=1 // pred_fallthru
      _
    // Predicated region
    $region110: #{tpu_custom_call.1} parent=1 // pred_check
      _
    $region111: #{tpu_custom_call.1} parent=1 // pred_check_branch
      %247 = sbr.rel (0) target = $region113
    $region112: #{tpu_custom_call.1} parent=1 // pred_region
      %248 = dma.done [#allocation18], 16
    $region113: #{tpu_custom_call.1} parent=1 // pred_fallthru
      _
    // Predicated region
    $region114: #{tpu_custom_call.1} parent=1 // pred_check
      _
    $region115: #{tpu_custom_call.1} parent=1 // pred_check_branch
      %250 = sbr.rel (0) target = $region117
    $region116: #{tpu_custom_call.1} parent=1 // pred_region
      %251 = dma.done [#allocation21], 2048
    $region117: #{tpu_custom_call.1} parent=1 // pred_fallthru
      _
    // Predicated region
    $region118: #{tpu_custom_call.1} parent=1 // pred_check
      _
    $region119: #{tpu_custom_call.1} parent=1 // pred_check_branch
      %253 = sbr.rel (0) target = $region121
    $region120: #{tpu_custom_call.1} parent=1 // pred_region
      %254 = dma.done [#allocation21], 32
    $region121: #{tpu_custom_call.1} parent=1 // pred_fallthru
      _
    // Predicated region
    $region122: #{tpu_custom_call.1} parent=1 // pred_check
      _
    $region123: #{tpu_custom_call.1} parent=1 // pred_check_branch
      %256 = sbr.rel (0) target = $region125
    $region124: #{tpu_custom_call.1} parent=1 // pred_region
      %257 = dma.done [#allocation24], 2048
    $region125: #{tpu_custom_call.1} parent=1 // pred_fallthru
      _
    // Predicated region
    $region126: #{tpu_custom_call.1} parent=1 // pred_check
      _
    $region127: #{tpu_custom_call.1} parent=1 // pred_check_branch
      %259 = sbr.rel (0) target = $region129
    $region128: #{tpu_custom_call.1} parent=1 // pred_region
      %260 = dma.done [#allocation24], 16
    $region129: #{tpu_custom_call.1} parent=1 // pred_fallthru
      _
    // Predicated region
    $region130: #{tpu_custom_call.1} parent=1 // pred_check
      _
    $region131: #{tpu_custom_call.1} parent=1 // pred_check_branch
      %262 = sbr.rel (0) target = $region133
    $region132: #{tpu_custom_call.1} parent=1 // pred_region
      %263 = dma.done [#allocation27], 16
    $region133: #{tpu_custom_call.1} parent=1 // pred_fallthru
      _
    // Predicated region
    $region134: #{tpu_custom_call.1} parent=1 // pred_check
      _
    $region135: #{tpu_custom_call.1} parent=1 // pred_check_branch
      %265 = sbr.rel (0) target = $region137
    $region136: #{tpu_custom_call.1} parent=1 // pred_region
      %266 = dma.done [#allocation27], 16
    $region137: #{tpu_custom_call.1} parent=1 // pred_fallthru
      _
    %v268 = vld [vmem:[#allocation2] sm:$0xff]
    %v269 = vld [vmem:[#allocation2 + $0x8] sm:$0xff]
    %v270 = vld [vmem:[#allocation2 + $0x10] sm:$0xff]
    %v271 = vld [vmem:[#allocation2 + $0x18] sm:$0xff]
    %v272 = vpack.c.bf16 %v269, %v268
    %v273 = vpack.c.bf16 %v271, %v270
    %v274 = vld [vmem:[#allocation5] sm:$0xf]
    %v275 = vld [vmem:[#allocation5 + $0x4] sm:$0xf]
    %v276 = vld [vmem:[#allocation5 + $0x8] sm:$0xf]
    %v277 = vld [vmem:[#allocation5 + $0xc] sm:$0xf]
    %v278 = vld [vmem:[#allocation5 + $0x10] sm:$0xf]
    %v279 = vld [vmem:[#allocation5 + $0x14] sm:$0xf]
    %v280 = vld [vmem:[#allocation5 + $0x18] sm:$0xf]
    %v281 = vld [vmem:[#allocation5 + $0x1c] sm:$0xf]
    %v282 = vld [vmem:[#allocation5 + $0x20] sm:$0xf]
    %v283 = vld [vmem:[#allocation5 + $0x24] sm:$0xf]
    %v284 = vld [vmem:[#allocation5 + $0x28] sm:$0xf]
    %v285 = vld [vmem:[#allocation5 + $0x2c] sm:$0xf]
    %v286 = vld [vmem:[#allocation5 + $0x30] sm:$0xf]
    %v287 = vld [vmem:[#allocation5 + $0x34] sm:$0xf]
    %v288 = vld [vmem:[#allocation5 + $0x38] sm:$0xf]
    %v289 = vld [vmem:[#allocation5 + $0x3c] sm:$0xf]
    %v290 = vld [vmem:[#allocation7] sm:$0x1]
    %v292 = vlaneseq
    %v293 = vshrl.u32 %v292, 7
    %v294 = vsub.s32 0, %v293
    %v295 = vrot.slane %v290, %v294
    %v313 = vunpack.c.l.b16 %v274
    %v314 = vunpack.c.l.b16 %v275
    %v315 = vunpack.c.l.b16 %v276
    %v316 = vunpack.c.l.b16 %v277
    %v317 = vunpack.c.l.b16 %v278
    %v318 = vunpack.c.l.b16 %v279
    %v319 = vunpack.c.l.b16 %v280
    %v320 = vunpack.c.l.b16 %v281
    %v321 = vunpack.c.l.b16 %v282
    %v322 = vunpack.c.l.b16 %v283
    %v323 = vunpack.c.l.b16 %v284
    %v324 = vunpack.c.l.b16 %v285
    %v325 = vunpack.c.l.b16 %v286
    %v326 = vunpack.c.l.b16 %v287
    %v327 = vunpack.c.l.b16 %v288
    %v328 = vunpack.c.l.b16 %v289
    %v329 = vpack.c.b16 %v314, %v313
    %v330 = vpack.c.b16 %v316, %v315
    %v331 = vpack.c.b16 %v318, %v317
    %v332 = vpack.c.b16 %v320, %v319
    %v333 = vpack.c.b16 %v322, %v321
    %v334 = vpack.c.b16 %v324, %v323
    %v335 = vpack.c.b16 %v326, %v325
    %v336 = vpack.c.b16 %v328, %v327
    %345 = vmatprep.subr.bf16.mxu0 0
    %346 = vmatpush1.bf16.msra.mxu0 %v329
    %347 = vmatprep.subr.bf16.mxu0 0
    %348 = vmatpush1.bf16.msra.mxu0 %v330
    %349 = vmatprep.subr.bf16.mxu0 0
    %350 = vmatpush1.bf16.msra.mxu0 %v331
    %351 = vmatprep.subr.bf16.mxu0 0
    %352 = vmatpush1.bf16.msra.mxu0 %v332
    %353 = vmatprep.subr.bf16.mxu0 0
    %354 = vmatpush1.bf16.msra.mxu0 %v333
    %355 = vmatprep.subr.bf16.mxu0 0
    %356 = vmatpush1.bf16.msra.mxu0 %v334
    %357 = vmatprep.subr.bf16.mxu0 0
    %358 = vmatpush1.bf16.msra.mxu0 %v335
    %359 = vmatprep.subr.bf16.mxu0 0
    %360 = vmatpush1.bf16.msra.mxu0 %v336
    %361 = vmatprep.subr.bf16.mxu0 0
    %362 = vmatpush1.bf16.msra.mxu0 0
    %363 = vmatprep.subr.bf16.mxu0 0
    %364 = vmatpush1.bf16.msra.mxu0 0
    %365 = vmatprep.subr.bf16.mxu0 0
    %366 = vmatpush1.bf16.msra.mxu0 0
    %367 = vmatprep.subr.bf16.mxu0 0
    %368 = vmatpush1.bf16.msra.mxu0 0
    %369 = vmatprep.subr.bf16.mxu0 0
    %370 = vmatpush1.bf16.msra.mxu0 0
    %371 = vmatprep.subr.bf16.mxu0 0
    %372 = vmatpush1.bf16.msra.mxu0 0
    %373 = vmatprep.subr.bf16.mxu0 0
    %374 = vmatpush1.bf16.msra.mxu0 0
    %375 = vmatprep.subr.bf16.mxu0 0
    %376 = vmatpush1.bf16.msra.mxu0 0
    %377 = vmatprep.mubr.bf16.mxu0 0
    %378 = vmatmul.mubr.bf16.gmra.mrb[0].mxu0 %v272
    %v379 = vpop.f32.mrb[0].mxu0
    %v380 = vadd.f32 %v295, %v379
    %v381 = vpop.f32.mrb[0].mxu0
    %v382 = vpop.f32.mrb[0].mxu0
    %v383 = vadd.f32 %v295, %v382
    %v384 = vpop.f32.mrb[0].mxu0
    %385 = vmatprep.mubr.bf16.mxu0 0
    %386 = vmatmul.mubr.bf16.gmra.mrb[0].mxu0 %v273
    %v387 = vpop.f32.mrb[0].mxu0
    %v388 = vadd.f32 %v295, %v387
    %v389 = vpop.f32.mrb[0].mxu0
    %v390 = vpop.f32.mrb[0].mxu0
    %v391 = vadd.f32 %v295, %v390
    %v392 = vpop.f32.mrb[0].mxu0
    %393 = vdwg.mxu0
    %v394 = vld [vmem:[#allocation8] sm:$0xf]
    %v395 = vld [vmem:[#allocation8 + $0x4] sm:$0xf]
    %v396 = vld [vmem:[#allocation8 + $0x8] sm:$0xf]
    %v397 = vld [vmem:[#allocation8 + $0xc] sm:$0xf]
    %v398 = vld [vmem:[#allocation8 + $0x10] sm:$0xf]
    %v399 = vld [vmem:[#allocation8 + $0x14] sm:$0xf]
    %v400 = vld [vmem:[#allocation8 + $0x18] sm:$0xf]
    %v401 = vld [vmem:[#allocation8 + $0x1c] sm:$0xf]
    %v402 = vld [vmem:[#allocation8 + $0x20] sm:$0xf]
    %v403 = vld [vmem:[#allocation8 + $0x24] sm:$0xf]
    %v404 = vld [vmem:[#allocation8 + $0x28] sm:$0xf]
    %v405 = vld [vmem:[#allocation8 + $0x2c] sm:$0xf]
    %v406 = vld [vmem:[#allocation8 + $0x30] sm:$0xf]
    %v407 = vld [vmem:[#allocation8 + $0x34] sm:$0xf]
    %v408 = vld [vmem:[#allocation8 + $0x38] sm:$0xf]
    %v409 = vld [vmem:[#allocation8 + $0x3c] sm:$0xf]
    %v410 = vld [vmem:[#allocation10] sm:$0x1]
    %v412 = vlaneseq
    %v413 = vshrl.u32 %v412, 7
    %v414 = vsub.s32 0, %v413
    %v415 = vrot.slane %v410, %v414
    %v433 = vunpack.c.l.b16 %v394
    %v434 = vunpack.c.l.b16 %v395
    %v435 = vunpack.c.l.b16 %v396
    %v436 = vunpack.c.l.b16 %v397
    %v437 = vunpack.c.l.b16 %v398
    %v438 = vunpack.c.l.b16 %v399
    %v439 = vunpack.c.l.b16 %v400
    %v440 = vunpack.c.l.b16 %v401
    %v441 = vunpack.c.l.b16 %v402
    %v442 = vunpack.c.l.b16 %v403
    %v443 = vunpack.c.l.b16 %v404
    %v444 = vunpack.c.l.b16 %v405
    %v445 = vunpack.c.l.b16 %v406
    %v446 = vunpack.c.l.b16 %v407
    %v447 = vunpack.c.l.b16 %v408
    %v448 = vunpack.c.l.b16 %v409
    %v449 = vpack.c.b16 %v434, %v433
    %v450 = vpack.c.b16 %v436, %v435
    %v451 = vpack.c.b16 %v438, %v437
    %v452 = vpack.c.b16 %v440, %v439
    %v453 = vpack.c.b16 %v442, %v441
    %v454 = vpack.c.b16 %v444, %v443
    %v455 = vpack.c.b16 %v446, %v445
    %v456 = vpack.c.b16 %v448, %v447
    %465 = vmatprep.subr.bf16.mxu0 0
    %466 = vmatpush1.bf16.msra.mxu0 %v449
    %467 = vmatprep.subr.bf16.mxu0 0
    %468 = vmatpush1.bf16.msra.mxu0 %v450
    %469 = vmatprep.subr.bf16.mxu0 0
    %470 = vmatpush1.bf16.msra.mxu0 %v451
    %471 = vmatprep.subr.bf16.mxu0 0
    %472 = vmatpush1.bf16.msra.mxu0 %v452
    %473 = vmatprep.subr.bf16.mxu0 0
    %474 = vmatpush1.bf16.msra.mxu0 %v453
    %475 = vmatprep.subr.bf16.mxu0 0
    %476 = vmatpush1.bf16.msra.mxu0 %v454
    %477 = vmatprep.subr.bf16.mxu0 0
    %478 = vmatpush1.bf16.msra.mxu0 %v455
    %479 = vmatprep.subr.bf16.mxu0 0
    %480 = vmatpush1.bf16.msra.mxu0 %v456
    %481 = vmatprep.subr.bf16.mxu0 0
    %482 = vmatpush1.bf16.msra.mxu0 0
    %483 = vmatprep.subr.bf16.mxu0 0
    %484 = vmatpush1.bf16.msra.mxu0 0
    %485 = vmatprep.subr.bf16.mxu0 0
    %486 = vmatpush1.bf16.msra.mxu0 0
    %487 = vmatprep.subr.bf16.mxu0 0
    %488 = vmatpush1.bf16.msra.mxu0 0
    %489 = vmatprep.subr.bf16.mxu0 0
    %490 = vmatpush1.bf16.msra.mxu0 0
    %491 = vmatprep.subr.bf16.mxu0 0
    %492 = vmatpush1.bf16.msra.mxu0 0
    %493 = vmatprep.subr.bf16.mxu0 0
    %494 = vmatpush1.bf16.msra.mxu0 0
    %495 = vmatprep.subr.bf16.mxu0 0
    %496 = vmatpush1.bf16.msra.mxu0 0
    %497 = vmatprep.mubr.bf16.mxu0 0
    %498 = vmatmul.mubr.bf16.gmra.mrb[0].mxu0 %v272
    %v499 = vpop.f32.mrb[0].mxu0
    %v500 = vadd.f32 %v415, %v499
    %v501 = vpop.f32.mrb[0].mxu0
    %v502 = vpop.f32.mrb[0].mxu0
    %v503 = vadd.f32 %v415, %v502
    %v504 = vpop.f32.mrb[0].mxu0
    %505 = vmatprep.mubr.bf16.mxu0 0
    %506 = vmatmul.mubr.bf16.gmra.mrb[0].mxu0 %v273
    %v507 = vpop.f32.mrb[0].mxu0
    %v508 = vadd.f32 %v415, %v507
    %v509 = vpop.f32.mrb[0].mxu0
    %v510 = vpop.f32.mrb[0].mxu0
    %v511 = vadd.f32 %v415, %v510
    %v512 = vpop.f32.mrb[0].mxu0
    %513 = vdwg.mxu0
    %v514 = vld [vmem:[#allocation11] sm:$0xf]
    %v515 = vld [vmem:[#allocation11 + $0x4] sm:$0xf]
    %v516 = vld [vmem:[#allocation11 + $0x8] sm:$0xf]
    %v517 = vld [vmem:[#allocation11 + $0xc] sm:$0xf]
    %v518 = vld [vmem:[#allocation11 + $0x10] sm:$0xf]
    %v519 = vld [vmem:[#allocation11 + $0x14] sm:$0xf]
    %v520 = vld [vmem:[#allocation11 + $0x18] sm:$0xf]
    %v521 = vld [vmem:[#allocation11 + $0x1c] sm:$0xf]
    %v522 = vld [vmem:[#allocation11 + $0x20] sm:$0xf]
    %v523 = vld [vmem:[#allocation11 + $0x24] sm:$0xf]
    %v524 = vld [vmem:[#allocation11 + $0x28] sm:$0xf]
    %v525 = vld [vmem:[#allocation11 + $0x2c] sm:$0xf]
    %v526 = vld [vmem:[#allocation11 + $0x30] sm:$0xf]
    %v527 = vld [vmem:[#allocation11 + $0x34] sm:$0xf]
    %v528 = vld [vmem:[#allocation11 + $0x38] sm:$0xf]
    %v529 = vld [vmem:[#allocation11 + $0x3c] sm:$0xf]
    %v530 = vld [vmem:[#allocation13] sm:$0x1]
    %v532 = vlaneseq
    %v533 = vshrl.u32 %v532, 7
    %v534 = vsub.s32 0, %v533
    %v535 = vrot.slane %v530, %v534
    %v553 = vunpack.c.l.b16 %v514
    %v554 = vunpack.c.l.b16 %v515
    %v555 = vunpack.c.l.b16 %v516
    %v556 = vunpack.c.l.b16 %v517
    %v557 = vunpack.c.l.b16 %v518
    %v558 = vunpack.c.l.b16 %v519
    %v559 = vunpack.c.l.b16 %v520
    %v560 = vunpack.c.l.b16 %v521
    %v561 = vunpack.c.l.b16 %v522
    %v562 = vunpack.c.l.b16 %v523
    %v563 = vunpack.c.l.b16 %v524
    %v564 = vunpack.c.l.b16 %v525
    %v565 = vunpack.c.l.b16 %v526
    %v566 = vunpack.c.l.b16 %v527
    %v567 = vunpack.c.l.b16 %v528
    %v568 = vunpack.c.l.b16 %v529
    %v569 = vpack.c.b16 %v554, %v553
    %v570 = vpack.c.b16 %v556, %v555
    %v571 = vpack.c.b16 %v558, %v557
    %v572 = vpack.c.b16 %v560, %v559
    %v573 = vpack.c.b16 %v562, %v561
    %v574 = vpack.c.b16 %v564, %v563
    %v575 = vpack.c.b16 %v566, %v565
    %v576 = vpack.c.b16 %v568, %v567
    %585 = vmatprep.subr.bf16.mxu0 0
    %586 = vmatpush1.bf16.msra.mxu0 %v569
    %587 = vmatprep.subr.bf16.mxu0 0
    %588 = vmatpush1.bf16.msra.mxu0 %v570
    %589 = vmatprep.subr.bf16.mxu0 0
    %590 = vmatpush1.bf16.msra.mxu0 %v571
    %591 = vmatprep.subr.bf16.mxu0 0
    %592 = vmatpush1.bf16.msra.mxu0 %v572
    %593 = vmatprep.subr.bf16.mxu0 0
    %594 = vmatpush1.bf16.msra.mxu0 %v573
    %595 = vmatprep.subr.bf16.mxu0 0
    %596 = vmatpush1.bf16.msra.mxu0 %v574
    %597 = vmatprep.subr.bf16.mxu0 0
    %598 = vmatpush1.bf16.msra.mxu0 %v575
    %599 = vmatprep.subr.bf16.mxu0 0
    %600 = vmatpush1.bf16.msra.mxu0 %v576
    %601 = vmatprep.subr.bf16.mxu0 0
    %602 = vmatpush1.bf16.msra.mxu0 0
    %603 = vmatprep.subr.bf16.mxu0 0
    %604 = vmatpush1.bf16.msra.mxu0 0
    %605 = vmatprep.subr.bf16.mxu0 0
    %606 = vmatpush1.bf16.msra.mxu0 0
    %607 = vmatprep.subr.bf16.mxu0 0
    %608 = vmatpush1.bf16.msra.mxu0 0
    %609 = vmatprep.subr.bf16.mxu0 0
    %610 = vmatpush1.bf16.msra.mxu0 0
    %611 = vmatprep.subr.bf16.mxu0 0
    %612 = vmatpush1.bf16.msra.mxu0 0
    %613 = vmatprep.subr.bf16.mxu0 0
    %614 = vmatpush1.bf16.msra.mxu0 0
    %615 = vmatprep.subr.bf16.mxu0 0
    %616 = vmatpush1.bf16.msra.mxu0 0
    %617 = vmatprep.mubr.bf16.mxu0 0
    %618 = vmatmul.mubr.bf16.gmra.mrb[0].mxu0 %v272
    %v619 = vpop.f32.mrb[0].mxu0
    %v620 = vadd.f32 %v535, %v619
    %v621 = vpop.f32.mrb[0].mxu0
    %v622 = vpop.f32.mrb[0].mxu0
    %v623 = vadd.f32 %v535, %v622
    %v624 = vpop.f32.mrb[0].mxu0
    %625 = vmatprep.mubr.bf16.mxu0 0
    %626 = vmatmul.mubr.bf16.gmra.mrb[0].mxu0 %v273
    %v627 = vpop.f32.mrb[0].mxu0
    %v628 = vadd.f32 %v535, %v627
    %v629 = vpop.f32.mrb[0].mxu0
    %v630 = vpop.f32.mrb[0].mxu0
    %v631 = vadd.f32 %v535, %v630
    %v632 = vpop.f32.mrb[0].mxu0
    %633 = vdwg.mxu0
    %636 = vrot.lane.b32.xlu0 %v380, 96
    %v637 = vpop.permute.xlu0 %636
    %638 = vrot.lane.b32.xlu0 %v383, 96
    %v639 = vpop.permute.xlu0 %638
    %642 = vrot.lane.b32.xlu0 %v380, 64
    %v643 = vpop.permute.xlu0 %642
    %644 = vrot.lane.b32.xlu0 %v383, 64
    %v645 = vpop.permute.xlu0 %644
    %648 = vrot.lane.b32.xlu0 %v380, 32
    %v649 = vpop.permute.xlu0 %648
    %650 = vrot.lane.b32.xlu0 %v383, 32
    %v651 = vpop.permute.xlu0 %650
    %v654 = vcombine.low %v380, %v643
    %v655 = vcombine.high %v380, %v643
    %v657 = vunpack.c.l.s4 1983009808
    %v658 = vunpack.c.0.s8 %v657
    %v659 = vlaneseq
    %v660 = vshrl.u32 %v659, 7
    %v661 = vsub.s32 %v658, %v660
    %v662 = vrot.slane %v654, %v661
    %v664 = vunpack.c.l.s4 1983009808
    %v665 = vunpack.c.0.s8 %v664
    %v666 = vlaneseq
    %v667 = vshrl.u32 %v666, 7
    %v668 = vsub.s32 %v665, %v667
    %v669 = vrot.slane %v655, %v668
    %v670 = vcombine.low %v637, %v649
    %v671 = vcombine.high %v637, %v649
    %v673 = vunpack.c.l.s4 1983009808
    %v674 = vunpack.c.0.s8 %v673
    %v675 = vlaneseq
    %v676 = vshrl.u32 %v675, 7
    %v677 = vsub.s32 %v674, %v676
    %v678 = vrot.slane %v670, %v677
    %v680 = vunpack.c.l.s4 1983009808
    %v681 = vunpack.c.0.s8 %v680
    %v682 = vlaneseq
    %v683 = vshrl.u32 %v682, 7
    %v684 = vsub.s32 %v681, %v683
    %v685 = vrot.slane %v671, %v684
    %v686 = vcombine.low %v662, %v678
    %v687 = vcombine.high %v662, %v678
    %v689 = vunpack.c.l.s4 1934713408
    %v690 = vunpack.c.0.s8 %v689
    %v691 = vlaneseq
    %v692 = vshrl.u32 %v691, 7
    %v693 = vsub.s32 %v690, %v692
    %v694 = vrot.slane %v686, %v693
    %v696 = vunpack.c.l.s4 1934713408
    %v697 = vunpack.c.0.s8 %v696
    %v698 = vlaneseq
    %v699 = vshrl.u32 %v698, 7
    %v700 = vsub.s32 %v697, %v699
    %v701 = vrot.slane %v687, %v700
    %v702 = vcombine.low %v669, %v685
    %v703 = vcombine.high %v669, %v685
    %v705 = vunpack.c.l.s4 1934713408
    %v706 = vunpack.c.0.s8 %v705
    %v707 = vlaneseq
    %v708 = vshrl.u32 %v707, 7
    %v709 = vsub.s32 %v706, %v708
    %v710 = vrot.slane %v702, %v709
    %v712 = vunpack.c.l.s4 1934713408
    %v713 = vunpack.c.0.s8 %v712
    %v714 = vlaneseq
    %v715 = vshrl.u32 %v714, 7
    %v716 = vsub.s32 %v713, %v715
    %v717 = vrot.slane %v703, %v716
    %v718 = vcombine.high %v694, 0.0
    %v719 = vcombine.high %v701, 0.0
    %v720 = vcombine.high %v710, 0.0
    %v721 = vcombine.high %v717, 0.0
    %v722 = vcombine.low %v383, %v645
    %v723 = vcombine.high %v383, %v645
    %v725 = vunpack.c.l.s4 1983009808
    %v726 = vunpack.c.0.s8 %v725
    %v727 = vlaneseq
    %v728 = vshrl.u32 %v727, 7
    %v729 = vsub.s32 %v726, %v728
    %v730 = vrot.slane %v722, %v729
    %v732 = vunpack.c.l.s4 1983009808
    %v733 = vunpack.c.0.s8 %v732
    %v734 = vlaneseq
    %v735 = vshrl.u32 %v734, 7
    %v736 = vsub.s32 %v733, %v735
    %v737 = vrot.slane %v723, %v736
    %v738 = vcombine.low %v639, %v651
    %v739 = vcombine.high %v639, %v651
    %v741 = vunpack.c.l.s4 1983009808
    %v742 = vunpack.c.0.s8 %v741
    %v743 = vlaneseq
    %v744 = vshrl.u32 %v743, 7
    %v745 = vsub.s32 %v742, %v744
    %v746 = vrot.slane %v738, %v745
    %v748 = vunpack.c.l.s4 1983009808
    %v749 = vunpack.c.0.s8 %v748
    %v750 = vlaneseq
    %v751 = vshrl.u32 %v750, 7
    %v752 = vsub.s32 %v749, %v751
    %v753 = vrot.slane %v739, %v752
    %v754 = vcombine.low %v730, %v746
    %v755 = vcombine.high %v730, %v746
    %v757 = vunpack.c.l.s4 1934713408
    %v758 = vunpack.c.0.s8 %v757
    %v759 = vlaneseq
    %v760 = vshrl.u32 %v759, 7
    %v761 = vsub.s32 %v758, %v760
    %v762 = vrot.slane %v754, %v761
    %v764 = vunpack.c.l.s4 1934713408
    %v765 = vunpack.c.0.s8 %v764
    %v766 = vlaneseq
    %v767 = vshrl.u32 %v766, 7
    %v768 = vsub.s32 %v765, %v767
    %v769 = vrot.slane %v755, %v768
    %v770 = vcombine.low %v737, %v753
    %v771 = vcombine.high %v737, %v753
    %v773 = vunpack.c.l.s4 1934713408
    %v774 = vunpack.c.0.s8 %v773
    %v775 = vlaneseq
    %v776 = vshrl.u32 %v775, 7
    %v777 = vsub.s32 %v774, %v776
    %v778 = vrot.slane %v770, %v777
    %v780 = vunpack.c.l.s4 1934713408
    %v781 = vunpack.c.0.s8 %v780
    %v782 = vlaneseq
    %v783 = vshrl.u32 %v782, 7
    %v784 = vsub.s32 %v781, %v783
    %v785 = vrot.slane %v771, %v784
    %v786 = vcombine.high %v762, 0.0
    %v787 = vcombine.high %v769, 0.0
    %v788 = vcombine.high %v778, 0.0
    %v789 = vcombine.high %v785, 0.0
    %v790 = vcombine.low %v694, %v701
    %v792 = vunpack.c.l.s4 1983009808
    %v793 = vunpack.c.0.s8 %v792
    %v794 = vlaneseq
    %v795 = vshrl.u32 %v794, 7
    %v796 = vsub.s32 %v793, %v795
    %v797 = vrot.slane %v790, %v796
    %v798 = vcombine.low %v718, %v719
    %v800 = vunpack.c.l.s4 1983009808
    %v801 = vunpack.c.0.s8 %v800
    %v802 = vlaneseq
    %v803 = vshrl.u32 %v802, 7
    %v804 = vsub.s32 %v801, %v803
    %v805 = vrot.slane %v798, %v804
    %v806 = vcombine.low %v710, %v717
    %v808 = vunpack.c.l.s4 1983009808
    %v809 = vunpack.c.0.s8 %v808
    %v810 = vlaneseq
    %v811 = vshrl.u32 %v810, 7
    %v812 = vsub.s32 %v809, %v811
    %v813 = vrot.slane %v806, %v812
    %v814 = vcombine.low %v720, %v721
    %v816 = vunpack.c.l.s4 1983009808
    %v817 = vunpack.c.0.s8 %v816
    %v818 = vlaneseq
    %v819 = vshrl.u32 %v818, 7
    %v820 = vsub.s32 %v817, %v819
    %v821 = vrot.slane %v814, %v820
    %v822 = vcombine.low %v797, %v805
    %v823 = vcombine.high %v797, %v805
    %v825 = vunpack.c.l.s4 1934713408
    %v826 = vunpack.c.0.s8 %v825
    %v827 = vlaneseq
    %v828 = vshrl.u32 %v827, 7
    %v829 = vsub.s32 %v826, %v828
    %v830 = vrot.slane %v822, %v829
    %v832 = vunpack.c.l.s4 1934713408
    %v833 = vunpack.c.0.s8 %v832
    %v834 = vlaneseq
    %v835 = vshrl.u32 %v834, 7
    %v836 = vsub.s32 %v833, %v835
    %v837 = vrot.slane %v823, %v836
    %v838 = vcombine.low %v813, %v821
    %v839 = vcombine.high %v813, %v821
    %v841 = vunpack.c.l.s4 1934713408
    %v842 = vunpack.c.0.s8 %v841
    %v843 = vlaneseq
    %v844 = vshrl.u32 %v843, 7
    %v845 = vsub.s32 %v842, %v844
    %v846 = vrot.slane %v838, %v845
    %v848 = vunpack.c.l.s4 1934713408
    %v849 = vunpack.c.0.s8 %v848
    %v850 = vlaneseq
    %v851 = vshrl.u32 %v850, 7
    %v852 = vsub.s32 %v849, %v851
    %v853 = vrot.slane %v839, %v852
    %v854 = vcombine.low %v830, %v846
    %v855 = vcombine.high %v830, %v846
    %v856 = vcombine.low %v837, %v853
    %v857 = vcombine.high %v837, %v853
    %v858 = vcombine.low %v762, %v769
    %v860 = vunpack.c.l.s4 1983009808
    %v861 = vunpack.c.0.s8 %v860
    %v862 = vlaneseq
    %v863 = vshrl.u32 %v862, 7
    %v864 = vsub.s32 %v861, %v863
    %v865 = vrot.slane %v858, %v864
    %v866 = vcombine.low %v786, %v787
    %v868 = vunpack.c.l.s4 1983009808
    %v869 = vunpack.c.0.s8 %v868
    %v870 = vlaneseq
    %v871 = vshrl.u32 %v870, 7
    %v872 = vsub.s32 %v869, %v871
    %v873 = vrot.slane %v866, %v872
    %v874 = vcombine.low %v778, %v785
    %v876 = vunpack.c.l.s4 1983009808
    %v877 = vunpack.c.0.s8 %v876
    %v878 = vlaneseq
    %v879 = vshrl.u32 %v878, 7
    %v880 = vsub.s32 %v877, %v879
    %v881 = vrot.slane %v874, %v880
    %v882 = vcombine.low %v788, %v789
    %v884 = vunpack.c.l.s4 1983009808
    %v885 = vunpack.c.0.s8 %v884
    %v886 = vlaneseq
    %v887 = vshrl.u32 %v886, 7
    %v888 = vsub.s32 %v885, %v887
    %v889 = vrot.slane %v882, %v888
    %v890 = vcombine.low %v865, %v873
    %v891 = vcombine.high %v865, %v873
    %v893 = vunpack.c.l.s4 1934713408
    %v894 = vunpack.c.0.s8 %v893
    %v895 = vlaneseq
    %v896 = vshrl.u32 %v895, 7
    %v897 = vsub.s32 %v894, %v896
    %v898 = vrot.slane %v890, %v897
    %v900 = vunpack.c.l.s4 1934713408
    %v901 = vunpack.c.0.s8 %v900
    %v902 = vlaneseq
    %v903 = vshrl.u32 %v902, 7
    %v904 = vsub.s32 %v901, %v903
    %v905 = vrot.slane %v891, %v904
    %v906 = vcombine.low %v881, %v889
    %v907 = vcombine.high %v881, %v889
    %v909 = vunpack.c.l.s4 1934713408
    %v910 = vunpack.c.0.s8 %v909
    %v911 = vlaneseq
    %v912 = vshrl.u32 %v911, 7
    %v913 = vsub.s32 %v910, %v912
    %v914 = vrot.slane %v906, %v913
    %v916 = vunpack.c.l.s4 1934713408
    %v917 = vunpack.c.0.s8 %v916
    %v918 = vlaneseq
    %v919 = vshrl.u32 %v918, 7
    %v920 = vsub.s32 %v917, %v919
    %v921 = vrot.slane %v907, %v920
    %v922 = vcombine.low %v898, %v914
    %v923 = vcombine.high %v898, %v914
    %v924 = vcombine.low %v905, %v921
    %v925 = vcombine.high %v905, %v921
    %v926 = vpack.c.bf16 %v922, %v854
    %v927 = vpack.c.bf16 %v923, %v855
    %v928 = vpack.c.bf16 %v924, %v856
    %v929 = vpack.c.bf16 %v925, %v857
    %932 = vrot.lane.b32.xlu0 %v500, 96
    %v933 = vpop.permute.xlu0 %932
    %934 = vrot.lane.b32.xlu0 %v503, 96
    %v935 = vpop.permute.xlu0 %934
    %938 = vrot.lane.b32.xlu0 %v500, 64
    %v939 = vpop.permute.xlu0 %938
    %940 = vrot.lane.b32.xlu0 %v503, 64
    %v941 = vpop.permute.xlu0 %940
    %944 = vrot.lane.b32.xlu0 %v500, 32
    %v945 = vpop.permute.xlu0 %944
    %946 = vrot.lane.b32.xlu0 %v503, 32
    %v947 = vpop.permute.xlu0 %946
    %v950 = vcombine.low %v500, %v939
    %v951 = vcombine.high %v500, %v939
    %v953 = vunpack.c.l.s4 1983009808
    %v954 = vunpack.c.0.s8 %v953
    %v955 = vlaneseq
    %v956 = vshrl.u32 %v955, 7
    %v957 = vsub.s32 %v954, %v956
    %v958 = vrot.slane %v950, %v957
    %v960 = vunpack.c.l.s4 1983009808
    %v961 = vunpack.c.0.s8 %v960
    %v962 = vlaneseq
    %v963 = vshrl.u32 %v962, 7
    %v964 = vsub.s32 %v961, %v963
    %v965 = vrot.slane %v951, %v964
    %v966 = vcombine.low %v933, %v945
    %v967 = vcombine.high %v933, %v945
    %v969 = vunpack.c.l.s4 1983009808
    %v970 = vunpack.c.0.s8 %v969
    %v971 = vlaneseq
    %v972 = vshrl.u32 %v971, 7
    %v973 = vsub.s32 %v970, %v972
    %v974 = vrot.slane %v966, %v973
    %v976 = vunpack.c.l.s4 1983009808
    %v977 = vunpack.c.0.s8 %v976
    %v978 = vlaneseq
    %v979 = vshrl.u32 %v978, 7
    %v980 = vsub.s32 %v977, %v979
    %v981 = vrot.slane %v967, %v980
    %v982 = vcombine.low %v958, %v974
    %v983 = vcombine.high %v958, %v974
    %v985 = vunpack.c.l.s4 1934713408
    %v986 = vunpack.c.0.s8 %v985
    %v987 = vlaneseq
    %v988 = vshrl.u32 %v987, 7
    %v989 = vsub.s32 %v986, %v988
    %v990 = vrot.slane %v982, %v989
    %v992 = vunpack.c.l.s4 1934713408
    %v993 = vunpack.c.0.s8 %v992
    %v994 = vlaneseq
    %v995 = vshrl.u32 %v994, 7
    %v996 = vsub.s32 %v993, %v995
    %v997 = vrot.slane %v983, %v996
    %v998 = vcombine.low %v965, %v981
    %v999 = vcombine.high %v965, %v981
    %v1001 = vunpack.c.l.s4 1934713408
    %v1002 = vunpack.c.0.s8 %v1001
    %v1003 = vlaneseq
    %v1004 = vshrl.u32 %v1003, 7
    %v1005 = vsub.s32 %v1002, %v1004
    %v1006 = vrot.slane %v998, %v1005
    %v1008 = vunpack.c.l.s4 1934713408
    %v1009 = vunpack.c.0.s8 %v1008
    %v1010 = vlaneseq
    %v1011 = vshrl.u32 %v1010, 7
    %v1012 = vsub.s32 %v1009, %v1011
    %v1013 = vrot.slane %v999, %v1012
    %v1014 = vcombine.high %v990, 0.0
    %v1015 = vcombine.high %v997, 0.0
    %v1016 = vcombine.high %v1006, 0.0
    %v1017 = vcombine.high %v1013, 0.0
    %v1018 = vcombine.low %v503, %v941
    %v1019 = vcombine.high %v503, %v941
    %v1021 = vunpack.c.l.s4 1983009808
    %v1022 = vunpack.c.0.s8 %v1021
    %v1023 = vlaneseq
    %v1024 = vshrl.u32 %v1023, 7
    %v1025 = vsub.s32 %v1022, %v1024
    %v1026 = vrot.slane %v1018, %v1025
    %v1028 = vunpack.c.l.s4 1983009808
    %v1029 = vunpack.c.0.s8 %v1028
    %v1030 = vlaneseq
    %v1031 = vshrl.u32 %v1030, 7
    %v1032 = vsub.s32 %v1029, %v1031
    %v1033 = vrot.slane %v1019, %v1032
    %v1034 = vcombine.low %v935, %v947
    %v1035 = vcombine.high %v935, %v947
    %v1037 = vunpack.c.l.s4 1983009808
    %v1038 = vunpack.c.0.s8 %v1037
    %v1039 = vlaneseq
    %v1040 = vshrl.u32 %v1039, 7
    %v1041 = vsub.s32 %v1038, %v1040
    %v1042 = vrot.slane %v1034, %v1041
    %v1044 = vunpack.c.l.s4 1983009808
    %v1045 = vunpack.c.0.s8 %v1044
    %v1046 = vlaneseq
    %v1047 = vshrl.u32 %v1046, 7
    %v1048 = vsub.s32 %v1045, %v1047
    %v1049 = vrot.slane %v1035, %v1048
    %v1050 = vcombine.low %v1026, %v1042
    %v1051 = vcombine.high %v1026, %v1042
    %v1053 = vunpack.c.l.s4 1934713408
    %v1054 = vunpack.c.0.s8 %v1053
    %v1055 = vlaneseq
    %v1056 = vshrl.u32 %v1055, 7
    %v1057 = vsub.s32 %v1054, %v1056
    %v1058 = vrot.slane %v1050, %v1057
    %v1060 = vunpack.c.l.s4 1934713408
    %v1061 = vunpack.c.0.s8 %v1060
    %v1062 = vlaneseq
    %v1063 = vshrl.u32 %v1062, 7
    %v1064 = vsub.s32 %v1061, %v1063
    %v1065 = vrot.slane %v1051, %v1064
    %v1066 = vcombine.low %v1033, %v1049
    %v1067 = vcombine.high %v1033, %v1049
    %v1069 = vunpack.c.l.s4 1934713408
    %v1070 = vunpack.c.0.s8 %v1069
    %v1071 = vlaneseq
    %v1072 = vshrl.u32 %v1071, 7
    %v1073 = vsub.s32 %v1070, %v1072
    %v1074 = vrot.slane %v1066, %v1073
    %v1076 = vunpack.c.l.s4 1934713408
    %v1077 = vunpack.c.0.s8 %v1076
    %v1078 = vlaneseq
    %v1079 = vshrl.u32 %v1078, 7
    %v1080 = vsub.s32 %v1077, %v1079
    %v1081 = vrot.slane %v1067, %v1080
    %v1082 = vcombine.high %v1058, 0.0
    %v1083 = vcombine.high %v1065, 0.0
    %v1084 = vcombine.high %v1074, 0.0
    %v1085 = vcombine.high %v1081, 0.0
    %v1086 = vcombine.low %v990, %v997
    %v1088 = vunpack.c.l.s4 1983009808
    %v1089 = vunpack.c.0.s8 %v1088
    %v1090 = vlaneseq
    %v1091 = vshrl.u32 %v1090, 7
    %v1092 = vsub.s32 %v1089, %v1091
    %v1093 = vrot.slane %v1086, %v1092
    %v1094 = vcombine.low %v1014, %v1015
    %v1096 = vunpack.c.l.s4 1983009808
    %v1097 = vunpack.c.0.s8 %v1096
    %v1098 = vlaneseq
    %v1099 = vshrl.u32 %v1098, 7
    %v1100 = vsub.s32 %v1097, %v1099
    %v1101 = vrot.slane %v1094, %v1100
    %v1102 = vcombine.low %v1006, %v1013
    %v1104 = vunpack.c.l.s4 1983009808
    %v1105 = vunpack.c.0.s8 %v1104
    %v1106 = vlaneseq
    %v1107 = vshrl.u32 %v1106, 7
    %v1108 = vsub.s32 %v1105, %v1107
    %v1109 = vrot.slane %v1102, %v1108
    %v1110 = vcombine.low %v1016, %v1017
    %v1112 = vunpack.c.l.s4 1983009808
    %v1113 = vunpack.c.0.s8 %v1112
    %v1114 = vlaneseq
    %v1115 = vshrl.u32 %v1114, 7
    %v1116 = vsub.s32 %v1113, %v1115
    %v1117 = vrot.slane %v1110, %v1116
    %v1118 = vcombine.low %v1093, %v1101
    %v1119 = vcombine.high %v1093, %v1101
    %v1121 = vunpack.c.l.s4 1934713408
    %v1122 = vunpack.c.0.s8 %v1121
    %v1123 = vlaneseq
    %v1124 = vshrl.u32 %v1123, 7
    %v1125 = vsub.s32 %v1122, %v1124
    %v1126 = vrot.slane %v1118, %v1125
    %v1128 = vunpack.c.l.s4 1934713408
    %v1129 = vunpack.c.0.s8 %v1128
    %v1130 = vlaneseq
    %v1131 = vshrl.u32 %v1130, 7
    %v1132 = vsub.s32 %v1129, %v1131
    %v1133 = vrot.slane %v1119, %v1132
    %v1134 = vcombine.low %v1109, %v1117
    %v1135 = vcombine.high %v1109, %v1117
    %v1137 = vunpack.c.l.s4 1934713408
    %v1138 = vunpack.c.0.s8 %v1137
    %v1139 = vlaneseq
    %v1140 = vshrl.u32 %v1139, 7
    %v1141 = vsub.s32 %v1138, %v1140
    %v1142 = vrot.slane %v1134, %v1141
    %v1144 = vunpack.c.l.s4 1934713408
    %v1145 = vunpack.c.0.s8 %v1144
    %v1146 = vlaneseq
    %v1147 = vshrl.u32 %v1146, 7
    %v1148 = vsub.s32 %v1145, %v1147
    %v1149 = vrot.slane %v1135, %v1148
    %v1150 = vcombine.low %v1126, %v1142
    %v1151 = vcombine.high %v1126, %v1142
    %v1152 = vcombine.low %v1133, %v1149
    %v1153 = vcombine.high %v1133, %v1149
    %v1154 = vcombine.low %v1058, %v1065
    %v1156 = vunpack.c.l.s4 1983009808
    %v1157 = vunpack.c.0.s8 %v1156
    %v1158 = vlaneseq
    %v1159 = vshrl.u32 %v1158, 7
    %v1160 = vsub.s32 %v1157, %v1159
    %v1161 = vrot.slane %v1154, %v1160
    %v1162 = vcombine.low %v1082, %v1083
    %v1164 = vunpack.c.l.s4 1983009808
    %v1165 = vunpack.c.0.s8 %v1164
    %v1166 = vlaneseq
    %v1167 = vshrl.u32 %v1166, 7
    %v1168 = vsub.s32 %v1165, %v1167
    %v1169 = vrot.slane %v1162, %v1168
    %v1170 = vcombine.low %v1074, %v1081
    %v1172 = vunpack.c.l.s4 1983009808
    %v1173 = vunpack.c.0.s8 %v1172
    %v1174 = vlaneseq
    %v1175 = vshrl.u32 %v1174, 7
    %v1176 = vsub.s32 %v1173, %v1175
    %v1177 = vrot.slane %v1170, %v1176
    %v1178 = vcombine.low %v1084, %v1085
    %v1180 = vunpack.c.l.s4 1983009808
    %v1181 = vunpack.c.0.s8 %v1180
    %v1182 = vlaneseq
    %v1183 = vshrl.u32 %v1182, 7
    %v1184 = vsub.s32 %v1181, %v1183
    %v1185 = vrot.slane %v1178, %v1184
    %v1186 = vcombine.low %v1161, %v1169
    %v1187 = vcombine.high %v1161, %v1169
    %v1189 = vunpack.c.l.s4 1934713408
    %v1190 = vunpack.c.0.s8 %v1189
    %v1191 = vlaneseq
    %v1192 = vshrl.u32 %v1191, 7
    %v1193 = vsub.s32 %v1190, %v1192
    %v1194 = vrot.slane %v1186, %v1193
    %v1196 = vunpack.c.l.s4 1934713408
    %v1197 = vunpack.c.0.s8 %v1196
    %v1198 = vlaneseq
    %v1199 = vshrl.u32 %v1198, 7
    %v1200 = vsub.s32 %v1197, %v1199
    %v1201 = vrot.slane %v1187, %v1200
    %v1202 = vcombine.low %v1177, %v1185
    %v1203 = vcombine.high %v1177, %v1185
    %v1205 = vunpack.c.l.s4 1934713408
    %v1206 = vunpack.c.0.s8 %v1205
    %v1207 = vlaneseq
    %v1208 = vshrl.u32 %v1207, 7
    %v1209 = vsub.s32 %v1206, %v1208
    %v1210 = vrot.slane %v1202, %v1209
    %v1212 = vunpack.c.l.s4 1934713408
    %v1213 = vunpack.c.0.s8 %v1212
    %v1214 = vlaneseq
    %v1215 = vshrl.u32 %v1214, 7
    %v1216 = vsub.s32 %v1213, %v1215
    %v1217 = vrot.slane %v1203, %v1216
    %v1218 = vcombine.low %v1194, %v1210
    %v1219 = vcombine.high %v1194, %v1210
    %v1220 = vcombine.low %v1201, %v1217
    %v1221 = vcombine.high %v1201, %v1217
    %v1222 = vpack.c.bf16 %v1218, %v1150
    %v1223 = vpack.c.bf16 %v1219, %v1151
    %v1224 = vpack.c.bf16 %v1220, %v1152
    %v1225 = vpack.c.bf16 %v1221, %v1153
    %1228 = vrot.lane.b32.xlu0 %v620, 96
    %v1229 = vpop.permute.xlu0 %1228
    %1230 = vrot.lane.b32.xlu0 %v623, 96
    %v1231 = vpop.permute.xlu0 %1230
    %1234 = vrot.lane.b32.xlu0 %v620, 64
    %v1235 = vpop.permute.xlu0 %1234
    %1236 = vrot.lane.b32.xlu0 %v623, 64
    %v1237 = vpop.permute.xlu0 %1236
    %1240 = vrot.lane.b32.xlu0 %v620, 32
    %v1241 = vpop.permute.xlu0 %1240
    %1242 = vrot.lane.b32.xlu0 %v623, 32
    %v1243 = vpop.permute.xlu0 %1242
    %v1246 = vcombine.low %v620, %v1235
    %v1247 = vcombine.high %v620, %v1235
    %v1249 = vunpack.c.l.s4 1983009808
    %v1250 = vunpack.c.0.s8 %v1249
    %v1251 = vlaneseq
    %v1252 = vshrl.u32 %v1251, 7
    %v1253 = vsub.s32 %v1250, %v1252
    %v1254 = vrot.slane %v1246, %v1253
    %v1256 = vunpack.c.l.s4 1983009808
    %v1257 = vunpack.c.0.s8 %v1256
    %v1258 = vlaneseq
    %v1259 = vshrl.u32 %v1258, 7
    %v1260 = vsub.s32 %v1257, %v1259
    %v1261 = vrot.slane %v1247, %v1260
    %v1262 = vcombine.low %v1229, %v1241
    %v1263 = vcombine.high %v1229, %v1241
    %v1265 = vunpack.c.l.s4 1983009808
    %v1266 = vunpack.c.0.s8 %v1265
    %v1267 = vlaneseq
    %v1268 = vshrl.u32 %v1267, 7
    %v1269 = vsub.s32 %v1266, %v1268
    %v1270 = vrot.slane %v1262, %v1269
    %v1272 = vunpack.c.l.s4 1983009808
    %v1273 = vunpack.c.0.s8 %v1272
    %v1274 = vlaneseq
    %v1275 = vshrl.u32 %v1274, 7
    %v1276 = vsub.s32 %v1273, %v1275
    %v1277 = vrot.slane %v1263, %v1276
    %v1278 = vcombine.low %v1254, %v1270
    %v1279 = vcombine.high %v1254, %v1270
    %v1281 = vunpack.c.l.s4 1934713408
    %v1282 = vunpack.c.0.s8 %v1281
    %v1283 = vlaneseq
    %v1284 = vshrl.u32 %v1283, 7
    %v1285 = vsub.s32 %v1282, %v1284
    %v1286 = vrot.slane %v1278, %v1285
    %v1288 = vunpack.c.l.s4 1934713408
    %v1289 = vunpack.c.0.s8 %v1288
    %v1290 = vlaneseq
    %v1291 = vshrl.u32 %v1290, 7
    %v1292 = vsub.s32 %v1289, %v1291
    %v1293 = vrot.slane %v1279, %v1292
    %v1294 = vcombine.low %v1261, %v1277
    %v1295 = vcombine.high %v1261, %v1277
    %v1297 = vunpack.c.l.s4 1934713408
    %v1298 = vunpack.c.0.s8 %v1297
    %v1299 = vlaneseq
    %v1300 = vshrl.u32 %v1299, 7
    %v1301 = vsub.s32 %v1298, %v1300
    %v1302 = vrot.slane %v1294, %v1301
    %v1304 = vunpack.c.l.s4 1934713408
    %v1305 = vunpack.c.0.s8 %v1304
    %v1306 = vlaneseq
    %v1307 = vshrl.u32 %v1306, 7
    %v1308 = vsub.s32 %v1305, %v1307
    %v1309 = vrot.slane %v1295, %v1308
    %v1310 = vcombine.high %v1286, 0.0
    %v1311 = vcombine.high %v1293, 0.0
    %v1312 = vcombine.high %v1302, 0.0
    %v1313 = vcombine.high %v1309, 0.0
    %v1314 = vcombine.low %v623, %v1237
    %v1315 = vcombine.high %v623, %v1237
    %v1317 = vunpack.c.l.s4 1983009808
    %v1318 = vunpack.c.0.s8 %v1317
    %v1319 = vlaneseq
    %v1320 = vshrl.u32 %v1319, 7
    %v1321 = vsub.s32 %v1318, %v1320
    %v1322 = vrot.slane %v1314, %v1321
    %v1324 = vunpack.c.l.s4 1983009808
    %v1325 = vunpack.c.0.s8 %v1324
    %v1326 = vlaneseq
    %v1327 = vshrl.u32 %v1326, 7
    %v1328 = vsub.s32 %v1325, %v1327
    %v1329 = vrot.slane %v1315, %v1328
    %v1330 = vcombine.low %v1231, %v1243
    %v1331 = vcombine.high %v1231, %v1243
    %v1333 = vunpack.c.l.s4 1983009808
    %v1334 = vunpack.c.0.s8 %v1333
    %v1335 = vlaneseq
    %v1336 = vshrl.u32 %v1335, 7
    %v1337 = vsub.s32 %v1334, %v1336
    %v1338 = vrot.slane %v1330, %v1337
    %v1340 = vunpack.c.l.s4 1983009808
    %v1341 = vunpack.c.0.s8 %v1340
    %v1342 = vlaneseq
    %v1343 = vshrl.u32 %v1342, 7
    %v1344 = vsub.s32 %v1341, %v1343
    %v1345 = vrot.slane %v1331, %v1344
    %v1346 = vcombine.low %v1322, %v1338
    %v1347 = vcombine.high %v1322, %v1338
    %v1349 = vunpack.c.l.s4 1934713408
    %v1350 = vunpack.c.0.s8 %v1349
    %v1351 = vlaneseq
    %v1352 = vshrl.u32 %v1351, 7
    %v1353 = vsub.s32 %v1350, %v1352
    %v1354 = vrot.slane %v1346, %v1353
    %v1356 = vunpack.c.l.s4 1934713408
    %v1357 = vunpack.c.0.s8 %v1356
    %v1358 = vlaneseq
    %v1359 = vshrl.u32 %v1358, 7
    %v1360 = vsub.s32 %v1357, %v1359
    %v1361 = vrot.slane %v1347, %v1360
    %v1362 = vcombine.low %v1329, %v1345
    %v1363 = vcombine.high %v1329, %v1345
    %v1365 = vunpack.c.l.s4 1934713408
    %v1366 = vunpack.c.0.s8 %v1365
    %v1367 = vlaneseq
    %v1368 = vshrl.u32 %v1367, 7
    %v1369 = vsub.s32 %v1366, %v1368
    %v1370 = vrot.slane %v1362, %v1369
    %v1372 = vunpack.c.l.s4 1934713408
    %v1373 = vunpack.c.0.s8 %v1372
    %v1374 = vlaneseq
    %v1375 = vshrl.u32 %v1374, 7
    %v1376 = vsub.s32 %v1373, %v1375
    %v1377 = vrot.slane %v1363, %v1376
    %v1378 = vcombine.high %v1354, 0.0
    %v1379 = vcombine.high %v1361, 0.0
    %v1380 = vcombine.high %v1370, 0.0
    %v1381 = vcombine.high %v1377, 0.0
    %v1382 = vcombine.low %v1286, %v1293
    %v1384 = vunpack.c.l.s4 1983009808
    %v1385 = vunpack.c.0.s8 %v1384
    %v1386 = vlaneseq
    %v1387 = vshrl.u32 %v1386, 7
    %v1388 = vsub.s32 %v1385, %v1387
    %v1389 = vrot.slane %v1382, %v1388
    %v1390 = vcombine.low %v1310, %v1311
    %v1392 = vunpack.c.l.s4 1983009808
    %v1393 = vunpack.c.0.s8 %v1392
    %v1394 = vlaneseq
    %v1395 = vshrl.u32 %v1394, 7
    %v1396 = vsub.s32 %v1393, %v1395
    %v1397 = vrot.slane %v1390, %v1396
    %v1398 = vcombine.low %v1302, %v1309
    %v1400 = vunpack.c.l.s4 1983009808
    %v1401 = vunpack.c.0.s8 %v1400
    %v1402 = vlaneseq
    %v1403 = vshrl.u32 %v1402, 7
    %v1404 = vsub.s32 %v1401, %v1403
    %v1405 = vrot.slane %v1398, %v1404
    %v1406 = vcombine.low %v1312, %v1313
    %v1408 = vunpack.c.l.s4 1983009808
    %v1409 = vunpack.c.0.s8 %v1408
    %v1410 = vlaneseq
    %v1411 = vshrl.u32 %v1410, 7
    %v1412 = vsub.s32 %v1409, %v1411
    %v1413 = vrot.slane %v1406, %v1412
    %v1414 = vcombine.low %v1389, %v1397
    %v1415 = vcombine.high %v1389, %v1397
    %v1417 = vunpack.c.l.s4 1934713408
    %v1418 = vunpack.c.0.s8 %v1417
    %v1419 = vlaneseq
    %v1420 = vshrl.u32 %v1419, 7
    %v1421 = vsub.s32 %v1418, %v1420
    %v1422 = vrot.slane %v1414, %v1421
    %v1424 = vunpack.c.l.s4 1934713408
    %v1425 = vunpack.c.0.s8 %v1424
    %v1426 = vlaneseq
    %v1427 = vshrl.u32 %v1426, 7
    %v1428 = vsub.s32 %v1425, %v1427
    %v1429 = vrot.slane %v1415, %v1428
    %v1430 = vcombine.low %v1405, %v1413
    %v1431 = vcombine.high %v1405, %v1413
    %v1433 = vunpack.c.l.s4 1934713408
    %v1434 = vunpack.c.0.s8 %v1433
    %v1435 = vlaneseq
    %v1436 = vshrl.u32 %v1435, 7
    %v1437 = vsub.s32 %v1434, %v1436
    %v1438 = vrot.slane %v1430, %v1437
    %v1440 = vunpack.c.l.s4 1934713408
    %v1441 = vunpack.c.0.s8 %v1440
    %v1442 = vlaneseq
    %v1443 = vshrl.u32 %v1442, 7
    %v1444 = vsub.s32 %v1441, %v1443
    %v1445 = vrot.slane %v1431, %v1444
    %v1446 = vcombine.low %v1422, %v1438
    %v1447 = vcombine.high %v1422, %v1438
    %v1448 = vcombine.low %v1429, %v1445
    %v1449 = vcombine.high %v1429, %v1445
    %v1450 = vcombine.low %v1354, %v1361
    %v1452 = vunpack.c.l.s4 1983009808
    %v1453 = vunpack.c.0.s8 %v1452
    %v1454 = vlaneseq
    %v1455 = vshrl.u32 %v1454, 7
    %v1456 = vsub.s32 %v1453, %v1455
    %v1457 = vrot.slane %v1450, %v1456
    %v1458 = vcombine.low %v1378, %v1379
    %v1460 = vunpack.c.l.s4 1983009808
    %v1461 = vunpack.c.0.s8 %v1460
    %v1462 = vlaneseq
    %v1463 = vshrl.u32 %v1462, 7
    %v1464 = vsub.s32 %v1461, %v1463
    %v1465 = vrot.slane %v1458, %v1464
    %v1466 = vcombine.low %v1370, %v1377
    %v1468 = vunpack.c.l.s4 1983009808
    %v1469 = vunpack.c.0.s8 %v1468
    %v1470 = vlaneseq
    %v1471 = vshrl.u32 %v1470, 7
    %v1472 = vsub.s32 %v1469, %v1471
    %v1473 = vrot.slane %v1466, %v1472
    %v1474 = vcombine.low %v1380, %v1381
    %v1476 = vunpack.c.l.s4 1983009808
    %v1477 = vunpack.c.0.s8 %v1476
    %v1478 = vlaneseq
    %v1479 = vshrl.u32 %v1478, 7
    %v1480 = vsub.s32 %v1477, %v1479
    %v1481 = vrot.slane %v1474, %v1480
    %v1482 = vcombine.low %v1457, %v1465
    %v1483 = vcombine.high %v1457, %v1465
    %v1485 = vunpack.c.l.s4 1934713408
    %v1486 = vunpack.c.0.s8 %v1485
    %v1487 = vlaneseq
    %v1488 = vshrl.u32 %v1487, 7
    %v1489 = vsub.s32 %v1486, %v1488
    %v1490 = vrot.slane %v1482, %v1489
    %v1492 = vunpack.c.l.s4 1934713408
    %v1493 = vunpack.c.0.s8 %v1492
    %v1494 = vlaneseq
    %v1495 = vshrl.u32 %v1494, 7
    %v1496 = vsub.s32 %v1493, %v1495
    %v1497 = vrot.slane %v1483, %v1496
    %v1498 = vcombine.low %v1473, %v1481
    %v1499 = vcombine.high %v1473, %v1481
    %v1501 = vunpack.c.l.s4 1934713408
    %v1502 = vunpack.c.0.s8 %v1501
    %v1503 = vlaneseq
    %v1504 = vshrl.u32 %v1503, 7
    %v1505 = vsub.s32 %v1502, %v1504
    %v1506 = vrot.slane %v1498, %v1505
    %v1508 = vunpack.c.l.s4 1934713408
    %v1509 = vunpack.c.0.s8 %v1508
    %v1510 = vlaneseq
    %v1511 = vshrl.u32 %v1510, 7
    %v1512 = vsub.s32 %v1509, %v1511
    %v1513 = vrot.slane %v1499, %v1512
    %v1514 = vcombine.low %v1490, %v1506
    %v1515 = vcombine.high %v1490, %v1506
    %v1516 = vcombine.low %v1497, %v1513
    %v1517 = vcombine.high %v1497, %v1513
    %v1518 = vpack.c.bf16 %v1514, %v1446
    %v1519 = vpack.c.bf16 %v1515, %v1447
    %v1520 = vpack.c.bf16 %v1516, %v1448
    %v1521 = vpack.c.bf16 %v1517, %v1449
    %vm1522 = vcmask 261120
    %v1524 = vsel %vm1522, %v926, 0
    %v1527 = vsel %vm1522, %v1222, 0
    %1529 = vmatprep.subr.bf16.mxu0 0
    %1530 = vmatpush1.bf16.xpose.msra.mxu0 %v1527
    %1531 = vmatprep.subr.bf16.mxu0 0
    %1532 = vmatpush1.bf16.xpose.msra.mxu0 0
    %1533 = vmatprep.subr.bf16.mxu0 0
    %1534 = vmatpush1.bf16.xpose.msra.mxu0 0
    %1535 = vmatprep.subr.bf16.mxu0 0
    %1536 = vmatpush1.bf16.xpose.msra.mxu0 0
    %1537 = vmatprep.subr.bf16.mxu0 0
    %1538 = vmatpush1.bf16.xpose.msra.mxu0 0
    %1539 = vmatprep.subr.bf16.mxu0 0
    %1540 = vmatpush1.bf16.xpose.msra.mxu0 0
    %1541 = vmatprep.subr.bf16.mxu0 0
    %1542 = vmatpush1.bf16.xpose.msra.mxu0 0
    %1543 = vmatprep.subr.bf16.mxu0 0
    %1544 = vmatpush1.bf16.xpose.msra.mxu0 0
    %1545 = vmatprep.subr.bf16.mxu0 0
    %1546 = vmatpush1.bf16.xpose.msra.mxu0 0
    %1547 = vmatprep.subr.bf16.mxu0 0
    %1548 = vmatpush1.bf16.xpose.msra.mxu0 0
    %1549 = vmatprep.subr.bf16.mxu0 0
    %1550 = vmatpush1.bf16.xpose.msra.mxu0 0
    %1551 = vmatprep.subr.bf16.mxu0 0
    %1552 = vmatpush1.bf16.xpose.msra.mxu0 0
    %1553 = vmatprep.subr.bf16.mxu0 0
    %1554 = vmatpush1.bf16.xpose.msra.mxu0 0
    %1555 = vmatprep.subr.bf16.mxu0 0
    %1556 = vmatpush1.bf16.xpose.msra.mxu0 0
    %1557 = vmatprep.subr.bf16.mxu0 0
    %1558 = vmatpush1.bf16.xpose.msra.mxu0 0
    %1559 = vmatprep.subr.bf16.mxu0 0
    %1560 = vmatpush1.bf16.xpose.msra.mxu0 0
    %1561 = vmatprep.mubr.bf16.mxu0 0
    %1562 = vmatmul.mubr.bf16.gmra.mrb[0].mxu0 %v1524
    %v1563 = vpop.f32.mrb[0].mxu0
    %v1564 = vadd.f32 0.0, %v1563
    %v1565 = vpop.f32.mrb[0].mxu0
    %v1566 = vpop.f32.mrb[0].mxu0
    %v1567 = vadd.f32 0.0, %v1566
    %v1568 = vpop.f32.mrb[0].mxu0
    %1569 = vdwg.mxu0
    %v1571 = vsel %vm1522, %v927, 0
    %v1574 = vsel %vm1522, %v1223, 0
    %1576 = vmatprep.subr.bf16.mxu0 0
    %1577 = vmatpush1.bf16.xpose.msra.mxu0 %v1574
    %1578 = vmatprep.subr.bf16.mxu0 0
    %1579 = vmatpush1.bf16.xpose.msra.mxu0 0
    %1580 = vmatprep.subr.bf16.mxu0 0
    %1581 = vmatpush1.bf16.xpose.msra.mxu0 0
    %1582 = vmatprep.subr.bf16.mxu0 0
    %1583 = vmatpush1.bf16.xpose.msra.mxu0 0
    %1584 = vmatprep.subr.bf16.mxu0 0
    %1585 = vmatpush1.bf16.xpose.msra.mxu0 0
    %1586 = vmatprep.subr.bf16.mxu0 0
    %1587 = vmatpush1.bf16.xpose.msra.mxu0 0
    %1588 = vmatprep.subr.bf16.mxu0 0
    %1589 = vmatpush1.bf16.xpose.msra.mxu0 0
    %1590 = vmatprep.subr.bf16.mxu0 0
    %1591 = vmatpush1.bf16.xpose.msra.mxu0 0
    %1592 = vmatprep.subr.bf16.mxu0 0
    %1593 = vmatpush1.bf16.xpose.msra.mxu0 0
    %1594 = vmatprep.subr.bf16.mxu0 0
    %1595 = vmatpush1.bf16.xpose.msra.mxu0 0
    %1596 = vmatprep.subr.bf16.mxu0 0
    %1597 = vmatpush1.bf16.xpose.msra.mxu0 0
    %1598 = vmatprep.subr.bf16.mxu0 0
    %1599 = vmatpush1.bf16.xpose.msra.mxu0 0
    %1600 = vmatprep.subr.bf16.mxu0 0
    %1601 = vmatpush1.bf16.xpose.msra.mxu0 0
    %1602 = vmatprep.subr.bf16.mxu0 0
    %1603 = vmatpush1.bf16.xpose.msra.mxu0 0
    %1604 = vmatprep.subr.bf16.mxu0 0
    %1605 = vmatpush1.bf16.xpose.msra.mxu0 0
    %1606 = vmatprep.subr.bf16.mxu0 0
    %1607 = vmatpush1.bf16.xpose.msra.mxu0 0
    %1608 = vmatprep.mubr.bf16.mxu0 0
    %1609 = vmatmul.mubr.bf16.gmra.mrb[0].mxu0 %v1571
    %v1610 = vpop.f32.mrb[0].mxu0
    %v1611 = vadd.f32 0.0, %v1610
    %v1612 = vpop.f32.mrb[0].mxu0
    %v1613 = vpop.f32.mrb[0].mxu0
    %v1614 = vadd.f32 0.0, %v1613
    %v1615 = vpop.f32.mrb[0].mxu0
    %1616 = vdwg.mxu0
    %v1618 = vsel %vm1522, %v928, 0
    %v1621 = vsel %vm1522, %v1224, 0
    %1623 = vmatprep.subr.bf16.mxu0 0
    %1624 = vmatpush1.bf16.xpose.msra.mxu0 %v1621
    %1625 = vmatprep.subr.bf16.mxu0 0
    %1626 = vmatpush1.bf16.xpose.msra.mxu0 0
    %1627 = vmatprep.subr.bf16.mxu0 0
    %1628 = vmatpush1.bf16.xpose.msra.mxu0 0
    %1629 = vmatprep.subr.bf16.mxu0 0
    %1630 = vmatpush1.bf16.xpose.msra.mxu0 0
    %1631 = vmatprep.subr.bf16.mxu0 0
    %1632 = vmatpush1.bf16.xpose.msra.mxu0 0
    %1633 = vmatprep.subr.bf16.mxu0 0
    %1634 = vmatpush1.bf16.xpose.msra.mxu0 0
    %1635 = vmatprep.subr.bf16.mxu0 0
    %1636 = vmatpush1.bf16.xpose.msra.mxu0 0
    %1637 = vmatprep.subr.bf16.mxu0 0
    %1638 = vmatpush1.bf16.xpose.msra.mxu0 0
    %1639 = vmatprep.subr.bf16.mxu0 0
    %1640 = vmatpush1.bf16.xpose.msra.mxu0 0
    %1641 = vmatprep.subr.bf16.mxu0 0
    %1642 = vmatpush1.bf16.xpose.msra.mxu0 0
    %1643 = vmatprep.subr.bf16.mxu0 0
    %1644 = vmatpush1.bf16.xpose.msra.mxu0 0
    %1645 = vmatprep.subr.bf16.mxu0 0
    %1646 = vmatpush1.bf16.xpose.msra.mxu0 0
    %1647 = vmatprep.subr.bf16.mxu0 0
    %1648 = vmatpush1.bf16.xpose.msra.mxu0 0
    %1649 = vmatprep.subr.bf16.mxu0 0
    %1650 = vmatpush1.bf16.xpose.msra.mxu0 0
    %1651 = vmatprep.subr.bf16.mxu0 0
    %1652 = vmatpush1.bf16.xpose.msra.mxu0 0
    %1653 = vmatprep.subr.bf16.mxu0 0
    %1654 = vmatpush1.bf16.xpose.msra.mxu0 0
    %1655 = vmatprep.mubr.bf16.mxu0 0
    %1656 = vmatmul.mubr.bf16.gmra.mrb[0].mxu0 %v1618
    %v1657 = vpop.f32.mrb[0].mxu0
    %v1658 = vadd.f32 0.0, %v1657
    %v1659 = vpop.f32.mrb[0].mxu0
    %v1660 = vpop.f32.mrb[0].mxu0
    %v1661 = vadd.f32 0.0, %v1660
    %v1662 = vpop.f32.mrb[0].mxu0
    %1663 = vdwg.mxu0
    %v1665 = vsel %vm1522, %v929, 0
    %v1668 = vsel %vm1522, %v1225, 0
    %1670 = vmatprep.subr.bf16.mxu0 0
    %1671 = vmatpush1.bf16.xpose.msra.mxu0 %v1668
    %1672 = vmatprep.subr.bf16.mxu0 0
    %1673 = vmatpush1.bf16.xpose.msra.mxu0 0
    %1674 = vmatprep.subr.bf16.mxu0 0
    %1675 = vmatpush1.bf16.xpose.msra.mxu0 0
    %1676 = vmatprep.subr.bf16.mxu0 0
    %1677 = vmatpush1.bf16.xpose.msra.mxu0 0
    %1678 = vmatprep.subr.bf16.mxu0 0
    %1679 = vmatpush1.bf16.xpose.msra.mxu0 0
    %1680 = vmatprep.subr.bf16.mxu0 0
    %1681 = vmatpush1.bf16.xpose.msra.mxu0 0
    %1682 = vmatprep.subr.bf16.mxu0 0
    %1683 = vmatpush1.bf16.xpose.msra.mxu0 0
    %1684 = vmatprep.subr.bf16.mxu0 0
    %1685 = vmatpush1.bf16.xpose.msra.mxu0 0
    %1686 = vmatprep.subr.bf16.mxu0 0
    %1687 = vmatpush1.bf16.xpose.msra.mxu0 0
    %1688 = vmatprep.subr.bf16.mxu0 0
    %1689 = vmatpush1.bf16.xpose.msra.mxu0 0
    %1690 = vmatprep.subr.bf16.mxu0 0
    %1691 = vmatpush1.bf16.xpose.msra.mxu0 0
    %1692 = vmatprep.subr.bf16.mxu0 0
    %1693 = vmatpush1.bf16.xpose.msra.mxu0 0
    %1694 = vmatprep.subr.bf16.mxu0 0
    %1695 = vmatpush1.bf16.xpose.msra.mxu0 0
    %1696 = vmatprep.subr.bf16.mxu0 0
    %1697 = vmatpush1.bf16.xpose.msra.mxu0 0
    %1698 = vmatprep.subr.bf16.mxu0 0
    %1699 = vmatpush1.bf16.xpose.msra.mxu0 0
    %1700 = vmatprep.subr.bf16.mxu0 0
    %1701 = vmatpush1.bf16.xpose.msra.mxu0 0
    %1702 = vmatprep.mubr.bf16.mxu0 0
    %1703 = vmatmul.mubr.bf16.gmra.mrb[0].mxu0 %v1665
    %v1704 = vpop.f32.mrb[0].mxu0
    %v1705 = vadd.f32 0.0, %v1704
    %v1706 = vpop.f32.mrb[0].mxu0
    %v1707 = vpop.f32.mrb[0].mxu0
    %v1708 = vadd.f32 0.0, %v1707
    %v1709 = vpop.f32.mrb[0].mxu0
    %1710 = vdwg.mxu0
    %v1711 = vmul.f32 %v1564, 0.17677669
    %v1712 = vmul.f32 %v1567, 0.17677669
    %v1713 = vmul.f32 %v1611, 0.17677669
    %v1714 = vmul.f32 %v1614, 0.17677669
    %v1715 = vmul.f32 %v1658, 0.17677669
    %v1716 = vmul.f32 %v1661, 0.17677669
    %v1717 = vmul.f32 %v1705, 0.17677669
    %v1718 = vmul.f32 %v1708, 0.17677669
    %vm1719 = vcmask 130048
    %v1720 = vsel %vm1719, %v1711, -inf
    %1721 = vmax.xlane.f32.xlu0 %v1720
    %v1722 = vpop.xlane.xlu0 %1721
    %v1723 = vsel %vm1719, %v1712, -inf
    %1724 = vmax.xlane.f32.xlu0 %v1723
    %v1725 = vpop.xlane.xlu0 %1724
    %v1726 = vsel %vm1719, %v1713, -inf
    %1727 = vmax.xlane.f32.xlu0 %v1726
    %v1728 = vpop.xlane.xlu0 %1727
    %v1729 = vsel %vm1719, %v1714, -inf
    %1730 = vmax.xlane.f32.xlu0 %v1729
    %v1731 = vpop.xlane.xlu0 %1730
    %v1732 = vsel %vm1719, %v1715, -inf
    %1733 = vmax.xlane.f32.xlu0 %v1732
    %v1734 = vpop.xlane.xlu0 %1733
    %v1735 = vsel %vm1719, %v1716, -inf
    %1736 = vmax.xlane.f32.xlu0 %v1735
    %v1737 = vpop.xlane.xlu0 %1736
    %v1738 = vsel %vm1719, %v1717, -inf
    %1739 = vmax.xlane.f32.xlu0 %v1738
    %v1740 = vpop.xlane.xlu0 %1739
    %v1741 = vsel %vm1719, %v1718, -inf
    %1742 = vmax.xlane.f32.xlu0 %v1741
    %v1743 = vpop.xlane.xlu0 %1742
    %v1744 = vsub.f32 %v1711, %v1722
    %v1745 = vsub.f32 %v1712, %v1725
    %v1746 = vsub.f32 %v1713, %v1728
    %v1747 = vsub.f32 %v1714, %v1731
    %v1748 = vsub.f32 %v1715, %v1734
    %v1749 = vsub.f32 %v1716, %v1737
    %v1750 = vsub.f32 %v1717, %v1740
    %v1751 = vsub.f32 %v1718, %v1743
    %v1752 = vmul.f32 %v1744, 1.442695
    %v1753 = vpow.pop %v1752
    %v1754 = vmul.f32 %v1745, 1.442695
    %v1755 = vpow.pop %v1754
    %v1756 = vmul.f32 %v1746, 1.442695
    %v1757 = vpow.pop %v1756
    %v1758 = vmul.f32 %v1747, 1.442695
    %v1759 = vpow.pop %v1758
    %v1760 = vmul.f32 %v1748, 1.442695
    %v1761 = vpow.pop %v1760
    %v1762 = vmul.f32 %v1749, 1.442695
    %v1763 = vpow.pop %v1762
    %v1764 = vmul.f32 %v1750, 1.442695
    %v1765 = vpow.pop %v1764
    %v1766 = vmul.f32 %v1751, 1.442695
    %v1767 = vpow.pop %v1766
    %v1768 = vsel %vm1719, %v1753, 0.0
    %1769 = vadd.xlane.f32.xlu0 %v1768
    %v1770 = vpop.xlane.xlu0 %1769
    %v1771 = vsel %vm1719, %v1755, 0.0
    %1772 = vadd.xlane.f32.xlu0 %v1771
    %v1773 = vpop.xlane.xlu0 %1772
    %v1774 = vsel %vm1719, %v1757, 0.0
    %1775 = vadd.xlane.f32.xlu0 %v1774
    %v1776 = vpop.xlane.xlu0 %1775
    %v1777 = vsel %vm1719, %v1759, 0.0
    %1778 = vadd.xlane.f32.xlu0 %v1777
    %v1779 = vpop.xlane.xlu0 %1778
    %v1780 = vsel %vm1719, %v1761, 0.0
    %1781 = vadd.xlane.f32.xlu0 %v1780
    %v1782 = vpop.xlane.xlu0 %1781
    %v1783 = vsel %vm1719, %v1763, 0.0
    %1784 = vadd.xlane.f32.xlu0 %v1783
    %v1785 = vpop.xlane.xlu0 %1784
    %v1786 = vsel %vm1719, %v1765, 0.0
    %1787 = vadd.xlane.f32.xlu0 %v1786
    %v1788 = vpop.xlane.xlu0 %1787
    %v1789 = vsel %vm1719, %v1767, 0.0
    %1790 = vadd.xlane.f32.xlu0 %v1789
    %v1791 = vpop.xlane.xlu0 %1790
    %v1792 = vrcp.pop %v1770
    %v1793 = vrcp.pop %v1773
    %v1794 = vrcp.pop %v1776
    %v1795 = vrcp.pop %v1779
    %v1796 = vrcp.pop %v1782
    %v1797 = vrcp.pop %v1785
    %v1798 = vrcp.pop %v1788
    %v1799 = vrcp.pop %v1791
    %v1800 = vmul.f32 %v1753, %v1792
    %v1801 = vmul.f32 %v1755, %v1793
    %v1802 = vmul.f32 %v1757, %v1794
    %v1803 = vmul.f32 %v1759, %v1795
    %v1804 = vmul.f32 %v1761, %v1796
    %v1805 = vmul.f32 %v1763, %v1797
    %v1806 = vmul.f32 %v1765, %v1798
    %v1807 = vmul.f32 %v1767, %v1799
    %v1808 = vpack.c.bf16 %v1801, %v1800
    %v1809 = vpack.c.bf16 %v1803, %v1802
    %v1810 = vpack.c.bf16 %v1805, %v1804
    %v1811 = vpack.c.bf16 %v1807, %v1806
    %v1813 = vsel %vm1719, %v1808, 0
    %1815 = vmatprep.subr.bf16.mxu0 0
    %1816 = vmatpush1.bf16.msra.mxu0 %v1518
    %1817 = vmatprep.subr.bf16.mxu0 0
    %1818 = vmatpush1.bf16.msra.mxu0 0
    %1819 = vmatprep.subr.bf16.mxu0 0
    %1820 = vmatpush1.bf16.msra.mxu0 0
    %1821 = vmatprep.subr.bf16.mxu0 0
    %1822 = vmatpush1.bf16.msra.mxu0 0
    %1823 = vmatprep.subr.bf16.mxu0 0
    %1824 = vmatpush1.bf16.msra.mxu0 0
    %1825 = vmatprep.subr.bf16.mxu0 0
    %1826 = vmatpush1.bf16.msra.mxu0 0
    %1827 = vmatprep.subr.bf16.mxu0 0
    %1828 = vmatpush1.bf16.msra.mxu0 0
    %1829 = vmatprep.subr.bf16.mxu0 0
    %1830 = vmatpush1.bf16.msra.mxu0 0
    %1831 = vmatprep.subr.bf16.mxu0 0
    %1832 = vmatpush1.bf16.msra.mxu0 0
    %1833 = vmatprep.subr.bf16.mxu0 0
    %1834 = vmatpush1.bf16.msra.mxu0 0
    %1835 = vmatprep.subr.bf16.mxu0 0
    %1836 = vmatpush1.bf16.msra.mxu0 0
    %1837 = vmatprep.subr.bf16.mxu0 0
    %1838 = vmatpush1.bf16.msra.mxu0 0
    %1839 = vmatprep.subr.bf16.mxu0 0
    %1840 = vmatpush1.bf16.msra.mxu0 0
    %1841 = vmatprep.subr.bf16.mxu0 0
    %1842 = vmatpush1.bf16.msra.mxu0 0
    %1843 = vmatprep.subr.bf16.mxu0 0
    %1844 = vmatpush1.bf16.msra.mxu0 0
    %1845 = vmatprep.subr.bf16.mxu0 0
    %1846 = vmatpush1.bf16.msra.mxu0 0
    %1847 = vmatprep.mubr.bf16.mxu0 0
    %1848 = vmatmul.mubr.bf16.gmra.mrb[0].mxu0 %v1813
    %v1849 = vpop.f32.mrb[0].mxu0
    %v1850 = vadd.f32 0.0, %v1849
    %v1851 = vpop.f32.mrb[0].mxu0
    %v1852 = vpop.f32.mrb[0].mxu0
    %v1853 = vadd.f32 0.0, %v1852
    %v1854 = vpop.f32.mrb[0].mxu0
    %1855 = vdwg.mxu0
    %v1857 = vsel %vm1719, %v1809, 0
    %1859 = vmatprep.subr.bf16.mxu0 0
    %1860 = vmatpush1.bf16.msra.mxu0 %v1519
    %1861 = vmatprep.subr.bf16.mxu0 0
    %1862 = vmatpush1.bf16.msra.mxu0 0
    %1863 = vmatprep.subr.bf16.mxu0 0
    %1864 = vmatpush1.bf16.msra.mxu0 0
    %1865 = vmatprep.subr.bf16.mxu0 0
    %1866 = vmatpush1.bf16.msra.mxu0 0
    %1867 = vmatprep.subr.bf16.mxu0 0
    %1868 = vmatpush1.bf16.msra.mxu0 0
    %1869 = vmatprep.subr.bf16.mxu0 0
    %1870 = vmatpush1.bf16.msra.mxu0 0
    %1871 = vmatprep.subr.bf16.mxu0 0
    %1872 = vmatpush1.bf16.msra.mxu0 0
    %1873 = vmatprep.subr.bf16.mxu0 0
    %1874 = vmatpush1.bf16.msra.mxu0 0
    %1875 = vmatprep.subr.bf16.mxu0 0
    %1876 = vmatpush1.bf16.msra.mxu0 0
    %1877 = vmatprep.subr.bf16.mxu0 0
    %1878 = vmatpush1.bf16.msra.mxu0 0
    %1879 = vmatprep.subr.bf16.mxu0 0
    %1880 = vmatpush1.bf16.msra.mxu0 0
    %1881 = vmatprep.subr.bf16.mxu0 0
    %1882 = vmatpush1.bf16.msra.mxu0 0
    %1883 = vmatprep.subr.bf16.mxu0 0
    %1884 = vmatpush1.bf16.msra.mxu0 0
    %1885 = vmatprep.subr.bf16.mxu0 0
    %1886 = vmatpush1.bf16.msra.mxu0 0
    %1887 = vmatprep.subr.bf16.mxu0 0
    %1888 = vmatpush1.bf16.msra.mxu0 0
    %1889 = vmatprep.subr.bf16.mxu0 0
    %1890 = vmatpush1.bf16.msra.mxu0 0
    %1891 = vmatprep.mubr.bf16.mxu0 0
    %1892 = vmatmul.mubr.bf16.gmra.mrb[0].mxu0 %v1857
    %v1893 = vpop.f32.mrb[0].mxu0
    %v1894 = vadd.f32 0.0, %v1893
    %v1895 = vpop.f32.mrb[0].mxu0
    %v1896 = vpop.f32.mrb[0].mxu0
    %v1897 = vadd.f32 0.0, %v1896
    %v1898 = vpop.f32.mrb[0].mxu0
    %1899 = vdwg.mxu0
    %v1901 = vsel %vm1719, %v1810, 0
    %1903 = vmatprep.subr.bf16.mxu0 0
    %1904 = vmatpush1.bf16.msra.mxu0 %v1520
    %1905 = vmatprep.subr.bf16.mxu0 0
    %1906 = vmatpush1.bf16.msra.mxu0 0
    %1907 = vmatprep.subr.bf16.mxu0 0
    %1908 = vmatpush1.bf16.msra.mxu0 0
    %1909 = vmatprep.subr.bf16.mxu0 0
    %1910 = vmatpush1.bf16.msra.mxu0 0
    %1911 = vmatprep.subr.bf16.mxu0 0
    %1912 = vmatpush1.bf16.msra.mxu0 0
    %1913 = vmatprep.subr.bf16.mxu0 0
    %1914 = vmatpush1.bf16.msra.mxu0 0
    %1915 = vmatprep.subr.bf16.mxu0 0
    %1916 = vmatpush1.bf16.msra.mxu0 0
    %1917 = vmatprep.subr.bf16.mxu0 0
    %1918 = vmatpush1.bf16.msra.mxu0 0
    %1919 = vmatprep.subr.bf16.mxu0 0
    %1920 = vmatpush1.bf16.msra.mxu0 0
    %1921 = vmatprep.subr.bf16.mxu0 0
    %1922 = vmatpush1.bf16.msra.mxu0 0
    %1923 = vmatprep.subr.bf16.mxu0 0
    %1924 = vmatpush1.bf16.msra.mxu0 0
    %1925 = vmatprep.subr.bf16.mxu0 0
    %1926 = vmatpush1.bf16.msra.mxu0 0
    %1927 = vmatprep.subr.bf16.mxu0 0
    %1928 = vmatpush1.bf16.msra.mxu0 0
    %1929 = vmatprep.subr.bf16.mxu0 0
    %1930 = vmatpush1.bf16.msra.mxu0 0
    %1931 = vmatprep.subr.bf16.mxu0 0
    %1932 = vmatpush1.bf16.msra.mxu0 0
    %1933 = vmatprep.subr.bf16.mxu0 0
    %1934 = vmatpush1.bf16.msra.mxu0 0
    %1935 = vmatprep.mubr.bf16.mxu0 0
    %1936 = vmatmul.mubr.bf16.gmra.mrb[0].mxu0 %v1901
    %v1937 = vpop.f32.mrb[0].mxu0
    %v1938 = vadd.f32 0.0, %v1937
    %v1939 = vpop.f32.mrb[0].mxu0
    %v1940 = vpop.f32.mrb[0].mxu0
    %v1941 = vadd.f32 0.0, %v1940
    %v1942 = vpop.f32.mrb[0].mxu0
    %1943 = vdwg.mxu0
    %v1945 = vsel %vm1719, %v1811, 0
    %1947 = vmatprep.subr.bf16.mxu0 0
    %1948 = vmatpush1.bf16.msra.mxu0 %v1521
    %1949 = vmatprep.subr.bf16.mxu0 0
    %1950 = vmatpush1.bf16.msra.mxu0 0
    %1951 = vmatprep.subr.bf16.mxu0 0
    %1952 = vmatpush1.bf16.msra.mxu0 0
    %1953 = vmatprep.subr.bf16.mxu0 0
    %1954 = vmatpush1.bf16.msra.mxu0 0
    %1955 = vmatprep.subr.bf16.mxu0 0
    %1956 = vmatpush1.bf16.msra.mxu0 0
    %1957 = vmatprep.subr.bf16.mxu0 0
    %1958 = vmatpush1.bf16.msra.mxu0 0
    %1959 = vmatprep.subr.bf16.mxu0 0
    %1960 = vmatpush1.bf16.msra.mxu0 0
    %1961 = vmatprep.subr.bf16.mxu0 0
    %1962 = vmatpush1.bf16.msra.mxu0 0
    %1963 = vmatprep.subr.bf16.mxu0 0
    %1964 = vmatpush1.bf16.msra.mxu0 0
    %1965 = vmatprep.subr.bf16.mxu0 0
    %1966 = vmatpush1.bf16.msra.mxu0 0
    %1967 = vmatprep.subr.bf16.mxu0 0
    %1968 = vmatpush1.bf16.msra.mxu0 0
    %1969 = vmatprep.subr.bf16.mxu0 0
    %1970 = vmatpush1.bf16.msra.mxu0 0
    %1971 = vmatprep.subr.bf16.mxu0 0
    %1972 = vmatpush1.bf16.msra.mxu0 0
    %1973 = vmatprep.subr.bf16.mxu0 0
    %1974 = vmatpush1.bf16.msra.mxu0 0
    %1975 = vmatprep.subr.bf16.mxu0 0
    %1976 = vmatpush1.bf16.msra.mxu0 0
    %1977 = vmatprep.subr.bf16.mxu0 0
    %1978 = vmatpush1.bf16.msra.mxu0 0
    %1979 = vmatprep.mubr.bf16.mxu0 0
    %1980 = vmatmul.mubr.bf16.gmra.mrb[0].mxu0 %v1945
    %v1981 = vpop.f32.mrb[0].mxu0
    %v1982 = vadd.f32 0.0, %v1981
    %v1983 = vpop.f32.mrb[0].mxu0
    %v1984 = vpop.f32.mrb[0].mxu0
    %v1985 = vadd.f32 0.0, %v1984
    %v1986 = vpop.f32.mrb[0].mxu0
    %1987 = vdwg.mxu0
    %v1988 = vcombine.low %v1850, %v1938
    %v1989 = vcombine.high %v1850, %v1938
    %v1991 = vunpack.c.l.s4 1983009808
    %v1992 = vunpack.c.0.s8 %v1991
    %v1993 = vlaneseq
    %v1994 = vshrl.u32 %v1993, 7
    %v1995 = vsub.s32 %v1992, %v1994
    %v1996 = vrot.slane %v1988, %v1995
    %v1998 = vunpack.c.l.s4 1983009808
    %v1999 = vunpack.c.0.s8 %v1998
    %v2000 = vlaneseq
    %v2001 = vshrl.u32 %v2000, 7
    %v2002 = vsub.s32 %v1999, %v2001
    %v2003 = vrot.slane %v1989, %v2002
    %v2004 = vcombine.low %v1894, %v1982
    %v2005 = vcombine.high %v1894, %v1982
    %v2007 = vunpack.c.l.s4 1983009808
    %v2008 = vunpack.c.0.s8 %v2007
    %v2009 = vlaneseq
    %v2010 = vshrl.u32 %v2009, 7
    %v2011 = vsub.s32 %v2008, %v2010
    %v2012 = vrot.slane %v2004, %v2011
    %v2014 = vunpack.c.l.s4 1983009808
    %v2015 = vunpack.c.0.s8 %v2014
    %v2016 = vlaneseq
    %v2017 = vshrl.u32 %v2016, 7
    %v2018 = vsub.s32 %v2015, %v2017
    %v2019 = vrot.slane %v2005, %v2018
    %v2020 = vcombine.low %v1996, %v2012
    %v2021 = vcombine.high %v1996, %v2012
    %v2023 = vunpack.c.l.s4 1934713408
    %v2024 = vunpack.c.0.s8 %v2023
    %v2025 = vlaneseq
    %v2026 = vshrl.u32 %v2025, 7
    %v2027 = vsub.s32 %v2024, %v2026
    %v2028 = vrot.slane %v2020, %v2027
    %v2030 = vunpack.c.l.s4 1934713408
    %v2031 = vunpack.c.0.s8 %v2030
    %v2032 = vlaneseq
    %v2033 = vshrl.u32 %v2032, 7
    %v2034 = vsub.s32 %v2031, %v2033
    %v2035 = vrot.slane %v2021, %v2034
    %v2036 = vcombine.low %v2003, %v2019
    %v2037 = vcombine.high %v2003, %v2019
    %v2039 = vunpack.c.l.s4 1934713408
    %v2040 = vunpack.c.0.s8 %v2039
    %v2041 = vlaneseq
    %v2042 = vshrl.u32 %v2041, 7
    %v2043 = vsub.s32 %v2040, %v2042
    %v2044 = vrot.slane %v2036, %v2043
    %v2046 = vunpack.c.l.s4 1934713408
    %v2047 = vunpack.c.0.s8 %v2046
    %v2048 = vlaneseq
    %v2049 = vshrl.u32 %v2048, 7
    %v2050 = vsub.s32 %v2047, %v2049
    %v2051 = vrot.slane %v2037, %v2050
    %v2052 = vcombine.high %v2028, 0.0
    %v2053 = vcombine.high %v2035, 0.0
    %v2054 = vcombine.high %v2044, 0.0
    %v2055 = vcombine.high %v2051, 0.0
    %v2056 = vcombine.low %v1853, %v1941
    %v2057 = vcombine.high %v1853, %v1941
    %v2059 = vunpack.c.l.s4 1983009808
    %v2060 = vunpack.c.0.s8 %v2059
    %v2061 = vlaneseq
    %v2062 = vshrl.u32 %v2061, 7
    %v2063 = vsub.s32 %v2060, %v2062
    %v2064 = vrot.slane %v2056, %v2063
    %v2066 = vunpack.c.l.s4 1983009808
    %v2067 = vunpack.c.0.s8 %v2066
    %v2068 = vlaneseq
    %v2069 = vshrl.u32 %v2068, 7
    %v2070 = vsub.s32 %v2067, %v2069
    %v2071 = vrot.slane %v2057, %v2070
    %v2072 = vcombine.low %v1897, %v1985
    %v2073 = vcombine.high %v1897, %v1985
    %v2075 = vunpack.c.l.s4 1983009808
    %v2076 = vunpack.c.0.s8 %v2075
    %v2077 = vlaneseq
    %v2078 = vshrl.u32 %v2077, 7
    %v2079 = vsub.s32 %v2076, %v2078
    %v2080 = vrot.slane %v2072, %v2079
    %v2082 = vunpack.c.l.s4 1983009808
    %v2083 = vunpack.c.0.s8 %v2082
    %v2084 = vlaneseq
    %v2085 = vshrl.u32 %v2084, 7
    %v2086 = vsub.s32 %v2083, %v2085
    %v2087 = vrot.slane %v2073, %v2086
    %v2088 = vcombine.low %v2064, %v2080
    %v2089 = vcombine.high %v2064, %v2080
    %v2091 = vunpack.c.l.s4 1934713408
    %v2092 = vunpack.c.0.s8 %v2091
    %v2093 = vlaneseq
    %v2094 = vshrl.u32 %v2093, 7
    %v2095 = vsub.s32 %v2092, %v2094
    %v2096 = vrot.slane %v2088, %v2095
    %v2098 = vunpack.c.l.s4 1934713408
    %v2099 = vunpack.c.0.s8 %v2098
    %v2100 = vlaneseq
    %v2101 = vshrl.u32 %v2100, 7
    %v2102 = vsub.s32 %v2099, %v2101
    %v2103 = vrot.slane %v2089, %v2102
    %v2104 = vcombine.low %v2071, %v2087
    %v2105 = vcombine.high %v2071, %v2087
    %v2107 = vunpack.c.l.s4 1934713408
    %v2108 = vunpack.c.0.s8 %v2107
    %v2109 = vlaneseq
    %v2110 = vshrl.u32 %v2109, 7
    %v2111 = vsub.s32 %v2108, %v2110
    %v2112 = vrot.slane %v2104, %v2111
    %v2114 = vunpack.c.l.s4 1934713408
    %v2115 = vunpack.c.0.s8 %v2114
    %v2116 = vlaneseq
    %v2117 = vshrl.u32 %v2116, 7
    %v2118 = vsub.s32 %v2115, %v2117
    %v2119 = vrot.slane %v2105, %v2118
    %v2120 = vcombine.high %v2096, 0.0
    %v2121 = vcombine.high %v2103, 0.0
    %v2122 = vcombine.high %v2112, 0.0
    %v2123 = vcombine.high %v2119, 0.0
    %v2124 = vcombine.low %v2028, %v2035
    %v2126 = vunpack.c.l.s4 1983009808
    %v2127 = vunpack.c.0.s8 %v2126
    %v2128 = vlaneseq
    %v2129 = vshrl.u32 %v2128, 7
    %v2130 = vsub.s32 %v2127, %v2129
    %v2131 = vrot.slane %v2124, %v2130
    %v2132 = vcombine.low %v2052, %v2053
    %v2134 = vunpack.c.l.s4 1983009808
    %v2135 = vunpack.c.0.s8 %v2134
    %v2136 = vlaneseq
    %v2137 = vshrl.u32 %v2136, 7
    %v2138 = vsub.s32 %v2135, %v2137
    %v2139 = vrot.slane %v2132, %v2138
    %v2140 = vcombine.low %v2044, %v2051
    %v2142 = vunpack.c.l.s4 1983009808
    %v2143 = vunpack.c.0.s8 %v2142
    %v2144 = vlaneseq
    %v2145 = vshrl.u32 %v2144, 7
    %v2146 = vsub.s32 %v2143, %v2145
    %v2147 = vrot.slane %v2140, %v2146
    %v2148 = vcombine.low %v2054, %v2055
    %v2150 = vunpack.c.l.s4 1983009808
    %v2151 = vunpack.c.0.s8 %v2150
    %v2152 = vlaneseq
    %v2153 = vshrl.u32 %v2152, 7
    %v2154 = vsub.s32 %v2151, %v2153
    %v2155 = vrot.slane %v2148, %v2154
    %v2156 = vcombine.low %v2131, %v2139
    %v2157 = vcombine.high %v2131, %v2139
    %v2159 = vunpack.c.l.s4 1934713408
    %v2160 = vunpack.c.0.s8 %v2159
    %v2161 = vlaneseq
    %v2162 = vshrl.u32 %v2161, 7
    %v2163 = vsub.s32 %v2160, %v2162
    %v2164 = vrot.slane %v2156, %v2163
    %v2166 = vunpack.c.l.s4 1934713408
    %v2167 = vunpack.c.0.s8 %v2166
    %v2168 = vlaneseq
    %v2169 = vshrl.u32 %v2168, 7
    %v2170 = vsub.s32 %v2167, %v2169
    %v2171 = vrot.slane %v2157, %v2170
    %v2172 = vcombine.low %v2147, %v2155
    %v2173 = vcombine.high %v2147, %v2155
    %v2175 = vunpack.c.l.s4 1934713408
    %v2176 = vunpack.c.0.s8 %v2175
    %v2177 = vlaneseq
    %v2178 = vshrl.u32 %v2177, 7
    %v2179 = vsub.s32 %v2176, %v2178
    %v2180 = vrot.slane %v2172, %v2179
    %v2182 = vunpack.c.l.s4 1934713408
    %v2183 = vunpack.c.0.s8 %v2182
    %v2184 = vlaneseq
    %v2185 = vshrl.u32 %v2184, 7
    %v2186 = vsub.s32 %v2183, %v2185
    %v2187 = vrot.slane %v2173, %v2186
    %v2188 = vcombine.low %v2164, %v2180
    %v2189 = vcombine.high %v2164, %v2180
    %v2190 = vcombine.low %v2171, %v2187
    %v2191 = vcombine.high %v2171, %v2187
    %v2192 = vcombine.low %v2096, %v2103
    %v2194 = vunpack.c.l.s4 1983009808
    %v2195 = vunpack.c.0.s8 %v2194
    %v2196 = vlaneseq
    %v2197 = vshrl.u32 %v2196, 7
    %v2198 = vsub.s32 %v2195, %v2197
    %v2199 = vrot.slane %v2192, %v2198
    %v2200 = vcombine.low %v2120, %v2121
    %v2202 = vunpack.c.l.s4 1983009808
    %v2203 = vunpack.c.0.s8 %v2202
    %v2204 = vlaneseq
    %v2205 = vshrl.u32 %v2204, 7
    %v2206 = vsub.s32 %v2203, %v2205
    %v2207 = vrot.slane %v2200, %v2206
    %v2208 = vcombine.low %v2112, %v2119
    %v2210 = vunpack.c.l.s4 1983009808
    %v2211 = vunpack.c.0.s8 %v2210
    %v2212 = vlaneseq
    %v2213 = vshrl.u32 %v2212, 7
    %v2214 = vsub.s32 %v2211, %v2213
    %v2215 = vrot.slane %v2208, %v2214
    %v2216 = vcombine.low %v2122, %v2123
    %v2218 = vunpack.c.l.s4 1983009808
    %v2219 = vunpack.c.0.s8 %v2218
    %v2220 = vlaneseq
    %v2221 = vshrl.u32 %v2220, 7
    %v2222 = vsub.s32 %v2219, %v2221
    %v2223 = vrot.slane %v2216, %v2222
    %v2224 = vcombine.low %v2199, %v2207
    %v2225 = vcombine.high %v2199, %v2207
    %v2227 = vunpack.c.l.s4 1934713408
    %v2228 = vunpack.c.0.s8 %v2227
    %v2229 = vlaneseq
    %v2230 = vshrl.u32 %v2229, 7
    %v2231 = vsub.s32 %v2228, %v2230
    %v2232 = vrot.slane %v2224, %v2231
    %v2234 = vunpack.c.l.s4 1934713408
    %v2235 = vunpack.c.0.s8 %v2234
    %v2236 = vlaneseq
    %v2237 = vshrl.u32 %v2236, 7
    %v2238 = vsub.s32 %v2235, %v2237
    %v2239 = vrot.slane %v2225, %v2238
    %v2240 = vcombine.low %v2215, %v2223
    %v2241 = vcombine.high %v2215, %v2223
    %v2243 = vunpack.c.l.s4 1934713408
    %v2244 = vunpack.c.0.s8 %v2243
    %v2245 = vlaneseq
    %v2246 = vshrl.u32 %v2245, 7
    %v2247 = vsub.s32 %v2244, %v2246
    %v2248 = vrot.slane %v2240, %v2247
    %v2250 = vunpack.c.l.s4 1934713408
    %v2251 = vunpack.c.0.s8 %v2250
    %v2252 = vlaneseq
    %v2253 = vshrl.u32 %v2252, 7
    %v2254 = vsub.s32 %v2251, %v2253
    %v2255 = vrot.slane %v2241, %v2254
    %v2256 = vcombine.low %v2232, %v2248
    %v2257 = vcombine.high %v2232, %v2248
    %v2258 = vcombine.low %v2239, %v2255
    %v2259 = vcombine.high %v2239, %v2255
    %2262 = vrot.lane.b32.xlu0 %v2189, 32
    %v2263 = vpop.permute.xlu0 %2262
    %2264 = vrot.lane.b32.xlu0 %v2257, 32
    %v2265 = vpop.permute.xlu0 %2264
    %2270 = vrot.lane.b32.xlu0 %v2190, 64
    %v2271 = vpop.permute.xlu0 %2270
    %2272 = vrot.lane.b32.xlu0 %v2258, 64
    %v2273 = vpop.permute.xlu0 %2272
    %2278 = vrot.lane.b32.xlu0 %v2191, 96
    %v2279 = vpop.permute.xlu0 %2278
    %2280 = vrot.lane.b32.xlu0 %v2259, 96
    %v2281 = vpop.permute.xlu0 %2280
    %v2284 = vsel %vm1522, %v2188, %v2263
    %v2285 = vsel %vm1522, %v2256, %v2265
    %vm2286 = vcmask 523264
    %v2287 = vsel %vm2286, %v2284, %v2271
    %v2288 = vsel %vm2286, %v2285, %v2273
    %vm2289 = vcmask 785408
    %v2290 = vsel %vm2289, %v2287, %v2279
    %v2291 = vsel %vm2289, %v2288, %v2281
    %2294 = vrot.lane.b32.xlu0 %v388, 96
    %v2295 = vpop.permute.xlu0 %2294
    %2296 = vrot.lane.b32.xlu0 %v391, 96
    %v2297 = vpop.permute.xlu0 %2296
    %2300 = vrot.lane.b32.xlu0 %v388, 64
    %v2301 = vpop.permute.xlu0 %2300
    %2302 = vrot.lane.b32.xlu0 %v391, 64
    %v2303 = vpop.permute.xlu0 %2302
    %2306 = vrot.lane.b32.xlu0 %v388, 32
    %v2307 = vpop.permute.xlu0 %2306
    %2308 = vrot.lane.b32.xlu0 %v391, 32
    %v2309 = vpop.permute.xlu0 %2308
    %v2312 = vcombine.low %v388, %v2301
    %v2313 = vcombine.high %v388, %v2301
    %v2315 = vunpack.c.l.s4 1983009808
    %v2316 = vunpack.c.0.s8 %v2315
    %v2317 = vlaneseq
    %v2318 = vshrl.u32 %v2317, 7
    %v2319 = vsub.s32 %v2316, %v2318
    %v2320 = vrot.slane %v2312, %v2319
    %v2322 = vunpack.c.l.s4 1983009808
    %v2323 = vunpack.c.0.s8 %v2322
    %v2324 = vlaneseq
    %v2325 = vshrl.u32 %v2324, 7
    %v2326 = vsub.s32 %v2323, %v2325
    %v2327 = vrot.slane %v2313, %v2326
    %v2328 = vcombine.low %v2295, %v2307
    %v2329 = vcombine.high %v2295, %v2307
    %v2331 = vunpack.c.l.s4 1983009808
    %v2332 = vunpack.c.0.s8 %v2331
    %v2333 = vlaneseq
    %v2334 = vshrl.u32 %v2333, 7
    %v2335 = vsub.s32 %v2332, %v2334
    %v2336 = vrot.slane %v2328, %v2335
    %v2338 = vunpack.c.l.s4 1983009808
    %v2339 = vunpack.c.0.s8 %v2338
    %v2340 = vlaneseq
    %v2341 = vshrl.u32 %v2340, 7
    %v2342 = vsub.s32 %v2339, %v2341
    %v2343 = vrot.slane %v2329, %v2342
    %v2344 = vcombine.low %v2320, %v2336
    %v2345 = vcombine.high %v2320, %v2336
    %v2347 = vunpack.c.l.s4 1934713408
    %v2348 = vunpack.c.0.s8 %v2347
    %v2349 = vlaneseq
    %v2350 = vshrl.u32 %v2349, 7
    %v2351 = vsub.s32 %v2348, %v2350
    %v2352 = vrot.slane %v2344, %v2351
    %v2354 = vunpack.c.l.s4 1934713408
    %v2355 = vunpack.c.0.s8 %v2354
    %v2356 = vlaneseq
    %v2357 = vshrl.u32 %v2356, 7
    %v2358 = vsub.s32 %v2355, %v2357
    %v2359 = vrot.slane %v2345, %v2358
    %v2360 = vcombine.low %v2327, %v2343
    %v2361 = vcombine.high %v2327, %v2343
    %v2363 = vunpack.c.l.s4 1934713408
    %v2364 = vunpack.c.0.s8 %v2363
    %v2365 = vlaneseq
    %v2366 = vshrl.u32 %v2365, 7
    %v2367 = vsub.s32 %v2364, %v2366
    %v2368 = vrot.slane %v2360, %v2367
    %v2370 = vunpack.c.l.s4 1934713408
    %v2371 = vunpack.c.0.s8 %v2370
    %v2372 = vlaneseq
    %v2373 = vshrl.u32 %v2372, 7
    %v2374 = vsub.s32 %v2371, %v2373
    %v2375 = vrot.slane %v2361, %v2374
    %v2376 = vcombine.high %v2352, 0.0
    %v2377 = vcombine.high %v2359, 0.0
    %v2378 = vcombine.high %v2368, 0.0
    %v2379 = vcombine.high %v2375, 0.0
    %v2380 = vcombine.low %v391, %v2303
    %v2381 = vcombine.high %v391, %v2303
    %v2383 = vunpack.c.l.s4 1983009808
    %v2384 = vunpack.c.0.s8 %v2383
    %v2385 = vlaneseq
    %v2386 = vshrl.u32 %v2385, 7
    %v2387 = vsub.s32 %v2384, %v2386
    %v2388 = vrot.slane %v2380, %v2387
    %v2390 = vunpack.c.l.s4 1983009808
    %v2391 = vunpack.c.0.s8 %v2390
    %v2392 = vlaneseq
    %v2393 = vshrl.u32 %v2392, 7
    %v2394 = vsub.s32 %v2391, %v2393
    %v2395 = vrot.slane %v2381, %v2394
    %v2396 = vcombine.low %v2297, %v2309
    %v2397 = vcombine.high %v2297, %v2309
    %v2399 = vunpack.c.l.s4 1983009808
    %v2400 = vunpack.c.0.s8 %v2399
    %v2401 = vlaneseq
    %v2402 = vshrl.u32 %v2401, 7
    %v2403 = vsub.s32 %v2400, %v2402
    %v2404 = vrot.slane %v2396, %v2403
    %v2406 = vunpack.c.l.s4 1983009808
    %v2407 = vunpack.c.0.s8 %v2406
    %v2408 = vlaneseq
    %v2409 = vshrl.u32 %v2408, 7
    %v2410 = vsub.s32 %v2407, %v2409
    %v2411 = vrot.slane %v2397, %v2410
    %v2412 = vcombine.low %v2388, %v2404
    %v2413 = vcombine.high %v2388, %v2404
    %v2415 = vunpack.c.l.s4 1934713408
    %v2416 = vunpack.c.0.s8 %v2415
    %v2417 = vlaneseq
    %v2418 = vshrl.u32 %v2417, 7
    %v2419 = vsub.s32 %v2416, %v2418
    %v2420 = vrot.slane %v2412, %v2419
    %v2422 = vunpack.c.l.s4 1934713408
    %v2423 = vunpack.c.0.s8 %v2422
    %v2424 = vlaneseq
    %v2425 = vshrl.u32 %v2424, 7
    %v2426 = vsub.s32 %v2423, %v2425
    %v2427 = vrot.slane %v2413, %v2426
    %v2428 = vcombine.low %v2395, %v2411
    %v2429 = vcombine.high %v2395, %v2411
    %v2431 = vunpack.c.l.s4 1934713408
    %v2432 = vunpack.c.0.s8 %v2431
    %v2433 = vlaneseq
    %v2434 = vshrl.u32 %v2433, 7
    %v2435 = vsub.s32 %v2432, %v2434
    %v2436 = vrot.slane %v2428, %v2435
    %v2438 = vunpack.c.l.s4 1934713408
    %v2439 = vunpack.c.0.s8 %v2438
    %v2440 = vlaneseq
    %v2441 = vshrl.u32 %v2440, 7
    %v2442 = vsub.s32 %v2439, %v2441
    %v2443 = vrot.slane %v2429, %v2442
    %v2444 = vcombine.high %v2420, 0.0
    %v2445 = vcombine.high %v2427, 0.0
    %v2446 = vcombine.high %v2436, 0.0
    %v2447 = vcombine.high %v2443, 0.0
    %v2448 = vcombine.low %v2352, %v2359
    %v2450 = vunpack.c.l.s4 1983009808
    %v2451 = vunpack.c.0.s8 %v2450
    %v2452 = vlaneseq
    %v2453 = vshrl.u32 %v2452, 7
    %v2454 = vsub.s32 %v2451, %v2453
    %v2455 = vrot.slane %v2448, %v2454
    %v2456 = vcombine.low %v2376, %v2377
    %v2458 = vunpack.c.l.s4 1983009808
    %v2459 = vunpack.c.0.s8 %v2458
    %v2460 = vlaneseq
    %v2461 = vshrl.u32 %v2460, 7
    %v2462 = vsub.s32 %v2459, %v2461
    %v2463 = vrot.slane %v2456, %v2462
    %v2464 = vcombine.low %v2368, %v2375
    %v2466 = vunpack.c.l.s4 1983009808
    %v2467 = vunpack.c.0.s8 %v2466
    %v2468 = vlaneseq
    %v2469 = vshrl.u32 %v2468, 7
    %v2470 = vsub.s32 %v2467, %v2469
    %v2471 = vrot.slane %v2464, %v2470
    %v2472 = vcombine.low %v2378, %v2379
    %v2474 = vunpack.c.l.s4 1983009808
    %v2475 = vunpack.c.0.s8 %v2474
    %v2476 = vlaneseq
    %v2477 = vshrl.u32 %v2476, 7
    %v2478 = vsub.s32 %v2475, %v2477
    %v2479 = vrot.slane %v2472, %v2478
    %v2480 = vcombine.low %v2455, %v2463
    %v2481 = vcombine.high %v2455, %v2463
    %v2483 = vunpack.c.l.s4 1934713408
    %v2484 = vunpack.c.0.s8 %v2483
    %v2485 = vlaneseq
    %v2486 = vshrl.u32 %v2485, 7
    %v2487 = vsub.s32 %v2484, %v2486
    %v2488 = vrot.slane %v2480, %v2487
    %v2490 = vunpack.c.l.s4 1934713408
    %v2491 = vunpack.c.0.s8 %v2490
    %v2492 = vlaneseq
    %v2493 = vshrl.u32 %v2492, 7
    %v2494 = vsub.s32 %v2491, %v2493
    %v2495 = vrot.slane %v2481, %v2494
    %v2496 = vcombine.low %v2471, %v2479
    %v2497 = vcombine.high %v2471, %v2479
    %v2499 = vunpack.c.l.s4 1934713408
    %v2500 = vunpack.c.0.s8 %v2499
    %v2501 = vlaneseq
    %v2502 = vshrl.u32 %v2501, 7
    %v2503 = vsub.s32 %v2500, %v2502
    %v2504 = vrot.slane %v2496, %v2503
    %v2506 = vunpack.c.l.s4 1934713408
    %v2507 = vunpack.c.0.s8 %v2506
    %v2508 = vlaneseq
    %v2509 = vshrl.u32 %v2508, 7
    %v2510 = vsub.s32 %v2507, %v2509
    %v2511 = vrot.slane %v2497, %v2510
    %v2512 = vcombine.low %v2488, %v2504
    %v2513 = vcombine.high %v2488, %v2504
    %v2514 = vcombine.low %v2495, %v2511
    %v2515 = vcombine.high %v2495, %v2511
    %v2516 = vcombine.low %v2420, %v2427
    %v2518 = vunpack.c.l.s4 1983009808
    %v2519 = vunpack.c.0.s8 %v2518
    %v2520 = vlaneseq
    %v2521 = vshrl.u32 %v2520, 7
    %v2522 = vsub.s32 %v2519, %v2521
    %v2523 = vrot.slane %v2516, %v2522
    %v2524 = vcombine.low %v2444, %v2445
    %v2526 = vunpack.c.l.s4 1983009808
    %v2527 = vunpack.c.0.s8 %v2526
    %v2528 = vlaneseq
    %v2529 = vshrl.u32 %v2528, 7
    %v2530 = vsub.s32 %v2527, %v2529
    %v2531 = vrot.slane %v2524, %v2530
    %v2532 = vcombine.low %v2436, %v2443
    %v2534 = vunpack.c.l.s4 1983009808
    %v2535 = vunpack.c.0.s8 %v2534
    %v2536 = vlaneseq
    %v2537 = vshrl.u32 %v2536, 7
    %v2538 = vsub.s32 %v2535, %v2537
    %v2539 = vrot.slane %v2532, %v2538
    %v2540 = vcombine.low %v2446, %v2447
    %v2542 = vunpack.c.l.s4 1983009808
    %v2543 = vunpack.c.0.s8 %v2542
    %v2544 = vlaneseq
    %v2545 = vshrl.u32 %v2544, 7
    %v2546 = vsub.s32 %v2543, %v2545
    %v2547 = vrot.slane %v2540, %v2546
    %v2548 = vcombine.low %v2523, %v2531
    %v2549 = vcombine.high %v2523, %v2531
    %v2551 = vunpack.c.l.s4 1934713408
    %v2552 = vunpack.c.0.s8 %v2551
    %v2553 = vlaneseq
    %v2554 = vshrl.u32 %v2553, 7
    %v2555 = vsub.s32 %v2552, %v2554
    %v2556 = vrot.slane %v2548, %v2555
    %v2558 = vunpack.c.l.s4 1934713408
    %v2559 = vunpack.c.0.s8 %v2558
    %v2560 = vlaneseq
    %v2561 = vshrl.u32 %v2560, 7
    %v2562 = vsub.s32 %v2559, %v2561
    %v2563 = vrot.slane %v2549, %v2562
    %v2564 = vcombine.low %v2539, %v2547
    %v2565 = vcombine.high %v2539, %v2547
    %v2567 = vunpack.c.l.s4 1934713408
    %v2568 = vunpack.c.0.s8 %v2567
    %v2569 = vlaneseq
    %v2570 = vshrl.u32 %v2569, 7
    %v2571 = vsub.s32 %v2568, %v2570
    %v2572 = vrot.slane %v2564, %v2571
    %v2574 = vunpack.c.l.s4 1934713408
    %v2575 = vunpack.c.0.s8 %v2574
    %v2576 = vlaneseq
    %v2577 = vshrl.u32 %v2576, 7
    %v2578 = vsub.s32 %v2575, %v2577
    %v2579 = vrot.slane %v2565, %v2578
    %v2580 = vcombine.low %v2556, %v2572
    %v2581 = vcombine.high %v2556, %v2572
    %v2582 = vcombine.low %v2563, %v2579
    %v2583 = vcombine.high %v2563, %v2579
    %v2584 = vpack.c.bf16 %v2580, %v2512
    %v2585 = vpack.c.bf16 %v2581, %v2513
    %v2586 = vpack.c.bf16 %v2582, %v2514
    %v2587 = vpack.c.bf16 %v2583, %v2515
    %2590 = vrot.lane.b32.xlu0 %v508, 96
    %v2591 = vpop.permute.xlu0 %2590
    %2592 = vrot.lane.b32.xlu0 %v511, 96
    %v2593 = vpop.permute.xlu0 %2592
    %2596 = vrot.lane.b32.xlu0 %v508, 64
    %v2597 = vpop.permute.xlu0 %2596
    %2598 = vrot.lane.b32.xlu0 %v511, 64
    %v2599 = vpop.permute.xlu0 %2598
    %2602 = vrot.lane.b32.xlu0 %v508, 32
    %v2603 = vpop.permute.xlu0 %2602
    %2604 = vrot.lane.b32.xlu0 %v511, 32
    %v2605 = vpop.permute.xlu0 %2604
    %v2608 = vcombine.low %v508, %v2597
    %v2609 = vcombine.high %v508, %v2597
    %v2611 = vunpack.c.l.s4 1983009808
    %v2612 = vunpack.c.0.s8 %v2611
    %v2613 = vlaneseq
    %v2614 = vshrl.u32 %v2613, 7
    %v2615 = vsub.s32 %v2612, %v2614
    %v2616 = vrot.slane %v2608, %v2615
    %v2618 = vunpack.c.l.s4 1983009808
    %v2619 = vunpack.c.0.s8 %v2618
    %v2620 = vlaneseq
    %v2621 = vshrl.u32 %v2620, 7
    %v2622 = vsub.s32 %v2619, %v2621
    %v2623 = vrot.slane %v2609, %v2622
    %v2624 = vcombine.low %v2591, %v2603
    %v2625 = vcombine.high %v2591, %v2603
    %v2627 = vunpack.c.l.s4 1983009808
    %v2628 = vunpack.c.0.s8 %v2627
    %v2629 = vlaneseq
    %v2630 = vshrl.u32 %v2629, 7
    %v2631 = vsub.s32 %v2628, %v2630
    %v2632 = vrot.slane %v2624, %v2631
    %v2634 = vunpack.c.l.s4 1983009808
    %v2635 = vunpack.c.0.s8 %v2634
    %v2636 = vlaneseq
    %v2637 = vshrl.u32 %v2636, 7
    %v2638 = vsub.s32 %v2635, %v2637
    %v2639 = vrot.slane %v2625, %v2638
    %v2640 = vcombine.low %v2616, %v2632
    %v2641 = vcombine.high %v2616, %v2632
    %v2643 = vunpack.c.l.s4 1934713408
    %v2644 = vunpack.c.0.s8 %v2643
    %v2645 = vlaneseq
    %v2646 = vshrl.u32 %v2645, 7
    %v2647 = vsub.s32 %v2644, %v2646
    %v2648 = vrot.slane %v2640, %v2647
    %v2650 = vunpack.c.l.s4 1934713408
    %v2651 = vunpack.c.0.s8 %v2650
    %v2652 = vlaneseq
    %v2653 = vshrl.u32 %v2652, 7
    %v2654 = vsub.s32 %v2651, %v2653
    %v2655 = vrot.slane %v2641, %v2654
    %v2656 = vcombine.low %v2623, %v2639
    %v2657 = vcombine.high %v2623, %v2639
    %v2659 = vunpack.c.l.s4 1934713408
    %v2660 = vunpack.c.0.s8 %v2659
    %v2661 = vlaneseq
    %v2662 = vshrl.u32 %v2661, 7
    %v2663 = vsub.s32 %v2660, %v2662
    %v2664 = vrot.slane %v2656, %v2663
    %v2666 = vunpack.c.l.s4 1934713408
    %v2667 = vunpack.c.0.s8 %v2666
    %v2668 = vlaneseq
    %v2669 = vshrl.u32 %v2668, 7
    %v2670 = vsub.s32 %v2667, %v2669
    %v2671 = vrot.slane %v2657, %v2670
    %v2672 = vcombine.high %v2648, 0.0
    %v2673 = vcombine.high %v2655, 0.0
    %v2674 = vcombine.high %v2664, 0.0
    %v2675 = vcombine.high %v2671, 0.0
    %v2676 = vcombine.low %v511, %v2599
    %v2677 = vcombine.high %v511, %v2599
    %v2679 = vunpack.c.l.s4 1983009808
    %v2680 = vunpack.c.0.s8 %v2679
    %v2681 = vlaneseq
    %v2682 = vshrl.u32 %v2681, 7
    %v2683 = vsub.s32 %v2680, %v2682
    %v2684 = vrot.slane %v2676, %v2683
    %v2686 = vunpack.c.l.s4 1983009808
    %v2687 = vunpack.c.0.s8 %v2686
    %v2688 = vlaneseq
    %v2689 = vshrl.u32 %v2688, 7
    %v2690 = vsub.s32 %v2687, %v2689
    %v2691 = vrot.slane %v2677, %v2690
    %v2692 = vcombine.low %v2593, %v2605
    %v2693 = vcombine.high %v2593, %v2605
    %v2695 = vunpack.c.l.s4 1983009808
    %v2696 = vunpack.c.0.s8 %v2695
    %v2697 = vlaneseq
    %v2698 = vshrl.u32 %v2697, 7
    %v2699 = vsub.s32 %v2696, %v2698
    %v2700 = vrot.slane %v2692, %v2699
    %v2702 = vunpack.c.l.s4 1983009808
    %v2703 = vunpack.c.0.s8 %v2702
    %v2704 = vlaneseq
    %v2705 = vshrl.u32 %v2704, 7
    %v2706 = vsub.s32 %v2703, %v2705
    %v2707 = vrot.slane %v2693, %v2706
    %v2708 = vcombine.low %v2684, %v2700
    %v2709 = vcombine.high %v2684, %v2700
    %v2711 = vunpack.c.l.s4 1934713408
    %v2712 = vunpack.c.0.s8 %v2711
    %v2713 = vlaneseq
    %v2714 = vshrl.u32 %v2713, 7
    %v2715 = vsub.s32 %v2712, %v2714
    %v2716 = vrot.slane %v2708, %v2715
    %v2718 = vunpack.c.l.s4 1934713408
    %v2719 = vunpack.c.0.s8 %v2718
    %v2720 = vlaneseq
    %v2721 = vshrl.u32 %v2720, 7
    %v2722 = vsub.s32 %v2719, %v2721
    %v2723 = vrot.slane %v2709, %v2722
    %v2724 = vcombine.low %v2691, %v2707
    %v2725 = vcombine.high %v2691, %v2707
    %v2727 = vunpack.c.l.s4 1934713408
    %v2728 = vunpack.c.0.s8 %v2727
    %v2729 = vlaneseq
    %v2730 = vshrl.u32 %v2729, 7
    %v2731 = vsub.s32 %v2728, %v2730
    %v2732 = vrot.slane %v2724, %v2731
    %v2734 = vunpack.c.l.s4 1934713408
    %v2735 = vunpack.c.0.s8 %v2734
    %v2736 = vlaneseq
    %v2737 = vshrl.u32 %v2736, 7
    %v2738 = vsub.s32 %v2735, %v2737
    %v2739 = vrot.slane %v2725, %v2738
    %v2740 = vcombine.high %v2716, 0.0
    %v2741 = vcombine.high %v2723, 0.0
    %v2742 = vcombine.high %v2732, 0.0
    %v2743 = vcombine.high %v2739, 0.0
    %v2744 = vcombine.low %v2648, %v2655
    %v2746 = vunpack.c.l.s4 1983009808
    %v2747 = vunpack.c.0.s8 %v2746
    %v2748 = vlaneseq
    %v2749 = vshrl.u32 %v2748, 7
    %v2750 = vsub.s32 %v2747, %v2749
    %v2751 = vrot.slane %v2744, %v2750
    %v2752 = vcombine.low %v2672, %v2673
    %v2754 = vunpack.c.l.s4 1983009808
    %v2755 = vunpack.c.0.s8 %v2754
    %v2756 = vlaneseq
    %v2757 = vshrl.u32 %v2756, 7
    %v2758 = vsub.s32 %v2755, %v2757
    %v2759 = vrot.slane %v2752, %v2758
    %v2760 = vcombine.low %v2664, %v2671
    %v2762 = vunpack.c.l.s4 1983009808
    %v2763 = vunpack.c.0.s8 %v2762
    %v2764 = vlaneseq
    %v2765 = vshrl.u32 %v2764, 7
    %v2766 = vsub.s32 %v2763, %v2765
    %v2767 = vrot.slane %v2760, %v2766
    %v2768 = vcombine.low %v2674, %v2675
    %v2770 = vunpack.c.l.s4 1983009808
    %v2771 = vunpack.c.0.s8 %v2770
    %v2772 = vlaneseq
    %v2773 = vshrl.u32 %v2772, 7
    %v2774 = vsub.s32 %v2771, %v2773
    %v2775 = vrot.slane %v2768, %v2774
    %v2776 = vcombine.low %v2751, %v2759
    %v2777 = vcombine.high %v2751, %v2759
    %v2779 = vunpack.c.l.s4 1934713408
    %v2780 = vunpack.c.0.s8 %v2779
    %v2781 = vlaneseq
    %v2782 = vshrl.u32 %v2781, 7
    %v2783 = vsub.s32 %v2780, %v2782
    %v2784 = vrot.slane %v2776, %v2783
    %v2786 = vunpack.c.l.s4 1934713408
    %v2787 = vunpack.c.0.s8 %v2786
    %v2788 = vlaneseq
    %v2789 = vshrl.u32 %v2788, 7
    %v2790 = vsub.s32 %v2787, %v2789
    %v2791 = vrot.slane %v2777, %v2790
    %v2792 = vcombine.low %v2767, %v2775
    %v2793 = vcombine.high %v2767, %v2775
    %v2795 = vunpack.c.l.s4 1934713408
    %v2796 = vunpack.c.0.s8 %v2795
    %v2797 = vlaneseq
    %v2798 = vshrl.u32 %v2797, 7
    %v2799 = vsub.s32 %v2796, %v2798
    %v2800 = vrot.slane %v2792, %v2799
    %v2802 = vunpack.c.l.s4 1934713408
    %v2803 = vunpack.c.0.s8 %v2802
    %v2804 = vlaneseq
    %v2805 = vshrl.u32 %v2804, 7
    %v2806 = vsub.s32 %v2803, %v2805
    %v2807 = vrot.slane %v2793, %v2806
    %v2808 = vcombine.low %v2784, %v2800
    %v2809 = vcombine.high %v2784, %v2800
    %v2810 = vcombine.low %v2791, %v2807
    %v2811 = vcombine.high %v2791, %v2807
    %v2812 = vcombine.low %v2716, %v2723
    %v2814 = vunpack.c.l.s4 1983009808
    %v2815 = vunpack.c.0.s8 %v2814
    %v2816 = vlaneseq
    %v2817 = vshrl.u32 %v2816, 7
    %v2818 = vsub.s32 %v2815, %v2817
    %v2819 = vrot.slane %v2812, %v2818
    %v2820 = vcombine.low %v2740, %v2741
    %v2822 = vunpack.c.l.s4 1983009808
    %v2823 = vunpack.c.0.s8 %v2822
    %v2824 = vlaneseq
    %v2825 = vshrl.u32 %v2824, 7
    %v2826 = vsub.s32 %v2823, %v2825
    %v2827 = vrot.slane %v2820, %v2826
    %v2828 = vcombine.low %v2732, %v2739
    %v2830 = vunpack.c.l.s4 1983009808
    %v2831 = vunpack.c.0.s8 %v2830
    %v2832 = vlaneseq
    %v2833 = vshrl.u32 %v2832, 7
    %v2834 = vsub.s32 %v2831, %v2833
    %v2835 = vrot.slane %v2828, %v2834
    %v2836 = vcombine.low %v2742, %v2743
    %v2838 = vunpack.c.l.s4 1983009808
    %v2839 = vunpack.c.0.s8 %v2838
    %v2840 = vlaneseq
    %v2841 = vshrl.u32 %v2840, 7
    %v2842 = vsub.s32 %v2839, %v2841
    %v2843 = vrot.slane %v2836, %v2842
    %v2844 = vcombine.low %v2819, %v2827
    %v2845 = vcombine.high %v2819, %v2827
    %v2847 = vunpack.c.l.s4 1934713408
    %v2848 = vunpack.c.0.s8 %v2847
    %v2849 = vlaneseq
    %v2850 = vshrl.u32 %v2849, 7
    %v2851 = vsub.s32 %v2848, %v2850
    %v2852 = vrot.slane %v2844, %v2851
    %v2854 = vunpack.c.l.s4 1934713408
    %v2855 = vunpack.c.0.s8 %v2854
    %v2856 = vlaneseq
    %v2857 = vshrl.u32 %v2856, 7
    %v2858 = vsub.s32 %v2855, %v2857
    %v2859 = vrot.slane %v2845, %v2858
    %v2860 = vcombine.low %v2835, %v2843
    %v2861 = vcombine.high %v2835, %v2843
    %v2863 = vunpack.c.l.s4 1934713408
    %v2864 = vunpack.c.0.s8 %v2863
    %v2865 = vlaneseq
    %v2866 = vshrl.u32 %v2865, 7
    %v2867 = vsub.s32 %v2864, %v2866
    %v2868 = vrot.slane %v2860, %v2867
    %v2870 = vunpack.c.l.s4 1934713408
    %v2871 = vunpack.c.0.s8 %v2870
    %v2872 = vlaneseq
    %v2873 = vshrl.u32 %v2872, 7
    %v2874 = vsub.s32 %v2871, %v2873
    %v2875 = vrot.slane %v2861, %v2874
    %v2876 = vcombine.low %v2852, %v2868
    %v2877 = vcombine.high %v2852, %v2868
    %v2878 = vcombine.low %v2859, %v2875
    %v2879 = vcombine.high %v2859, %v2875
    %v2880 = vpack.c.bf16 %v2876, %v2808
    %v2881 = vpack.c.bf16 %v2877, %v2809
    %v2882 = vpack.c.bf16 %v2878, %v2810
    %v2883 = vpack.c.bf16 %v2879, %v2811
    %2886 = vrot.lane.b32.xlu0 %v628, 96
    %v2887 = vpop.permute.xlu0 %2886
    %2888 = vrot.lane.b32.xlu0 %v631, 96
    %v2889 = vpop.permute.xlu0 %2888
    %2892 = vrot.lane.b32.xlu0 %v628, 64
    %v2893 = vpop.permute.xlu0 %2892
    %2894 = vrot.lane.b32.xlu0 %v631, 64
    %v2895 = vpop.permute.xlu0 %2894
    %2898 = vrot.lane.b32.xlu0 %v628, 32
    %v2899 = vpop.permute.xlu0 %2898
    %2900 = vrot.lane.b32.xlu0 %v631, 32
    %v2901 = vpop.permute.xlu0 %2900
    %v2904 = vcombine.low %v628, %v2893
    %v2905 = vcombine.high %v628, %v2893
    %v2907 = vunpack.c.l.s4 1983009808
    %v2908 = vunpack.c.0.s8 %v2907
    %v2909 = vlaneseq
    %v2910 = vshrl.u32 %v2909, 7
    %v2911 = vsub.s32 %v2908, %v2910
    %v2912 = vrot.slane %v2904, %v2911
    %v2914 = vunpack.c.l.s4 1983009808
    %v2915 = vunpack.c.0.s8 %v2914
    %v2916 = vlaneseq
    %v2917 = vshrl.u32 %v2916, 7
    %v2918 = vsub.s32 %v2915, %v2917
    %v2919 = vrot.slane %v2905, %v2918
    %v2920 = vcombine.low %v2887, %v2899
    %v2921 = vcombine.high %v2887, %v2899
    %v2923 = vunpack.c.l.s4 1983009808
    %v2924 = vunpack.c.0.s8 %v2923
    %v2925 = vlaneseq
    %v2926 = vshrl.u32 %v2925, 7
    %v2927 = vsub.s32 %v2924, %v2926
    %v2928 = vrot.slane %v2920, %v2927
    %v2930 = vunpack.c.l.s4 1983009808
    %v2931 = vunpack.c.0.s8 %v2930
    %v2932 = vlaneseq
    %v2933 = vshrl.u32 %v2932, 7
    %v2934 = vsub.s32 %v2931, %v2933
    %v2935 = vrot.slane %v2921, %v2934
    %v2936 = vcombine.low %v2912, %v2928
    %v2937 = vcombine.high %v2912, %v2928
    %v2939 = vunpack.c.l.s4 1934713408
    %v2940 = vunpack.c.0.s8 %v2939
    %v2941 = vlaneseq
    %v2942 = vshrl.u32 %v2941, 7
    %v2943 = vsub.s32 %v2940, %v2942
    %v2944 = vrot.slane %v2936, %v2943
    %v2946 = vunpack.c.l.s4 1934713408
    %v2947 = vunpack.c.0.s8 %v2946
    %v2948 = vlaneseq
    %v2949 = vshrl.u32 %v2948, 7
    %v2950 = vsub.s32 %v2947, %v2949
    %v2951 = vrot.slane %v2937, %v2950
    %v2952 = vcombine.low %v2919, %v2935
    %v2953 = vcombine.high %v2919, %v2935
    %v2955 = vunpack.c.l.s4 1934713408
    %v2956 = vunpack.c.0.s8 %v2955
    %v2957 = vlaneseq
    %v2958 = vshrl.u32 %v2957, 7
    %v2959 = vsub.s32 %v2956, %v2958
    %v2960 = vrot.slane %v2952, %v2959
    %v2962 = vunpack.c.l.s4 1934713408
    %v2963 = vunpack.c.0.s8 %v2962
    %v2964 = vlaneseq
    %v2965 = vshrl.u32 %v2964, 7
    %v2966 = vsub.s32 %v2963, %v2965
    %v2967 = vrot.slane %v2953, %v2966
    %v2968 = vcombine.high %v2944, 0.0
    %v2969 = vcombine.high %v2951, 0.0
    %v2970 = vcombine.high %v2960, 0.0
    %v2971 = vcombine.high %v2967, 0.0
    %v2972 = vcombine.low %v631, %v2895
    %v2973 = vcombine.high %v631, %v2895
    %v2975 = vunpack.c.l.s4 1983009808
    %v2976 = vunpack.c.0.s8 %v2975
    %v2977 = vlaneseq
    %v2978 = vshrl.u32 %v2977, 7
    %v2979 = vsub.s32 %v2976, %v2978
    %v2980 = vrot.slane %v2972, %v2979
    %v2982 = vunpack.c.l.s4 1983009808
    %v2983 = vunpack.c.0.s8 %v2982
    %v2984 = vlaneseq
    %v2985 = vshrl.u32 %v2984, 7
    %v2986 = vsub.s32 %v2983, %v2985
    %v2987 = vrot.slane %v2973, %v2986
    %v2988 = vcombine.low %v2889, %v2901
    %v2989 = vcombine.high %v2889, %v2901
    %v2991 = vunpack.c.l.s4 1983009808
    %v2992 = vunpack.c.0.s8 %v2991
    %v2993 = vlaneseq
    %v2994 = vshrl.u32 %v2993, 7
    %v2995 = vsub.s32 %v2992, %v2994
    %v2996 = vrot.slane %v2988, %v2995
    %v2998 = vunpack.c.l.s4 1983009808
    %v2999 = vunpack.c.0.s8 %v2998
    %v3000 = vlaneseq
    %v3001 = vshrl.u32 %v3000, 7
    %v3002 = vsub.s32 %v2999, %v3001
    %v3003 = vrot.slane %v2989, %v3002
    %v3004 = vcombine.low %v2980, %v2996
    %v3005 = vcombine.high %v2980, %v2996
    %v3007 = vunpack.c.l.s4 1934713408
    %v3008 = vunpack.c.0.s8 %v3007
    %v3009 = vlaneseq
    %v3010 = vshrl.u32 %v3009, 7
    %v3011 = vsub.s32 %v3008, %v3010
    %v3012 = vrot.slane %v3004, %v3011
    %v3014 = vunpack.c.l.s4 1934713408
    %v3015 = vunpack.c.0.s8 %v3014
    %v3016 = vlaneseq
    %v3017 = vshrl.u32 %v3016, 7
    %v3018 = vsub.s32 %v3015, %v3017
    %v3019 = vrot.slane %v3005, %v3018
    %v3020 = vcombine.low %v2987, %v3003
    %v3021 = vcombine.high %v2987, %v3003
    %v3023 = vunpack.c.l.s4 1934713408
    %v3024 = vunpack.c.0.s8 %v3023
    %v3025 = vlaneseq
    %v3026 = vshrl.u32 %v3025, 7
    %v3027 = vsub.s32 %v3024, %v3026
    %v3028 = vrot.slane %v3020, %v3027
    %v3030 = vunpack.c.l.s4 1934713408
    %v3031 = vunpack.c.0.s8 %v3030
    %v3032 = vlaneseq
    %v3033 = vshrl.u32 %v3032, 7
    %v3034 = vsub.s32 %v3031, %v3033
    %v3035 = vrot.slane %v3021, %v3034
    %v3036 = vcombine.high %v3012, 0.0
    %v3037 = vcombine.high %v3019, 0.0
    %v3038 = vcombine.high %v3028, 0.0
    %v3039 = vcombine.high %v3035, 0.0
    %v3040 = vcombine.low %v2944, %v2951
    %v3042 = vunpack.c.l.s4 1983009808
    %v3043 = vunpack.c.0.s8 %v3042
    %v3044 = vlaneseq
    %v3045 = vshrl.u32 %v3044, 7
    %v3046 = vsub.s32 %v3043, %v3045
    %v3047 = vrot.slane %v3040, %v3046
    %v3048 = vcombine.low %v2968, %v2969
    %v3050 = vunpack.c.l.s4 1983009808
    %v3051 = vunpack.c.0.s8 %v3050
    %v3052 = vlaneseq
    %v3053 = vshrl.u32 %v3052, 7
    %v3054 = vsub.s32 %v3051, %v3053
    %v3055 = vrot.slane %v3048, %v3054
    %v3056 = vcombine.low %v2960, %v2967
    %v3058 = vunpack.c.l.s4 1983009808
    %v3059 = vunpack.c.0.s8 %v3058
    %v3060 = vlaneseq
    %v3061 = vshrl.u32 %v3060, 7
    %v3062 = vsub.s32 %v3059, %v3061
    %v3063 = vrot.slane %v3056, %v3062
    %v3064 = vcombine.low %v2970, %v2971
    %v3066 = vunpack.c.l.s4 1983009808
    %v3067 = vunpack.c.0.s8 %v3066
    %v3068 = vlaneseq
    %v3069 = vshrl.u32 %v3068, 7
    %v3070 = vsub.s32 %v3067, %v3069
    %v3071 = vrot.slane %v3064, %v3070
    %v3072 = vcombine.low %v3047, %v3055
    %v3073 = vcombine.high %v3047, %v3055
    %v3075 = vunpack.c.l.s4 1934713408
    %v3076 = vunpack.c.0.s8 %v3075
    %v3077 = vlaneseq
    %v3078 = vshrl.u32 %v3077, 7
    %v3079 = vsub.s32 %v3076, %v3078
    %v3080 = vrot.slane %v3072, %v3079
    %v3082 = vunpack.c.l.s4 1934713408
    %v3083 = vunpack.c.0.s8 %v3082
    %v3084 = vlaneseq
    %v3085 = vshrl.u32 %v3084, 7
    %v3086 = vsub.s32 %v3083, %v3085
    %v3087 = vrot.slane %v3073, %v3086
    %v3088 = vcombine.low %v3063, %v3071
    %v3089 = vcombine.high %v3063, %v3071
    %v3091 = vunpack.c.l.s4 1934713408
    %v3092 = vunpack.c.0.s8 %v3091
    %v3093 = vlaneseq
    %v3094 = vshrl.u32 %v3093, 7
    %v3095 = vsub.s32 %v3092, %v3094
    %v3096 = vrot.slane %v3088, %v3095
    %v3098 = vunpack.c.l.s4 1934713408
    %v3099 = vunpack.c.0.s8 %v3098
    %v3100 = vlaneseq
    %v3101 = vshrl.u32 %v3100, 7
    %v3102 = vsub.s32 %v3099, %v3101
    %v3103 = vrot.slane %v3089, %v3102
    %v3104 = vcombine.low %v3080, %v3096
    %v3105 = vcombine.high %v3080, %v3096
    %v3106 = vcombine.low %v3087, %v3103
    %v3107 = vcombine.high %v3087, %v3103
    %v3108 = vcombine.low %v3012, %v3019
    %v3110 = vunpack.c.l.s4 1983009808
    %v3111 = vunpack.c.0.s8 %v3110
    %v3112 = vlaneseq
    %v3113 = vshrl.u32 %v3112, 7
    %v3114 = vsub.s32 %v3111, %v3113
    %v3115 = vrot.slane %v3108, %v3114
    %v3116 = vcombine.low %v3036, %v3037
    %v3118 = vunpack.c.l.s4 1983009808
    %v3119 = vunpack.c.0.s8 %v3118
    %v3120 = vlaneseq
    %v3121 = vshrl.u32 %v3120, 7
    %v3122 = vsub.s32 %v3119, %v3121
    %v3123 = vrot.slane %v3116, %v3122
    %v3124 = vcombine.low %v3028, %v3035
    %v3126 = vunpack.c.l.s4 1983009808
    %v3127 = vunpack.c.0.s8 %v3126
    %v3128 = vlaneseq
    %v3129 = vshrl.u32 %v3128, 7
    %v3130 = vsub.s32 %v3127, %v3129
    %v3131 = vrot.slane %v3124, %v3130
    %v3132 = vcombine.low %v3038, %v3039
    %v3134 = vunpack.c.l.s4 1983009808
    %v3135 = vunpack.c.0.s8 %v3134
    %v3136 = vlaneseq
    %v3137 = vshrl.u32 %v3136, 7
    %v3138 = vsub.s32 %v3135, %v3137
    %v3139 = vrot.slane %v3132, %v3138
    %v3140 = vcombine.low %v3115, %v3123
    %v3141 = vcombine.high %v3115, %v3123
    %v3143 = vunpack.c.l.s4 1934713408
    %v3144 = vunpack.c.0.s8 %v3143
    %v3145 = vlaneseq
    %v3146 = vshrl.u32 %v3145, 7
    %v3147 = vsub.s32 %v3144, %v3146
    %v3148 = vrot.slane %v3140, %v3147
    %v3150 = vunpack.c.l.s4 1934713408
    %v3151 = vunpack.c.0.s8 %v3150
    %v3152 = vlaneseq
    %v3153 = vshrl.u32 %v3152, 7
    %v3154 = vsub.s32 %v3151, %v3153
    %v3155 = vrot.slane %v3141, %v3154
    %v3156 = vcombine.low %v3131, %v3139
    %v3157 = vcombine.high %v3131, %v3139
    %v3159 = vunpack.c.l.s4 1934713408
    %v3160 = vunpack.c.0.s8 %v3159
    %v3161 = vlaneseq
    %v3162 = vshrl.u32 %v3161, 7
    %v3163 = vsub.s32 %v3160, %v3162
    %v3164 = vrot.slane %v3156, %v3163
    %v3166 = vunpack.c.l.s4 1934713408
    %v3167 = vunpack.c.0.s8 %v3166
    %v3168 = vlaneseq
    %v3169 = vshrl.u32 %v3168, 7
    %v3170 = vsub.s32 %v3167, %v3169
    %v3171 = vrot.slane %v3157, %v3170
    %v3172 = vcombine.low %v3148, %v3164
    %v3173 = vcombine.high %v3148, %v3164
    %v3174 = vcombine.low %v3155, %v3171
    %v3175 = vcombine.high %v3155, %v3171
    %v3176 = vpack.c.bf16 %v3172, %v3104
    %v3177 = vpack.c.bf16 %v3173, %v3105
    %v3178 = vpack.c.bf16 %v3174, %v3106
    %v3179 = vpack.c.bf16 %v3175, %v3107
    %v3181 = vsel %vm1522, %v2584, 0
    %v3184 = vsel %vm1522, %v2880, 0
    %3186 = vmatprep.subr.bf16.mxu0 0
    %3187 = vmatpush1.bf16.xpose.msra.mxu0 %v3184
    %3188 = vmatprep.subr.bf16.mxu0 0
    %3189 = vmatpush1.bf16.xpose.msra.mxu0 0
    %3190 = vmatprep.subr.bf16.mxu0 0
    %3191 = vmatpush1.bf16.xpose.msra.mxu0 0
    %3192 = vmatprep.subr.bf16.mxu0 0
    %3193 = vmatpush1.bf16.xpose.msra.mxu0 0
    %3194 = vmatprep.subr.bf16.mxu0 0
    %3195 = vmatpush1.bf16.xpose.msra.mxu0 0
    %3196 = vmatprep.subr.bf16.mxu0 0
    %3197 = vmatpush1.bf16.xpose.msra.mxu0 0
    %3198 = vmatprep.subr.bf16.mxu0 0
    %3199 = vmatpush1.bf16.xpose.msra.mxu0 0
    %3200 = vmatprep.subr.bf16.mxu0 0
    %3201 = vmatpush1.bf16.xpose.msra.mxu0 0
    %3202 = vmatprep.subr.bf16.mxu0 0
    %3203 = vmatpush1.bf16.xpose.msra.mxu0 0
    %3204 = vmatprep.subr.bf16.mxu0 0
    %3205 = vmatpush1.bf16.xpose.msra.mxu0 0
    %3206 = vmatprep.subr.bf16.mxu0 0
    %3207 = vmatpush1.bf16.xpose.msra.mxu0 0
    %3208 = vmatprep.subr.bf16.mxu0 0
    %3209 = vmatpush1.bf16.xpose.msra.mxu0 0
    %3210 = vmatprep.subr.bf16.mxu0 0
    %3211 = vmatpush1.bf16.xpose.msra.mxu0 0
    %3212 = vmatprep.subr.bf16.mxu0 0
    %3213 = vmatpush1.bf16.xpose.msra.mxu0 0
    %3214 = vmatprep.subr.bf16.mxu0 0
    %3215 = vmatpush1.bf16.xpose.msra.mxu0 0
    %3216 = vmatprep.subr.bf16.mxu0 0
    %3217 = vmatpush1.bf16.xpose.msra.mxu0 0
    %3218 = vmatprep.mubr.bf16.mxu0 0
    %3219 = vmatmul.mubr.bf16.gmra.mrb[0].mxu0 %v3181
    %v3220 = vpop.f32.mrb[0].mxu0
    %v3221 = vadd.f32 0.0, %v3220
    %v3222 = vpop.f32.mrb[0].mxu0
    %v3223 = vpop.f32.mrb[0].mxu0
    %v3224 = vadd.f32 0.0, %v3223
    %v3225 = vpop.f32.mrb[0].mxu0
    %3226 = vdwg.mxu0
    %v3228 = vsel %vm1522, %v2585, 0
    %v3231 = vsel %vm1522, %v2881, 0
    %3233 = vmatprep.subr.bf16.mxu0 0
    %3234 = vmatpush1.bf16.xpose.msra.mxu0 %v3231
    %3235 = vmatprep.subr.bf16.mxu0 0
    %3236 = vmatpush1.bf16.xpose.msra.mxu0 0
    %3237 = vmatprep.subr.bf16.mxu0 0
    %3238 = vmatpush1.bf16.xpose.msra.mxu0 0
    %3239 = vmatprep.subr.bf16.mxu0 0
    %3240 = vmatpush1.bf16.xpose.msra.mxu0 0
    %3241 = vmatprep.subr.bf16.mxu0 0
    %3242 = vmatpush1.bf16.xpose.msra.mxu0 0
    %3243 = vmatprep.subr.bf16.mxu0 0
    %3244 = vmatpush1.bf16.xpose.msra.mxu0 0
    %3245 = vmatprep.subr.bf16.mxu0 0
    %3246 = vmatpush1.bf16.xpose.msra.mxu0 0
    %3247 = vmatprep.subr.bf16.mxu0 0
    %3248 = vmatpush1.bf16.xpose.msra.mxu0 0
    %3249 = vmatprep.subr.bf16.mxu0 0
    %3250 = vmatpush1.bf16.xpose.msra.mxu0 0
    %3251 = vmatprep.subr.bf16.mxu0 0
    %3252 = vmatpush1.bf16.xpose.msra.mxu0 0
    %3253 = vmatprep.subr.bf16.mxu0 0
    %3254 = vmatpush1.bf16.xpose.msra.mxu0 0
    %3255 = vmatprep.subr.bf16.mxu0 0
    %3256 = vmatpush1.bf16.xpose.msra.mxu0 0
    %3257 = vmatprep.subr.bf16.mxu0 0
    %3258 = vmatpush1.bf16.xpose.msra.mxu0 0
    %3259 = vmatprep.subr.bf16.mxu0 0
    %3260 = vmatpush1.bf16.xpose.msra.mxu0 0
    %3261 = vmatprep.subr.bf16.mxu0 0
    %3262 = vmatpush1.bf16.xpose.msra.mxu0 0
    %3263 = vmatprep.subr.bf16.mxu0 0
    %3264 = vmatpush1.bf16.xpose.msra.mxu0 0
    %3265 = vmatprep.mubr.bf16.mxu0 0
    %3266 = vmatmul.mubr.bf16.gmra.mrb[0].mxu0 %v3228
    %v3267 = vpop.f32.mrb[0].mxu0
    %v3268 = vadd.f32 0.0, %v3267
    %v3269 = vpop.f32.mrb[0].mxu0
    %v3270 = vpop.f32.mrb[0].mxu0
    %v3271 = vadd.f32 0.0, %v3270
    %v3272 = vpop.f32.mrb[0].mxu0
    %3273 = vdwg.mxu0
    %v3275 = vsel %vm1522, %v2586, 0
    %v3278 = vsel %vm1522, %v2882, 0
    %3280 = vmatprep.subr.bf16.mxu0 0
    %3281 = vmatpush1.bf16.xpose.msra.mxu0 %v3278
    %3282 = vmatprep.subr.bf16.mxu0 0
    %3283 = vmatpush1.bf16.xpose.msra.mxu0 0
    %3284 = vmatprep.subr.bf16.mxu0 0
    %3285 = vmatpush1.bf16.xpose.msra.mxu0 0
    %3286 = vmatprep.subr.bf16.mxu0 0
    %3287 = vmatpush1.bf16.xpose.msra.mxu0 0
    %3288 = vmatprep.subr.bf16.mxu0 0
    %3289 = vmatpush1.bf16.xpose.msra.mxu0 0
    %3290 = vmatprep.subr.bf16.mxu0 0
    %3291 = vmatpush1.bf16.xpose.msra.mxu0 0
    %3292 = vmatprep.subr.bf16.mxu0 0
    %3293 = vmatpush1.bf16.xpose.msra.mxu0 0
    %3294 = vmatprep.subr.bf16.mxu0 0
    %3295 = vmatpush1.bf16.xpose.msra.mxu0 0
    %3296 = vmatprep.subr.bf16.mxu0 0
    %3297 = vmatpush1.bf16.xpose.msra.mxu0 0
    %3298 = vmatprep.subr.bf16.mxu0 0
    %3299 = vmatpush1.bf16.xpose.msra.mxu0 0
    %3300 = vmatprep.subr.bf16.mxu0 0
    %3301 = vmatpush1.bf16.xpose.msra.mxu0 0
    %3302 = vmatprep.subr.bf16.mxu0 0
    %3303 = vmatpush1.bf16.xpose.msra.mxu0 0
    %3304 = vmatprep.subr.bf16.mxu0 0
    %3305 = vmatpush1.bf16.xpose.msra.mxu0 0
    %3306 = vmatprep.subr.bf16.mxu0 0
    %3307 = vmatpush1.bf16.xpose.msra.mxu0 0
    %3308 = vmatprep.subr.bf16.mxu0 0
    %3309 = vmatpush1.bf16.xpose.msra.mxu0 0
    %3310 = vmatprep.subr.bf16.mxu0 0
    %3311 = vmatpush1.bf16.xpose.msra.mxu0 0
    %3312 = vmatprep.mubr.bf16.mxu0 0
    %3313 = vmatmul.mubr.bf16.gmra.mrb[0].mxu0 %v3275
    %v3314 = vpop.f32.mrb[0].mxu0
    %v3315 = vadd.f32 0.0, %v3314
    %v3316 = vpop.f32.mrb[0].mxu0
    %v3317 = vpop.f32.mrb[0].mxu0
    %v3318 = vadd.f32 0.0, %v3317
    %v3319 = vpop.f32.mrb[0].mxu0
    %3320 = vdwg.mxu0
    %v3322 = vsel %vm1522, %v2587, 0
    %v3325 = vsel %vm1522, %v2883, 0
    %3327 = vmatprep.subr.bf16.mxu0 0
    %3328 = vmatpush1.bf16.xpose.msra.mxu0 %v3325
    %3329 = vmatprep.subr.bf16.mxu0 0
    %3330 = vmatpush1.bf16.xpose.msra.mxu0 0
    %3331 = vmatprep.subr.bf16.mxu0 0
    %3332 = vmatpush1.bf16.xpose.msra.mxu0 0
    %3333 = vmatprep.subr.bf16.mxu0 0
    %3334 = vmatpush1.bf16.xpose.msra.mxu0 0
    %3335 = vmatprep.subr.bf16.mxu0 0
    %3336 = vmatpush1.bf16.xpose.msra.mxu0 0
    %3337 = vmatprep.subr.bf16.mxu0 0
    %3338 = vmatpush1.bf16.xpose.msra.mxu0 0
    %3339 = vmatprep.subr.bf16.mxu0 0
    %3340 = vmatpush1.bf16.xpose.msra.mxu0 0
    %3341 = vmatprep.subr.bf16.mxu0 0
    %3342 = vmatpush1.bf16.xpose.msra.mxu0 0
    %3343 = vmatprep.subr.bf16.mxu0 0
    %3344 = vmatpush1.bf16.xpose.msra.mxu0 0
    %3345 = vmatprep.subr.bf16.mxu0 0
    %3346 = vmatpush1.bf16.xpose.msra.mxu0 0
    %3347 = vmatprep.subr.bf16.mxu0 0
    %3348 = vmatpush1.bf16.xpose.msra.mxu0 0
    %3349 = vmatprep.subr.bf16.mxu0 0
    %3350 = vmatpush1.bf16.xpose.msra.mxu0 0
    %3351 = vmatprep.subr.bf16.mxu0 0
    %3352 = vmatpush1.bf16.xpose.msra.mxu0 0
    %3353 = vmatprep.subr.bf16.mxu0 0
    %3354 = vmatpush1.bf16.xpose.msra.mxu0 0
    %3355 = vmatprep.subr.bf16.mxu0 0
    %3356 = vmatpush1.bf16.xpose.msra.mxu0 0
    %3357 = vmatprep.subr.bf16.mxu0 0
    %3358 = vmatpush1.bf16.xpose.msra.mxu0 0
    %3359 = vmatprep.mubr.bf16.mxu0 0
    %3360 = vmatmul.mubr.bf16.gmra.mrb[0].mxu0 %v3322
    %v3361 = vpop.f32.mrb[0].mxu0
    %v3362 = vadd.f32 0.0, %v3361
    %v3363 = vpop.f32.mrb[0].mxu0
    %v3364 = vpop.f32.mrb[0].mxu0
    %v3365 = vadd.f32 0.0, %v3364
    %v3366 = vpop.f32.mrb[0].mxu0
    %3367 = vdwg.mxu0
    %v3368 = vmul.f32 %v3221, 0.17677669
    %v3369 = vmul.f32 %v3224, 0.17677669
    %v3370 = vmul.f32 %v3268, 0.17677669
    %v3371 = vmul.f32 %v3271, 0.17677669
    %v3372 = vmul.f32 %v3315, 0.17677669
    %v3373 = vmul.f32 %v3318, 0.17677669
    %v3374 = vmul.f32 %v3362, 0.17677669
    %v3375 = vmul.f32 %v3365, 0.17677669
    %v3376 = vsel %vm1719, %v3368, -inf
    %3377 = vmax.xlane.f32.xlu0 %v3376
    %v3378 = vpop.xlane.xlu0 %3377
    %v3379 = vsel %vm1719, %v3369, -inf
    %3380 = vmax.xlane.f32.xlu0 %v3379
    %v3381 = vpop.xlane.xlu0 %3380
    %v3382 = vsel %vm1719, %v3370, -inf
    %3383 = vmax.xlane.f32.xlu0 %v3382
    %v3384 = vpop.xlane.xlu0 %3383
    %v3385 = vsel %vm1719, %v3371, -inf
    %3386 = vmax.xlane.f32.xlu0 %v3385
    %v3387 = vpop.xlane.xlu0 %3386
    %v3388 = vsel %vm1719, %v3372, -inf
    %3389 = vmax.xlane.f32.xlu0 %v3388
    %v3390 = vpop.xlane.xlu0 %3389
    %v3391 = vsel %vm1719, %v3373, -inf
    %3392 = vmax.xlane.f32.xlu0 %v3391
    %v3393 = vpop.xlane.xlu0 %3392
    %v3394 = vsel %vm1719, %v3374, -inf
    %3395 = vmax.xlane.f32.xlu0 %v3394
    %v3396 = vpop.xlane.xlu0 %3395
    %v3397 = vsel %vm1719, %v3375, -inf
    %3398 = vmax.xlane.f32.xlu0 %v3397
    %v3399 = vpop.xlane.xlu0 %3398
    %v3400 = vsub.f32 %v3368, %v3378
    %v3401 = vsub.f32 %v3369, %v3381
    %v3402 = vsub.f32 %v3370, %v3384
    %v3403 = vsub.f32 %v3371, %v3387
    %v3404 = vsub.f32 %v3372, %v3390
    %v3405 = vsub.f32 %v3373, %v3393
    %v3406 = vsub.f32 %v3374, %v3396
    %v3407 = vsub.f32 %v3375, %v3399
    %v3408 = vmul.f32 %v3400, 1.442695
    %v3409 = vpow.pop %v3408
    %v3410 = vmul.f32 %v3401, 1.442695
    %v3411 = vpow.pop %v3410
    %v3412 = vmul.f32 %v3402, 1.442695
    %v3413 = vpow.pop %v3412
    %v3414 = vmul.f32 %v3403, 1.442695
    %v3415 = vpow.pop %v3414
    %v3416 = vmul.f32 %v3404, 1.442695
    %v3417 = vpow.pop %v3416
    %v3418 = vmul.f32 %v3405, 1.442695
    %v3419 = vpow.pop %v3418
    %v3420 = vmul.f32 %v3406, 1.442695
    %v3421 = vpow.pop %v3420
    %v3422 = vmul.f32 %v3407, 1.442695
    %v3423 = vpow.pop %v3422
    %v3424 = vsel %vm1719, %v3409, 0.0
    %3425 = vadd.xlane.f32.xlu0 %v3424
    %v3426 = vpop.xlane.xlu0 %3425
    %v3427 = vsel %vm1719, %v3411, 0.0
    %3428 = vadd.xlane.f32.xlu0 %v3427
    %v3429 = vpop.xlane.xlu0 %3428
    %v3430 = vsel %vm1719, %v3413, 0.0
    %3431 = vadd.xlane.f32.xlu0 %v3430
    %v3432 = vpop.xlane.xlu0 %3431
    %v3433 = vsel %vm1719, %v3415, 0.0
    %3434 = vadd.xlane.f32.xlu0 %v3433
    %v3435 = vpop.xlane.xlu0 %3434
    %v3436 = vsel %vm1719, %v3417, 0.0
    %3437 = vadd.xlane.f32.xlu0 %v3436
    %v3438 = vpop.xlane.xlu0 %3437
    %v3439 = vsel %vm1719, %v3419, 0.0
    %3440 = vadd.xlane.f32.xlu0 %v3439
    %v3441 = vpop.xlane.xlu0 %3440
    %v3442 = vsel %vm1719, %v3421, 0.0
    %3443 = vadd.xlane.f32.xlu0 %v3442
    %v3444 = vpop.xlane.xlu0 %3443
    %v3445 = vsel %vm1719, %v3423, 0.0
    %3446 = vadd.xlane.f32.xlu0 %v3445
    %v3447 = vpop.xlane.xlu0 %3446
    %v3448 = vrcp.pop %v3426
    %v3449 = vrcp.pop %v3429
    %v3450 = vrcp.pop %v3432
    %v3451 = vrcp.pop %v3435
    %v3452 = vrcp.pop %v3438
    %v3453 = vrcp.pop %v3441
    %v3454 = vrcp.pop %v3444
    %v3455 = vrcp.pop %v3447
    %v3456 = vmul.f32 %v3409, %v3448
    %v3457 = vmul.f32 %v3411, %v3449
    %v3458 = vmul.f32 %v3413, %v3450
    %v3459 = vmul.f32 %v3415, %v3451
    %v3460 = vmul.f32 %v3417, %v3452
    %v3461 = vmul.f32 %v3419, %v3453
    %v3462 = vmul.f32 %v3421, %v3454
    %v3463 = vmul.f32 %v3423, %v3455
    %v3464 = vpack.c.bf16 %v3457, %v3456
    %v3465 = vpack.c.bf16 %v3459, %v3458
    %v3466 = vpack.c.bf16 %v3461, %v3460
    %v3467 = vpack.c.bf16 %v3463, %v3462
    %v3469 = vsel %vm1719, %v3464, 0
    %3471 = vmatprep.subr.bf16.mxu0 0
    %3472 = vmatpush1.bf16.msra.mxu0 %v3176
    %3473 = vmatprep.subr.bf16.mxu0 0
    %3474 = vmatpush1.bf16.msra.mxu0 0
    %3475 = vmatprep.subr.bf16.mxu0 0
    %3476 = vmatpush1.bf16.msra.mxu0 0
    %3477 = vmatprep.subr.bf16.mxu0 0
    %3478 = vmatpush1.bf16.msra.mxu0 0
    %3479 = vmatprep.subr.bf16.mxu0 0
    %3480 = vmatpush1.bf16.msra.mxu0 0
    %3481 = vmatprep.subr.bf16.mxu0 0
    %3482 = vmatpush1.bf16.msra.mxu0 0
    %3483 = vmatprep.subr.bf16.mxu0 0
    %3484 = vmatpush1.bf16.msra.mxu0 0
    %3485 = vmatprep.subr.bf16.mxu0 0
    %3486 = vmatpush1.bf16.msra.mxu0 0
    %3487 = vmatprep.subr.bf16.mxu0 0
    %3488 = vmatpush1.bf16.msra.mxu0 0
    %3489 = vmatprep.subr.bf16.mxu0 0
    %3490 = vmatpush1.bf16.msra.mxu0 0
    %3491 = vmatprep.subr.bf16.mxu0 0
    %3492 = vmatpush1.bf16.msra.mxu0 0
    %3493 = vmatprep.subr.bf16.mxu0 0
    %3494 = vmatpush1.bf16.msra.mxu0 0
    %3495 = vmatprep.subr.bf16.mxu0 0
    %3496 = vmatpush1.bf16.msra.mxu0 0
    %3497 = vmatprep.subr.bf16.mxu0 0
    %3498 = vmatpush1.bf16.msra.mxu0 0
    %3499 = vmatprep.subr.bf16.mxu0 0
    %3500 = vmatpush1.bf16.msra.mxu0 0
    %3501 = vmatprep.subr.bf16.mxu0 0
    %3502 = vmatpush1.bf16.msra.mxu0 0
    %3503 = vmatprep.mubr.bf16.mxu0 0
    %3504 = vmatmul.mubr.bf16.gmra.mrb[0].mxu0 %v3469
    %v3505 = vpop.f32.mrb[0].mxu0
    %v3506 = vadd.f32 0.0, %v3505
    %v3507 = vpop.f32.mrb[0].mxu0
    %v3508 = vpop.f32.mrb[0].mxu0
    %v3509 = vadd.f32 0.0, %v3508
    %v3510 = vpop.f32.mrb[0].mxu0
    %3511 = vdwg.mxu0
    %v3513 = vsel %vm1719, %v3465, 0
    %3515 = vmatprep.subr.bf16.mxu0 0
    %3516 = vmatpush1.bf16.msra.mxu0 %v3177
    %3517 = vmatprep.subr.bf16.mxu0 0
    %3518 = vmatpush1.bf16.msra.mxu0 0
    %3519 = vmatprep.subr.bf16.mxu0 0
    %3520 = vmatpush1.bf16.msra.mxu0 0
    %3521 = vmatprep.subr.bf16.mxu0 0
    %3522 = vmatpush1.bf16.msra.mxu0 0
    %3523 = vmatprep.subr.bf16.mxu0 0
    %3524 = vmatpush1.bf16.msra.mxu0 0
    %3525 = vmatprep.subr.bf16.mxu0 0
    %3526 = vmatpush1.bf16.msra.mxu0 0
    %3527 = vmatprep.subr.bf16.mxu0 0
    %3528 = vmatpush1.bf16.msra.mxu0 0
    %3529 = vmatprep.subr.bf16.mxu0 0
    %3530 = vmatpush1.bf16.msra.mxu0 0
    %3531 = vmatprep.subr.bf16.mxu0 0
    %3532 = vmatpush1.bf16.msra.mxu0 0
    %3533 = vmatprep.subr.bf16.mxu0 0
    %3534 = vmatpush1.bf16.msra.mxu0 0
    %3535 = vmatprep.subr.bf16.mxu0 0
    %3536 = vmatpush1.bf16.msra.mxu0 0
    %3537 = vmatprep.subr.bf16.mxu0 0
    %3538 = vmatpush1.bf16.msra.mxu0 0
    %3539 = vmatprep.subr.bf16.mxu0 0
    %3540 = vmatpush1.bf16.msra.mxu0 0
    %3541 = vmatprep.subr.bf16.mxu0 0
    %3542 = vmatpush1.bf16.msra.mxu0 0
    %3543 = vmatprep.subr.bf16.mxu0 0
    %3544 = vmatpush1.bf16.msra.mxu0 0
    %3545 = vmatprep.subr.bf16.mxu0 0
    %3546 = vmatpush1.bf16.msra.mxu0 0
    %3547 = vmatprep.mubr.bf16.mxu0 0
    %3548 = vmatmul.mubr.bf16.gmra.mrb[0].mxu0 %v3513
    %v3549 = vpop.f32.mrb[0].mxu0
    %v3550 = vadd.f32 0.0, %v3549
    %v3551 = vpop.f32.mrb[0].mxu0
    %v3552 = vpop.f32.mrb[0].mxu0
    %v3553 = vadd.f32 0.0, %v3552
    %v3554 = vpop.f32.mrb[0].mxu0
    %3555 = vdwg.mxu0
    %v3557 = vsel %vm1719, %v3466, 0
    %3559 = vmatprep.subr.bf16.mxu0 0
    %3560 = vmatpush1.bf16.msra.mxu0 %v3178
    %3561 = vmatprep.subr.bf16.mxu0 0
    %3562 = vmatpush1.bf16.msra.mxu0 0
    %3563 = vmatprep.subr.bf16.mxu0 0
    %3564 = vmatpush1.bf16.msra.mxu0 0
    %3565 = vmatprep.subr.bf16.mxu0 0
    %3566 = vmatpush1.bf16.msra.mxu0 0
    %3567 = vmatprep.subr.bf16.mxu0 0
    %3568 = vmatpush1.bf16.msra.mxu0 0
    %3569 = vmatprep.subr.bf16.mxu0 0
    %3570 = vmatpush1.bf16.msra.mxu0 0
    %3571 = vmatprep.subr.bf16.mxu0 0
    %3572 = vmatpush1.bf16.msra.mxu0 0
    %3573 = vmatprep.subr.bf16.mxu0 0
    %3574 = vmatpush1.bf16.msra.mxu0 0
    %3575 = vmatprep.subr.bf16.mxu0 0
    %3576 = vmatpush1.bf16.msra.mxu0 0
    %3577 = vmatprep.subr.bf16.mxu0 0
    %3578 = vmatpush1.bf16.msra.mxu0 0
    %3579 = vmatprep.subr.bf16.mxu0 0
    %3580 = vmatpush1.bf16.msra.mxu0 0
    %3581 = vmatprep.subr.bf16.mxu0 0
    %3582 = vmatpush1.bf16.msra.mxu0 0
    %3583 = vmatprep.subr.bf16.mxu0 0
    %3584 = vmatpush1.bf16.msra.mxu0 0
    %3585 = vmatprep.subr.bf16.mxu0 0
    %3586 = vmatpush1.bf16.msra.mxu0 0
    %3587 = vmatprep.subr.bf16.mxu0 0
    %3588 = vmatpush1.bf16.msra.mxu0 0
    %3589 = vmatprep.subr.bf16.mxu0 0
    %3590 = vmatpush1.bf16.msra.mxu0 0
    %3591 = vmatprep.mubr.bf16.mxu0 0
    %3592 = vmatmul.mubr.bf16.gmra.mrb[0].mxu0 %v3557
    %v3593 = vpop.f32.mrb[0].mxu0
    %v3594 = vadd.f32 0.0, %v3593
    %v3595 = vpop.f32.mrb[0].mxu0
    %v3596 = vpop.f32.mrb[0].mxu0
    %v3597 = vadd.f32 0.0, %v3596
    %v3598 = vpop.f32.mrb[0].mxu0
    %3599 = vdwg.mxu0
    %v3601 = vsel %vm1719, %v3467, 0
    %3603 = vmatprep.subr.bf16.mxu0 0
    %3604 = vmatpush1.bf16.msra.mxu0 %v3179
    %3605 = vmatprep.subr.bf16.mxu0 0
    %3606 = vmatpush1.bf16.msra.mxu0 0
    %3607 = vmatprep.subr.bf16.mxu0 0
    %3608 = vmatpush1.bf16.msra.mxu0 0
    %3609 = vmatprep.subr.bf16.mxu0 0
    %3610 = vmatpush1.bf16.msra.mxu0 0
    %3611 = vmatprep.subr.bf16.mxu0 0
    %3612 = vmatpush1.bf16.msra.mxu0 0
    %3613 = vmatprep.subr.bf16.mxu0 0
    %3614 = vmatpush1.bf16.msra.mxu0 0
    %3615 = vmatprep.subr.bf16.mxu0 0
    %3616 = vmatpush1.bf16.msra.mxu0 0
    %3617 = vmatprep.subr.bf16.mxu0 0
    %3618 = vmatpush1.bf16.msra.mxu0 0
    %3619 = vmatprep.subr.bf16.mxu0 0
    %3620 = vmatpush1.bf16.msra.mxu0 0
    %3621 = vmatprep.subr.bf16.mxu0 0
    %3622 = vmatpush1.bf16.msra.mxu0 0
    %3623 = vmatprep.subr.bf16.mxu0 0
    %3624 = vmatpush1.bf16.msra.mxu0 0
    %3625 = vmatprep.subr.bf16.mxu0 0
    %3626 = vmatpush1.bf16.msra.mxu0 0
    %3627 = vmatprep.subr.bf16.mxu0 0
    %3628 = vmatpush1.bf16.msra.mxu0 0
    %3629 = vmatprep.subr.bf16.mxu0 0
    %3630 = vmatpush1.bf16.msra.mxu0 0
    %3631 = vmatprep.subr.bf16.mxu0 0
    %3632 = vmatpush1.bf16.msra.mxu0 0
    %3633 = vmatprep.subr.bf16.mxu0 0
    %3634 = vmatpush1.bf16.msra.mxu0 0
    %3635 = vmatprep.mubr.bf16.mxu0 0
    %3636 = vmatmul.mubr.bf16.gmra.mrb[0].mxu0 %v3601
    %v3637 = vpop.f32.mrb[0].mxu0
    %v3638 = vadd.f32 0.0, %v3637
    %v3639 = vpop.f32.mrb[0].mxu0
    %v3640 = vpop.f32.mrb[0].mxu0
    %v3641 = vadd.f32 0.0, %v3640
    %v3642 = vpop.f32.mrb[0].mxu0
    %3643 = vdwg.mxu0
    %v3644 = vcombine.low %v3506, %v3594
    %v3645 = vcombine.high %v3506, %v3594
    %v3647 = vunpack.c.l.s4 1983009808
    %v3648 = vunpack.c.0.s8 %v3647
    %v3649 = vlaneseq
    %v3650 = vshrl.u32 %v3649, 7
    %v3651 = vsub.s32 %v3648, %v3650
    %v3652 = vrot.slane %v3644, %v3651
    %v3654 = vunpack.c.l.s4 1983009808
    %v3655 = vunpack.c.0.s8 %v3654
    %v3656 = vlaneseq
    %v3657 = vshrl.u32 %v3656, 7
    %v3658 = vsub.s32 %v3655, %v3657
    %v3659 = vrot.slane %v3645, %v3658
    %v3660 = vcombine.low %v3550, %v3638
    %v3661 = vcombine.high %v3550, %v3638
    %v3663 = vunpack.c.l.s4 1983009808
    %v3664 = vunpack.c.0.s8 %v3663
    %v3665 = vlaneseq
    %v3666 = vshrl.u32 %v3665, 7
    %v3667 = vsub.s32 %v3664, %v3666
    %v3668 = vrot.slane %v3660, %v3667
    %v3670 = vunpack.c.l.s4 1983009808
    %v3671 = vunpack.c.0.s8 %v3670
    %v3672 = vlaneseq
    %v3673 = vshrl.u32 %v3672, 7
    %v3674 = vsub.s32 %v3671, %v3673
    %v3675 = vrot.slane %v3661, %v3674
    %v3676 = vcombine.low %v3652, %v3668
    %v3677 = vcombine.high %v3652, %v3668
    %v3679 = vunpack.c.l.s4 1934713408
    %v3680 = vunpack.c.0.s8 %v3679
    %v3681 = vlaneseq
    %v3682 = vshrl.u32 %v3681, 7
    %v3683 = vsub.s32 %v3680, %v3682
    %v3684 = vrot.slane %v3676, %v3683
    %v3686 = vunpack.c.l.s4 1934713408
    %v3687 = vunpack.c.0.s8 %v3686
    %v3688 = vlaneseq
    %v3689 = vshrl.u32 %v3688, 7
    %v3690 = vsub.s32 %v3687, %v3689
    %v3691 = vrot.slane %v3677, %v3690
    %v3692 = vcombine.low %v3659, %v3675
    %v3693 = vcombine.high %v3659, %v3675
    %v3695 = vunpack.c.l.s4 1934713408
    %v3696 = vunpack.c.0.s8 %v3695
    %v3697 = vlaneseq
    %v3698 = vshrl.u32 %v3697, 7
    %v3699 = vsub.s32 %v3696, %v3698
    %v3700 = vrot.slane %v3692, %v3699
    %v3702 = vunpack.c.l.s4 1934713408
    %v3703 = vunpack.c.0.s8 %v3702
    %v3704 = vlaneseq
    %v3705 = vshrl.u32 %v3704, 7
    %v3706 = vsub.s32 %v3703, %v3705
    %v3707 = vrot.slane %v3693, %v3706
    %v3708 = vcombine.high %v3684, 0.0
    %v3709 = vcombine.high %v3691, 0.0
    %v3710 = vcombine.high %v3700, 0.0
    %v3711 = vcombine.high %v3707, 0.0
    %v3712 = vcombine.low %v3509, %v3597
    %v3713 = vcombine.high %v3509, %v3597
    %v3715 = vunpack.c.l.s4 1983009808
    %v3716 = vunpack.c.0.s8 %v3715
    %v3717 = vlaneseq
    %v3718 = vshrl.u32 %v3717, 7
    %v3719 = vsub.s32 %v3716, %v3718
    %v3720 = vrot.slane %v3712, %v3719
    %v3722 = vunpack.c.l.s4 1983009808
    %v3723 = vunpack.c.0.s8 %v3722
    %v3724 = vlaneseq
    %v3725 = vshrl.u32 %v3724, 7
    %v3726 = vsub.s32 %v3723, %v3725
    %v3727 = vrot.slane %v3713, %v3726
    %v3728 = vcombine.low %v3553, %v3641
    %v3729 = vcombine.high %v3553, %v3641
    %v3731 = vunpack.c.l.s4 1983009808
    %v3732 = vunpack.c.0.s8 %v3731
    %v3733 = vlaneseq
    %v3734 = vshrl.u32 %v3733, 7
    %v3735 = vsub.s32 %v3732, %v3734
    %v3736 = vrot.slane %v3728, %v3735
    %v3738 = vunpack.c.l.s4 1983009808
    %v3739 = vunpack.c.0.s8 %v3738
    %v3740 = vlaneseq
    %v3741 = vshrl.u32 %v3740, 7
    %v3742 = vsub.s32 %v3739, %v3741
    %v3743 = vrot.slane %v3729, %v3742
    %v3744 = vcombine.low %v3720, %v3736
    %v3745 = vcombine.high %v3720, %v3736
    %v3747 = vunpack.c.l.s4 1934713408
    %v3748 = vunpack.c.0.s8 %v3747
    %v3749 = vlaneseq
    %v3750 = vshrl.u32 %v3749, 7
    %v3751 = vsub.s32 %v3748, %v3750
    %v3752 = vrot.slane %v3744, %v3751
    %v3754 = vunpack.c.l.s4 1934713408
    %v3755 = vunpack.c.0.s8 %v3754
    %v3756 = vlaneseq
    %v3757 = vshrl.u32 %v3756, 7
    %v3758 = vsub.s32 %v3755, %v3757
    %v3759 = vrot.slane %v3745, %v3758
    %v3760 = vcombine.low %v3727, %v3743
    %v3761 = vcombine.high %v3727, %v3743
    %v3763 = vunpack.c.l.s4 1934713408
    %v3764 = vunpack.c.0.s8 %v3763
    %v3765 = vlaneseq
    %v3766 = vshrl.u32 %v3765, 7
    %v3767 = vsub.s32 %v3764, %v3766
    %v3768 = vrot.slane %v3760, %v3767
    %v3770 = vunpack.c.l.s4 1934713408
    %v3771 = vunpack.c.0.s8 %v3770
    %v3772 = vlaneseq
    %v3773 = vshrl.u32 %v3772, 7
    %v3774 = vsub.s32 %v3771, %v3773
    %v3775 = vrot.slane %v3761, %v3774
    %v3776 = vcombine.high %v3752, 0.0
    %v3777 = vcombine.high %v3759, 0.0
    %v3778 = vcombine.high %v3768, 0.0
    %v3779 = vcombine.high %v3775, 0.0
    %v3780 = vcombine.low %v3684, %v3691
    %v3782 = vunpack.c.l.s4 1983009808
    %v3783 = vunpack.c.0.s8 %v3782
    %v3784 = vlaneseq
    %v3785 = vshrl.u32 %v3784, 7
    %v3786 = vsub.s32 %v3783, %v3785
    %v3787 = vrot.slane %v3780, %v3786
    %v3788 = vcombine.low %v3708, %v3709
    %v3790 = vunpack.c.l.s4 1983009808
    %v3791 = vunpack.c.0.s8 %v3790
    %v3792 = vlaneseq
    %v3793 = vshrl.u32 %v3792, 7
    %v3794 = vsub.s32 %v3791, %v3793
    %v3795 = vrot.slane %v3788, %v3794
    %v3796 = vcombine.low %v3700, %v3707
    %v3798 = vunpack.c.l.s4 1983009808
    %v3799 = vunpack.c.0.s8 %v3798
    %v3800 = vlaneseq
    %v3801 = vshrl.u32 %v3800, 7
    %v3802 = vsub.s32 %v3799, %v3801
    %v3803 = vrot.slane %v3796, %v3802
    %v3804 = vcombine.low %v3710, %v3711
    %v3806 = vunpack.c.l.s4 1983009808
    %v3807 = vunpack.c.0.s8 %v3806
    %v3808 = vlaneseq
    %v3809 = vshrl.u32 %v3808, 7
    %v3810 = vsub.s32 %v3807, %v3809
    %v3811 = vrot.slane %v3804, %v3810
    %v3812 = vcombine.low %v3787, %v3795
    %v3813 = vcombine.high %v3787, %v3795
    %v3815 = vunpack.c.l.s4 1934713408
    %v3816 = vunpack.c.0.s8 %v3815
    %v3817 = vlaneseq
    %v3818 = vshrl.u32 %v3817, 7
    %v3819 = vsub.s32 %v3816, %v3818
    %v3820 = vrot.slane %v3812, %v3819
    %v3822 = vunpack.c.l.s4 1934713408
    %v3823 = vunpack.c.0.s8 %v3822
    %v3824 = vlaneseq
    %v3825 = vshrl.u32 %v3824, 7
    %v3826 = vsub.s32 %v3823, %v3825
    %v3827 = vrot.slane %v3813, %v3826
    %v3828 = vcombine.low %v3803, %v3811
    %v3829 = vcombine.high %v3803, %v3811
    %v3831 = vunpack.c.l.s4 1934713408
    %v3832 = vunpack.c.0.s8 %v3831
    %v3833 = vlaneseq
    %v3834 = vshrl.u32 %v3833, 7
    %v3835 = vsub.s32 %v3832, %v3834
    %v3836 = vrot.slane %v3828, %v3835
    %v3838 = vunpack.c.l.s4 1934713408
    %v3839 = vunpack.c.0.s8 %v3838
    %v3840 = vlaneseq
    %v3841 = vshrl.u32 %v3840, 7
    %v3842 = vsub.s32 %v3839, %v3841
    %v3843 = vrot.slane %v3829, %v3842
    %v3844 = vcombine.low %v3820, %v3836
    %v3845 = vcombine.high %v3820, %v3836
    %v3846 = vcombine.low %v3827, %v3843
    %v3847 = vcombine.high %v3827, %v3843
    %v3848 = vcombine.low %v3752, %v3759
    %v3850 = vunpack.c.l.s4 1983009808
    %v3851 = vunpack.c.0.s8 %v3850
    %v3852 = vlaneseq
    %v3853 = vshrl.u32 %v3852, 7
    %v3854 = vsub.s32 %v3851, %v3853
    %v3855 = vrot.slane %v3848, %v3854
    %v3856 = vcombine.low %v3776, %v3777
    %v3858 = vunpack.c.l.s4 1983009808
    %v3859 = vunpack.c.0.s8 %v3858
    %v3860 = vlaneseq
    %v3861 = vshrl.u32 %v3860, 7
    %v3862 = vsub.s32 %v3859, %v3861
    %v3863 = vrot.slane %v3856, %v3862
    %v3864 = vcombine.low %v3768, %v3775
    %v3866 = vunpack.c.l.s4 1983009808
    %v3867 = vunpack.c.0.s8 %v3866
    %v3868 = vlaneseq
    %v3869 = vshrl.u32 %v3868, 7
    %v3870 = vsub.s32 %v3867, %v3869
    %v3871 = vrot.slane %v3864, %v3870
    %v3872 = vcombine.low %v3778, %v3779
    %v3874 = vunpack.c.l.s4 1983009808
    %v3875 = vunpack.c.0.s8 %v3874
    %v3876 = vlaneseq
    %v3877 = vshrl.u32 %v3876, 7
    %v3878 = vsub.s32 %v3875, %v3877
    %v3879 = vrot.slane %v3872, %v3878
    %v3880 = vcombine.low %v3855, %v3863
    %v3881 = vcombine.high %v3855, %v3863
    %v3883 = vunpack.c.l.s4 1934713408
    %v3884 = vunpack.c.0.s8 %v3883
    %v3885 = vlaneseq
    %v3886 = vshrl.u32 %v3885, 7
    %v3887 = vsub.s32 %v3884, %v3886
    %v3888 = vrot.slane %v3880, %v3887
    %v3890 = vunpack.c.l.s4 1934713408
    %v3891 = vunpack.c.0.s8 %v3890
    %v3892 = vlaneseq
    %v3893 = vshrl.u32 %v3892, 7
    %v3894 = vsub.s32 %v3891, %v3893
    %v3895 = vrot.slane %v3881, %v3894
    %v3896 = vcombine.low %v3871, %v3879
    %v3897 = vcombine.high %v3871, %v3879
    %v3899 = vunpack.c.l.s4 1934713408
    %v3900 = vunpack.c.0.s8 %v3899
    %v3901 = vlaneseq
    %v3902 = vshrl.u32 %v3901, 7
    %v3903 = vsub.s32 %v3900, %v3902
    %v3904 = vrot.slane %v3896, %v3903
    %v3906 = vunpack.c.l.s4 1934713408
    %v3907 = vunpack.c.0.s8 %v3906
    %v3908 = vlaneseq
    %v3909 = vshrl.u32 %v3908, 7
    %v3910 = vsub.s32 %v3907, %v3909
    %v3911 = vrot.slane %v3897, %v3910
    %v3912 = vcombine.low %v3888, %v3904
    %v3913 = vcombine.high %v3888, %v3904
    %v3914 = vcombine.low %v3895, %v3911
    %v3915 = vcombine.high %v3895, %v3911
    %3918 = vrot.lane.b32.xlu0 %v3845, 32
    %v3919 = vpop.permute.xlu0 %3918
    %3920 = vrot.lane.b32.xlu0 %v3913, 32
    %v3921 = vpop.permute.xlu0 %3920
    %3926 = vrot.lane.b32.xlu0 %v3846, 64
    %v3927 = vpop.permute.xlu0 %3926
    %3928 = vrot.lane.b32.xlu0 %v3914, 64
    %v3929 = vpop.permute.xlu0 %3928
    %3934 = vrot.lane.b32.xlu0 %v3847, 96
    %v3935 = vpop.permute.xlu0 %3934
    %3936 = vrot.lane.b32.xlu0 %v3915, 96
    %v3937 = vpop.permute.xlu0 %3936
    %v3940 = vsel %vm1522, %v3844, %v3919
    %v3941 = vsel %vm1522, %v3912, %v3921
    %v3942 = vsel %vm2286, %v3940, %v3927
    %v3943 = vsel %vm2286, %v3941, %v3929
    %v3944 = vsel %vm2289, %v3942, %v3935
    %v3945 = vsel %vm2289, %v3943, %v3937
    %v3946 = vpack.c.bf16 %v2291, %v2290
    %v3947 = vpack.c.bf16 %v3945, %v3944
    %v3948 = vld [vmem:[#allocation14] sm:$0xf]
    %v3949 = vld [vmem:[#allocation14 + $0x4] sm:$0xf]
    %v3950 = vld [vmem:[#allocation14 + $0x8] sm:$0xf]
    %v3951 = vld [vmem:[#allocation14 + $0xc] sm:$0xf]
    %v3952 = vld [vmem:[#allocation14 + $0x10] sm:$0xf]
    %v3953 = vld [vmem:[#allocation14 + $0x14] sm:$0xf]
    %v3954 = vld [vmem:[#allocation14 + $0x18] sm:$0xf]
    %v3955 = vld [vmem:[#allocation14 + $0x1c] sm:$0xf]
    %v3956 = vld [vmem:[#allocation14 + $0x20] sm:$0xf]
    %v3957 = vld [vmem:[#allocation14 + $0x24] sm:$0xf]
    %v3958 = vld [vmem:[#allocation14 + $0x28] sm:$0xf]
    %v3959 = vld [vmem:[#allocation14 + $0x2c] sm:$0xf]
    %v3960 = vld [vmem:[#allocation14 + $0x30] sm:$0xf]
    %v3961 = vld [vmem:[#allocation14 + $0x34] sm:$0xf]
    %v3962 = vld [vmem:[#allocation14 + $0x38] sm:$0xf]
    %v3963 = vld [vmem:[#allocation14 + $0x3c] sm:$0xf]
    %v3964 = vld [vmem:[#allocation16] sm:$0x1]
    %v3966 = vlaneseq
    %v3967 = vshrl.u32 %v3966, 7
    %v3968 = vsub.s32 0, %v3967
    %v3969 = vrot.slane %v3964, %v3968
    %v3987 = vunpack.c.l.b16 %v3948
    %v3988 = vunpack.c.l.b16 %v3949
    %v3989 = vunpack.c.l.b16 %v3950
    %v3990 = vunpack.c.l.b16 %v3951
    %v3991 = vunpack.c.l.b16 %v3952
    %v3992 = vunpack.c.l.b16 %v3953
    %v3993 = vunpack.c.l.b16 %v3954
    %v3994 = vunpack.c.l.b16 %v3955
    %v3995 = vunpack.c.l.b16 %v3956
    %v3996 = vunpack.c.l.b16 %v3957
    %v3997 = vunpack.c.l.b16 %v3958
    %v3998 = vunpack.c.l.b16 %v3959
    %v3999 = vunpack.c.l.b16 %v3960
    %v4000 = vunpack.c.l.b16 %v3961
    %v4001 = vunpack.c.l.b16 %v3962
    %v4002 = vunpack.c.l.b16 %v3963
    %v4003 = vpack.c.b16 %v3988, %v3987
    %v4004 = vpack.c.b16 %v3990, %v3989
    %v4005 = vpack.c.b16 %v3992, %v3991
    %v4006 = vpack.c.b16 %v3994, %v3993
    %v4007 = vpack.c.b16 %v3996, %v3995
    %v4008 = vpack.c.b16 %v3998, %v3997
    %v4009 = vpack.c.b16 %v4000, %v3999
    %v4010 = vpack.c.b16 %v4002, %v4001
    %4019 = vmatprep.subr.bf16.mxu0 0
    %4020 = vmatpush1.bf16.msra.mxu0 %v4003
    %4021 = vmatprep.subr.bf16.mxu0 0
    %4022 = vmatpush1.bf16.msra.mxu0 %v4004
    %4023 = vmatprep.subr.bf16.mxu0 0
    %4024 = vmatpush1.bf16.msra.mxu0 %v4005
    %4025 = vmatprep.subr.bf16.mxu0 0
    %4026 = vmatpush1.bf16.msra.mxu0 %v4006
    %4027 = vmatprep.subr.bf16.mxu0 0
    %4028 = vmatpush1.bf16.msra.mxu0 %v4007
    %4029 = vmatprep.subr.bf16.mxu0 0
    %4030 = vmatpush1.bf16.msra.mxu0 %v4008
    %4031 = vmatprep.subr.bf16.mxu0 0
    %4032 = vmatpush1.bf16.msra.mxu0 %v4009
    %4033 = vmatprep.subr.bf16.mxu0 0
    %4034 = vmatpush1.bf16.msra.mxu0 %v4010
    %4035 = vmatprep.subr.bf16.mxu0 0
    %4036 = vmatpush1.bf16.msra.mxu0 0
    %4037 = vmatprep.subr.bf16.mxu0 0
    %4038 = vmatpush1.bf16.msra.mxu0 0
    %4039 = vmatprep.subr.bf16.mxu0 0
    %4040 = vmatpush1.bf16.msra.mxu0 0
    %4041 = vmatprep.subr.bf16.mxu0 0
    %4042 = vmatpush1.bf16.msra.mxu0 0
    %4043 = vmatprep.subr.bf16.mxu0 0
    %4044 = vmatpush1.bf16.msra.mxu0 0
    %4045 = vmatprep.subr.bf16.mxu0 0
    %4046 = vmatpush1.bf16.msra.mxu0 0
    %4047 = vmatprep.subr.bf16.mxu0 0
    %4048 = vmatpush1.bf16.msra.mxu0 0
    %4049 = vmatprep.subr.bf16.mxu0 0
    %4050 = vmatpush1.bf16.msra.mxu0 0
    %4051 = vmatprep.mubr.bf16.mxu0 0
    %4052 = vmatmul.mubr.bf16.gmra.mrb[0].mxu0 %v3946
    %v4053 = vpop.f32.mrb[0].mxu0
    %v4054 = vadd.f32 %v3969, %v4053
    %v4055 = vpop.f32.mrb[0].mxu0
    %v4056 = vpop.f32.mrb[0].mxu0
    %v4057 = vadd.f32 %v3969, %v4056
    %v4058 = vpop.f32.mrb[0].mxu0
    %4059 = vmatprep.mubr.bf16.mxu0 0
    %4060 = vmatmul.mubr.bf16.gmra.mrb[0].mxu0 %v3947
    %v4061 = vpop.f32.mrb[0].mxu0
    %v4062 = vadd.f32 %v3969, %v4061
    %v4063 = vpop.f32.mrb[0].mxu0
    %v4064 = vpop.f32.mrb[0].mxu0
    %v4065 = vadd.f32 %v3969, %v4064
    %v4066 = vpop.f32.mrb[0].mxu0
    %4067 = vdwg.mxu0
    %v4068 = vadd.f32 %v4054, %v268
    %v4069 = vadd.f32 %v4057, %v269
    %v4070 = vadd.f32 %v4062, %v270
    %v4071 = vadd.f32 %v4065, %v271
    %4072 = vadd.xlane.f32.xlu0 %v4068
    %v4073 = vpop.xlane.xlu0 %4072
    %4074 = vadd.xlane.f32.xlu0 %v4069
    %v4075 = vpop.xlane.xlu0 %4074
    %4076 = vadd.xlane.f32.xlu0 %v4070
    %v4077 = vpop.xlane.xlu0 %4076
    %4078 = vadd.xlane.f32.xlu0 %v4071
    %v4079 = vpop.xlane.xlu0 %4078
    %v4080 = vrcp.pop 128.0
    %v4081 = vmul.f32 %v4073, %v4080
    %v4082 = vmul.f32 %v4075, %v4080
    %v4083 = vmul.f32 %v4077, %v4080
    %v4084 = vmul.f32 %v4079, %v4080
    %v4085 = vmul.f32 %v4068, %v4068
    %v4086 = vmul.f32 %v4069, %v4069
    %v4087 = vmul.f32 %v4070, %v4070
    %v4088 = vmul.f32 %v4071, %v4071
    %4089 = vadd.xlane.f32.xlu0 %v4085
    %v4090 = vpop.xlane.xlu0 %4089
    %4091 = vadd.xlane.f32.xlu0 %v4086
    %v4092 = vpop.xlane.xlu0 %4091
    %4093 = vadd.xlane.f32.xlu0 %v4087
    %v4094 = vpop.xlane.xlu0 %4093
    %4095 = vadd.xlane.f32.xlu0 %v4088
    %v4096 = vpop.xlane.xlu0 %4095
    %v4097 = vmul.f32 %v4090, %v4080
    %v4098 = vmul.f32 %v4092, %v4080
    %v4099 = vmul.f32 %v4094, %v4080
    %v4100 = vmul.f32 %v4096, %v4080
    %v4101 = vmul.f32 %v4081, %v4081
    %v4102 = vmul.f32 %v4082, %v4082
    %v4103 = vmul.f32 %v4083, %v4083
    %v4104 = vmul.f32 %v4084, %v4084
    %v4105 = vsub.f32 %v4097, %v4101
    %v4106 = vsub.f32 %v4098, %v4102
    %v4107 = vsub.f32 %v4099, %v4103
    %v4108 = vsub.f32 %v4100, %v4104
    %v4109 = vsub.f32 %v4068, %v4081
    %v4110 = vsub.f32 %v4069, %v4082
    %v4111 = vsub.f32 %v4070, %v4083
    %v4112 = vsub.f32 %v4071, %v4084
    %v4113 = vadd.f32 %v4105, 1e-12
    %v4114 = vadd.f32 %v4106, 1e-12
    %v4115 = vadd.f32 %v4107, 1e-12
    %v4116 = vadd.f32 %v4108, 1e-12
    %v4117 = vrsqrt.pop %v4113
    %v4118 = vrsqrt.pop %v4114
    %v4119 = vrsqrt.pop %v4115
    %v4120 = vrsqrt.pop %v4116
    %v4121 = vmul.f32 %v4109, %v4117
    %v4122 = vmul.f32 %v4110, %v4118
    %v4123 = vmul.f32 %v4111, %v4119
    %v4124 = vmul.f32 %v4112, %v4120
    %v4125 = vld [vmem:[#allocation17] sm:$0x1]
    %v4127 = vlaneseq
    %v4128 = vshrl.u32 %v4127, 7
    %v4129 = vsub.s32 0, %v4128
    %v4130 = vrot.slane %v4125, %v4129
    %v4132 = vmul.f32 %v4121, %v4130
    %v4133 = vmul.f32 %v4122, %v4130
    %v4134 = vmul.f32 %v4123, %v4130
    %v4135 = vmul.f32 %v4124, %v4130
    %v4136 = vld [vmem:[#allocation19] sm:$0x1]
    %v4138 = vlaneseq
    %v4139 = vshrl.u32 %v4138, 7
    %v4140 = vsub.s32 0, %v4139
    %v4141 = vrot.slane %v4136, %v4140
    %v4143 = vadd.f32 %v4132, %v4141
    %v4144 = vadd.f32 %v4133, %v4141
    %v4145 = vadd.f32 %v4134, %v4141
    %v4146 = vadd.f32 %v4135, %v4141
    %v4147 = vpack.c.bf16 %v4144, %v4143
    %v4148 = vpack.c.bf16 %v4146, %v4145
    %v4149 = vld [vmem:[#allocation20] sm:$0xff]
    %v4150 = vld [vmem:[#allocation20 + $0x8] sm:$0xff]
    %v4151 = vld [vmem:[#allocation20 + $0x10] sm:$0xff]
    %v4152 = vld [vmem:[#allocation20 + $0x18] sm:$0xff]
    %v4153 = vld [vmem:[#allocation20 + $0x20] sm:$0xff]
    %v4154 = vld [vmem:[#allocation20 + $0x28] sm:$0xff]
    %v4155 = vld [vmem:[#allocation20 + $0x30] sm:$0xff]
    %v4156 = vld [vmem:[#allocation20 + $0x38] sm:$0xff]
    %v4157 = vld [vmem:[#allocation20 + $0x40] sm:$0xff]
    %v4158 = vld [vmem:[#allocation20 + $0x48] sm:$0xff]
    %v4159 = vld [vmem:[#allocation20 + $0x50] sm:$0xff]
    %v4160 = vld [vmem:[#allocation20 + $0x58] sm:$0xff]
    %v4161 = vld [vmem:[#allocation20 + $0x60] sm:$0xff]
    %v4162 = vld [vmem:[#allocation20 + $0x68] sm:$0xff]
    %v4163 = vld [vmem:[#allocation20 + $0x70] sm:$0xff]
    %v4164 = vld [vmem:[#allocation20 + $0x78] sm:$0xff]
    %v4165 = vld [vmem:[#allocation22] sm:$0x3]
    %v4167 = vlaneseq
    %v4168 = vshrl.u32 %v4167, 7
    %v4169 = vsub.s32 0, %v4168
    %v4170 = vrot.slane %v4165, %v4169
    %v4171 = vlaneseq
    %v4172 = vshrl.u32 %v4171, 7
    %v4173 = vsub.s32 1, %v4172
    %v4174 = vrot.slane %v4165, %v4173
    %v4193 = vunpack.c.l.b16 %v4149
    %v4194 = vunpack.c.h.b16 %v4149
    %v4195 = vunpack.c.l.b16 %v4150
    %v4196 = vunpack.c.h.b16 %v4150
    %v4197 = vunpack.c.l.b16 %v4151
    %v4198 = vunpack.c.h.b16 %v4151
    %v4199 = vunpack.c.l.b16 %v4152
    %v4200 = vunpack.c.h.b16 %v4152
    %v4201 = vunpack.c.l.b16 %v4153
    %v4202 = vunpack.c.h.b16 %v4153
    %v4203 = vunpack.c.l.b16 %v4154
    %v4204 = vunpack.c.h.b16 %v4154
    %v4205 = vunpack.c.l.b16 %v4155
    %v4206 = vunpack.c.h.b16 %v4155
    %v4207 = vunpack.c.l.b16 %v4156
    %v4208 = vunpack.c.h.b16 %v4156
    %v4209 = vunpack.c.l.b16 %v4157
    %v4210 = vunpack.c.h.b16 %v4157
    %v4211 = vunpack.c.l.b16 %v4158
    %v4212 = vunpack.c.h.b16 %v4158
    %v4213 = vunpack.c.l.b16 %v4159
    %v4214 = vunpack.c.h.b16 %v4159
    %v4215 = vunpack.c.l.b16 %v4160
    %v4216 = vunpack.c.h.b16 %v4160
    %v4217 = vunpack.c.l.b16 %v4161
    %v4218 = vunpack.c.h.b16 %v4161
    %v4219 = vunpack.c.l.b16 %v4162
    %v4220 = vunpack.c.h.b16 %v4162
    %v4221 = vunpack.c.l.b16 %v4163
    %v4222 = vunpack.c.h.b16 %v4163
    %v4223 = vunpack.c.l.b16 %v4164
    %v4224 = vunpack.c.h.b16 %v4164
    %v4225 = vpack.c.b16 %v4195, %v4193
    %v4226 = vpack.c.b16 %v4196, %v4194
    %v4227 = vpack.c.b16 %v4199, %v4197
    %v4228 = vpack.c.b16 %v4200, %v4198
    %v4229 = vpack.c.b16 %v4203, %v4201
    %v4230 = vpack.c.b16 %v4204, %v4202
    %v4231 = vpack.c.b16 %v4207, %v4205
    %v4232 = vpack.c.b16 %v4208, %v4206
    %v4233 = vpack.c.b16 %v4211, %v4209
    %v4234 = vpack.c.b16 %v4212, %v4210
    %v4235 = vpack.c.b16 %v4215, %v4213
    %v4236 = vpack.c.b16 %v4216, %v4214
    %v4237 = vpack.c.b16 %v4219, %v4217
    %v4238 = vpack.c.b16 %v4220, %v4218
    %v4239 = vpack.c.b16 %v4223, %v4221
    %v4240 = vpack.c.b16 %v4224, %v4222
    %4257 = vmatprep.subr.bf16.mxu0 %v4226
    %4258 = vmatpush1.bf16.msra.mxu0 %v4225
    %4259 = vmatprep.subr.bf16.mxu0 %v4228
    %4260 = vmatpush1.bf16.msra.mxu0 %v4227
    %4261 = vmatprep.subr.bf16.mxu0 %v4230
    %4262 = vmatpush1.bf16.msra.mxu0 %v4229
    %4263 = vmatprep.subr.bf16.mxu0 %v4232
    %4264 = vmatpush1.bf16.msra.mxu0 %v4231
    %4265 = vmatprep.subr.bf16.mxu0 %v4234
    %4266 = vmatpush1.bf16.msra.mxu0 %v4233
    %4267 = vmatprep.subr.bf16.mxu0 %v4236
    %4268 = vmatpush1.bf16.msra.mxu0 %v4235
    %4269 = vmatprep.subr.bf16.mxu0 %v4238
    %4270 = vmatpush1.bf16.msra.mxu0 %v4237
    %4271 = vmatprep.subr.bf16.mxu0 %v4240
    %4272 = vmatpush1.bf16.msra.mxu0 %v4239
    %4273 = vmatprep.subr.bf16.mxu0 0
    %4274 = vmatpush1.bf16.msra.mxu0 0
    %4275 = vmatprep.subr.bf16.mxu0 0
    %4276 = vmatpush1.bf16.msra.mxu0 0
    %4277 = vmatprep.subr.bf16.mxu0 0
    %4278 = vmatpush1.bf16.msra.mxu0 0
    %4279 = vmatprep.subr.bf16.mxu0 0
    %4280 = vmatpush1.bf16.msra.mxu0 0
    %4281 = vmatprep.subr.bf16.mxu0 0
    %4282 = vmatpush1.bf16.msra.mxu0 0
    %4283 = vmatprep.subr.bf16.mxu0 0
    %4284 = vmatpush1.bf16.msra.mxu0 0
    %4285 = vmatprep.subr.bf16.mxu0 0
    %4286 = vmatpush1.bf16.msra.mxu0 0
    %4287 = vmatprep.subr.bf16.mxu0 0
    %4288 = vmatpush1.bf16.msra.mxu0 0
    %4289 = vmatprep.mubr.bf16.mxu0 0
    %4290 = vmatmul.mubr.bf16.gmra.mrb[0].mxu0 %v4147
    %v4291 = vpop.f32.mrb[0].mxu0
    %v4292 = vadd.f32 %v4170, %v4291
    %v4293 = vpop.f32.mrb[0].mxu0
    %v4294 = vadd.f32 %v4174, %v4293
    %v4295 = vpop.f32.mrb[0].mxu0
    %v4296 = vadd.f32 %v4170, %v4295
    %v4297 = vpop.f32.mrb[0].mxu0
    %v4298 = vadd.f32 %v4174, %v4297
    %4299 = vmatprep.mubr.bf16.mxu0 0
    %4300 = vmatmul.mubr.bf16.gmra.mrb[0].mxu0 %v4148
    %v4301 = vpop.f32.mrb[0].mxu0
    %v4302 = vadd.f32 %v4170, %v4301
    %v4303 = vpop.f32.mrb[0].mxu0
    %v4304 = vadd.f32 %v4174, %v4303
    %v4305 = vpop.f32.mrb[0].mxu0
    %v4306 = vadd.f32 %v4170, %v4305
    %v4307 = vpop.f32.mrb[0].mxu0
    %v4308 = vadd.f32 %v4174, %v4307
    %4309 = vdwg.mxu0
    %v4310 = vmax.f32 %v4292, 0.0
    %v4311 = vmax.f32 %v4294, 0.0
    %v4312 = vmax.f32 %v4296, 0.0
    %v4313 = vmax.f32 %v4298, 0.0
    %v4314 = vmax.f32 %v4302, 0.0
    %v4315 = vmax.f32 %v4304, 0.0
    %v4316 = vmax.f32 %v4306, 0.0
    %v4317 = vmax.f32 %v4308, 0.0
    %v4318 = vpack.c.bf16 %v4312, %v4310
    %v4319 = vpack.c.bf16 %v4313, %v4311
    %v4320 = vpack.c.bf16 %v4316, %v4314
    %v4321 = vpack.c.bf16 %v4317, %v4315
    %v4322 = vld [vmem:[#allocation23] sm:$0xf]
    %v4323 = vld [vmem:[#allocation23 + $0x4] sm:$0xf]
    %v4324 = vld [vmem:[#allocation23 + $0x8] sm:$0xf]
    %v4325 = vld [vmem:[#allocation23 + $0xc] sm:$0xf]
    %v4326 = vld [vmem:[#allocation23 + $0x10] sm:$0xf]
    %v4327 = vld [vmem:[#allocation23 + $0x14] sm:$0xf]
    %v4328 = vld [vmem:[#allocation23 + $0x18] sm:$0xf]
    %v4329 = vld [vmem:[#allocation23 + $0x1c] sm:$0xf]
    %v4330 = vld [vmem:[#allocation23 + $0x20] sm:$0xf]
    %v4331 = vld [vmem:[#allocation23 + $0x24] sm:$0xf]
    %v4332 = vld [vmem:[#allocation23 + $0x28] sm:$0xf]
    %v4333 = vld [vmem:[#allocation23 + $0x2c] sm:$0xf]
    %v4334 = vld [vmem:[#allocation23 + $0x30] sm:$0xf]
    %v4335 = vld [vmem:[#allocation23 + $0x34] sm:$0xf]
    %v4336 = vld [vmem:[#allocation23 + $0x38] sm:$0xf]
    %v4337 = vld [vmem:[#allocation23 + $0x3c] sm:$0xf]
    %v4338 = vld [vmem:[#allocation23 + $0x40] sm:$0xf]
    %v4339 = vld [vmem:[#allocation23 + $0x44] sm:$0xf]
    %v4340 = vld [vmem:[#allocation23 + $0x48] sm:$0xf]
    %v4341 = vld [vmem:[#allocation23 + $0x4c] sm:$0xf]
    %v4342 = vld [vmem:[#allocation23 + $0x50] sm:$0xf]
    %v4343 = vld [vmem:[#allocation23 + $0x54] sm:$0xf]
    %v4344 = vld [vmem:[#allocation23 + $0x58] sm:$0xf]
    %v4345 = vld [vmem:[#allocation23 + $0x5c] sm:$0xf]
    %v4346 = vld [vmem:[#allocation23 + $0x60] sm:$0xf]
    %v4347 = vld [vmem:[#allocation23 + $0x64] sm:$0xf]
    %v4348 = vld [vmem:[#allocation23 + $0x68] sm:$0xf]
    %v4349 = vld [vmem:[#allocation23 + $0x6c] sm:$0xf]
    %v4350 = vld [vmem:[#allocation23 + $0x70] sm:$0xf]
    %v4351 = vld [vmem:[#allocation23 + $0x74] sm:$0xf]
    %v4352 = vld [vmem:[#allocation23 + $0x78] sm:$0xf]
    %v4353 = vld [vmem:[#allocation23 + $0x7c] sm:$0xf]
    %v4354 = vld [vmem:[#allocation25] sm:$0x1]
    %v4356 = vlaneseq
    %v4357 = vshrl.u32 %v4356, 7
    %v4358 = vsub.s32 0, %v4357
    %v4359 = vrot.slane %v4354, %v4358
    %v4393 = vunpack.c.l.b16 %v4322
    %v4394 = vunpack.c.l.b16 %v4323
    %v4395 = vunpack.c.l.b16 %v4324
    %v4396 = vunpack.c.l.b16 %v4325
    %v4397 = vunpack.c.l.b16 %v4326
    %v4398 = vunpack.c.l.b16 %v4327
    %v4399 = vunpack.c.l.b16 %v4328
    %v4400 = vunpack.c.l.b16 %v4329
    %v4401 = vunpack.c.l.b16 %v4330
    %v4402 = vunpack.c.l.b16 %v4331
    %v4403 = vunpack.c.l.b16 %v4332
    %v4404 = vunpack.c.l.b16 %v4333
    %v4405 = vunpack.c.l.b16 %v4334
    %v4406 = vunpack.c.l.b16 %v4335
    %v4407 = vunpack.c.l.b16 %v4336
    %v4408 = vunpack.c.l.b16 %v4337
    %v4409 = vunpack.c.l.b16 %v4338
    %v4410 = vunpack.c.l.b16 %v4339
    %v4411 = vunpack.c.l.b16 %v4340
    %v4412 = vunpack.c.l.b16 %v4341
    %v4413 = vunpack.c.l.b16 %v4342
    %v4414 = vunpack.c.l.b16 %v4343
    %v4415 = vunpack.c.l.b16 %v4344
    %v4416 = vunpack.c.l.b16 %v4345
    %v4417 = vunpack.c.l.b16 %v4346
    %v4418 = vunpack.c.l.b16 %v4347
    %v4419 = vunpack.c.l.b16 %v4348
    %v4420 = vunpack.c.l.b16 %v4349
    %v4421 = vunpack.c.l.b16 %v4350
    %v4422 = vunpack.c.l.b16 %v4351
    %v4423 = vunpack.c.l.b16 %v4352
    %v4424 = vunpack.c.l.b16 %v4353
    %v4425 = vpack.c.b16 %v4394, %v4393
    %v4426 = vpack.c.b16 %v4396, %v4395
    %v4427 = vpack.c.b16 %v4398, %v4397
    %v4428 = vpack.c.b16 %v4400, %v4399
    %v4429 = vpack.c.b16 %v4402, %v4401
    %v4430 = vpack.c.b16 %v4404, %v4403
    %v4431 = vpack.c.b16 %v4406, %v4405
    %v4432 = vpack.c.b16 %v4408, %v4407
    %v4433 = vpack.c.b16 %v4410, %v4409
    %v4434 = vpack.c.b16 %v4412, %v4411
    %v4435 = vpack.c.b16 %v4414, %v4413
    %v4436 = vpack.c.b16 %v4416, %v4415
    %v4437 = vpack.c.b16 %v4418, %v4417
    %v4438 = vpack.c.b16 %v4420, %v4419
    %v4439 = vpack.c.b16 %v4422, %v4421
    %v4440 = vpack.c.b16 %v4424, %v4423
    %4457 = vmatprep.subr.bf16.mxu0 0
    %4458 = vmatpush1.bf16.msra.mxu0 %v4425
    %4459 = vmatprep.subr.bf16.mxu0 0
    %4460 = vmatpush1.bf16.msra.mxu0 %v4426
    %4461 = vmatprep.subr.bf16.mxu0 0
    %4462 = vmatpush1.bf16.msra.mxu0 %v4427
    %4463 = vmatprep.subr.bf16.mxu0 0
    %4464 = vmatpush1.bf16.msra.mxu0 %v4428
    %4465 = vmatprep.subr.bf16.mxu0 0
    %4466 = vmatpush1.bf16.msra.mxu0 %v4429
    %4467 = vmatprep.subr.bf16.mxu0 0
    %4468 = vmatpush1.bf16.msra.mxu0 %v4430
    %4469 = vmatprep.subr.bf16.mxu0 0
    %4470 = vmatpush1.bf16.msra.mxu0 %v4431
    %4471 = vmatprep.subr.bf16.mxu0 0
    %4472 = vmatpush1.bf16.msra.mxu0 %v4432
    %4473 = vmatprep.subr.bf16.mxu0 0
    %4474 = vmatpush1.bf16.msra.mxu0 %v4433
    %4475 = vmatprep.subr.bf16.mxu0 0
    %4476 = vmatpush1.bf16.msra.mxu0 %v4434
    %4477 = vmatprep.subr.bf16.mxu0 0
    %4478 = vmatpush1.bf16.msra.mxu0 %v4435
    %4479 = vmatprep.subr.bf16.mxu0 0
    %4480 = vmatpush1.bf16.msra.mxu0 %v4436
    %4481 = vmatprep.subr.bf16.mxu0 0
    %4482 = vmatpush1.bf16.msra.mxu0 %v4437
    %4483 = vmatprep.subr.bf16.mxu0 0
    %4484 = vmatpush1.bf16.msra.mxu0 %v4438
    %4485 = vmatprep.subr.bf16.mxu0 0
    %4486 = vmatpush1.bf16.msra.mxu0 %v4439
    %4487 = vmatprep.subr.bf16.mxu0 0
    %4488 = vmatpush1.bf16.msra.mxu0 %v4440
    %4489 = vmatprep.mubr.bf16.mxu0 %v4319
    %4490 = vmatmul.mubr.bf16.gmra.mrb[0].mxu0 %v4318
    %v4491 = vpop.f32.mrb[0].mxu0
    %v4492 = vadd.f32 %v4359, %v4491
    %v4493 = vpop.f32.mrb[0].mxu0
    %v4494 = vpop.f32.mrb[0].mxu0
    %v4495 = vadd.f32 %v4359, %v4494
    %v4496 = vpop.f32.mrb[0].mxu0
    %4497 = vmatprep.mubr.bf16.mxu0 %v4321
    %4498 = vmatmul.mubr.bf16.gmra.mrb[0].mxu0 %v4320
    %v4499 = vpop.f32.mrb[0].mxu0
    %v4500 = vadd.f32 %v4359, %v4499
    %v4501 = vpop.f32.mrb[0].mxu0
    %v4502 = vpop.f32.mrb[0].mxu0
    %v4503 = vadd.f32 %v4359, %v4502
    %v4504 = vpop.f32.mrb[0].mxu0
    %4505 = vdwg.mxu0
    %v4506 = vadd.f32 %v4492, %v4143
    %v4507 = vadd.f32 %v4495, %v4144
    %v4508 = vadd.f32 %v4500, %v4145
    %v4509 = vadd.f32 %v4503, %v4146
    %4510 = vadd.xlane.f32.xlu0 %v4506
    %v4511 = vpop.xlane.xlu0 %4510
    %4512 = vadd.xlane.f32.xlu0 %v4507
    %v4513 = vpop.xlane.xlu0 %4512
    %4514 = vadd.xlane.f32.xlu0 %v4508
    %v4515 = vpop.xlane.xlu0 %4514
    %4516 = vadd.xlane.f32.xlu0 %v4509
    %v4517 = vpop.xlane.xlu0 %4516
    %v4518 = vmul.f32 %v4511, %v4080
    %v4519 = vmul.f32 %v4513, %v4080
    %v4520 = vmul.f32 %v4515, %v4080
    %v4521 = vmul.f32 %v4517, %v4080
    %v4522 = vmul.f32 %v4506, %v4506
    %v4523 = vmul.f32 %v4507, %v4507
    %v4524 = vmul.f32 %v4508, %v4508
    %v4525 = vmul.f32 %v4509, %v4509
    %4526 = vadd.xlane.f32.xlu0 %v4522
    %v4527 = vpop.xlane.xlu0 %4526
    %4528 = vadd.xlane.f32.xlu0 %v4523
    %v4529 = vpop.xlane.xlu0 %4528
    %4530 = vadd.xlane.f32.xlu0 %v4524
    %v4531 = vpop.xlane.xlu0 %4530
    %4532 = vadd.xlane.f32.xlu0 %v4525
    %v4533 = vpop.xlane.xlu0 %4532
    %v4534 = vmul.f32 %v4527, %v4080
    %v4535 = vmul.f32 %v4529, %v4080
    %v4536 = vmul.f32 %v4531, %v4080
    %v4537 = vmul.f32 %v4533, %v4080
    %v4538 = vmul.f32 %v4518, %v4518
    %v4539 = vmul.f32 %v4519, %v4519
    %v4540 = vmul.f32 %v4520, %v4520
    %v4541 = vmul.f32 %v4521, %v4521
    %v4542 = vsub.f32 %v4534, %v4538
    %v4543 = vsub.f32 %v4535, %v4539
    %v4544 = vsub.f32 %v4536, %v4540
    %v4545 = vsub.f32 %v4537, %v4541
    %v4546 = vsub.f32 %v4506, %v4518
    %v4547 = vsub.f32 %v4507, %v4519
    %v4548 = vsub.f32 %v4508, %v4520
    %v4549 = vsub.f32 %v4509, %v4521
    %v4550 = vadd.f32 %v4542, 1e-12
    %v4551 = vadd.f32 %v4543, 1e-12
    %v4552 = vadd.f32 %v4544, 1e-12
    %v4553 = vadd.f32 %v4545, 1e-12
    %v4554 = vrsqrt.pop %v4550
    %v4555 = vrsqrt.pop %v4551
    %v4556 = vrsqrt.pop %v4552
    %v4557 = vrsqrt.pop %v4553
    %v4558 = vmul.f32 %v4546, %v4554
    %v4559 = vmul.f32 %v4547, %v4555
    %v4560 = vmul.f32 %v4548, %v4556
    %v4561 = vmul.f32 %v4549, %v4557
    %v4562 = vld [vmem:[#allocation26] sm:$0x1]
    %v4564 = vlaneseq
    %v4565 = vshrl.u32 %v4564, 7
    %v4566 = vsub.s32 0, %v4565
    %v4567 = vrot.slane %v4562, %v4566
    %v4569 = vmul.f32 %v4558, %v4567
    %v4570 = vmul.f32 %v4559, %v4567
    %v4571 = vmul.f32 %v4560, %v4567
    %v4572 = vmul.f32 %v4561, %v4567
    %v4573 = vld [vmem:[#allocation28] sm:$0x1]
    %v4575 = vlaneseq
    %v4576 = vshrl.u32 %v4575, 7
    %v4577 = vsub.s32 0, %v4576
    %v4578 = vrot.slane %v4573, %v4577
    %v4580 = vadd.f32 %v4569, %v4578
    %v4581 = vadd.f32 %v4570, %v4578
    %v4582 = vadd.f32 %v4571, %v4578
    %v4583 = vadd.f32 %v4572, %v4578
    %4584 = vst [vmem:[#allocation29] sm:$0xff] %v4580
    %4585 = vst [vmem:[#allocation29 + $0x8] sm:$0xff] %v4581
    %4586 = vst [vmem:[#allocation29 + $0x10] sm:$0xff] %v4582
    %4587 = vst [vmem:[#allocation29 + $0x18] sm:$0xff] %v4583
    // Predicated region
    $region138: #{tpu_custom_call.1} parent=1 // pred_check
      _
    $region139: #{tpu_custom_call.1} parent=1 // pred_check_branch
      %4589 = sbr.rel (0) target = $region141
    $region140: #{tpu_custom_call.1} parent=1 // pred_region
      %s4591 = ssub.s32 512, 512
      %4592 = vsyncadd [#allocation4], %s4591
      %s4593 = sshll.u32 [#allocation29], 4
      %s4594 = int_to_ptr.vmem [resolvable:$true] %s4593
      %4599 = dma.vmem_to_hbm [thread:$0]  %s4594, 512, %s17, [#allocation4], 128, 128, 8
    $region141: #{tpu_custom_call.1} parent=1 // pred_fallthru
      _
    // Predicated region
    $region142: #{tpu_custom_call.1} parent=1 // pred_check
      _
    $region143: #{tpu_custom_call.1} parent=1 // pred_check_branch
      %4601 = sbr.rel (0) target = $region145
    $region144: #{tpu_custom_call.1} parent=1 // pred_region
      %4602 = dma.done [#allocation4], 512
    $region145: #{tpu_custom_call.1} parent=1 // pred_fallthru
      _
    %4603 = vsyncpa [#allocation3], 1
    %4604 = vsyncpa [#allocation6], 1
    %4605 = vsyncpa [#allocation9], 1
    %4606 = vsyncpa [#allocation12], 1
    %4607 = vsyncpa [#allocation15], 1
    %4608 = vsyncpa [#allocation18], 1
    %4609 = vsyncpa [#allocation21], 1
    %4610 = vsyncpa [#allocation24], 1
    %4611 = vsyncpa [#allocation27], 1
    %4612 = vsyncpa [#allocation4], 1

</llo_original>
